<compile_context>
chip_gen: v7x
topology: tpu7x:2x2x1
jax: 0.10.0
libtpu: 0.0.40
codegen_flags: <defaults>
</compile_context>

<pallas_src>
import functools
import numpy as np
import jax
import jax.numpy as jnp
from jax.experimental import pallas as pl
from jax.experimental.pallas import tpu as pltpu

# ---------------- scaled-down hyper-parameters (same structure as the module) -------
NUM_CLUSTER = 7          # out_channels == SCG hidden_ch
NODE = (8, 8)            # node_size (original: (128, 128))
C_FEAT = 64              # backbone feature channels (original: 1024)
G_HID = 32               # GCN hidden width (original: 128)
PATCH = 16               # backbone total stride (layer0..layer3 => /16)
IN_CH = 3                # conv0 = Conv2d(3, 64, ...); the 4-channel `.parameters`
                         # cat in __init__ is a functional no-op, forward uses 3 ch.
BN_EPS = 1e-5
OUT_PAD = 128            # NUM_CLUSTER padded to a full 128-lane vector register


# ================================ Pallas kernels =====================================

def _linear_kernel(x_ref, w_ref, b_ref, o_ref, *, relu, bf16):
    x = x_ref[...]
    w = w_ref[...]
    if bf16:
        x = x.astype(jnp.bfloat16)
        w = w.astype(jnp.bfloat16)
    y = jnp.dot(x, w, preferred_element_type=jnp.float32) + b_ref[...]
    if relu:
        y = jnp.maximum(y, 0.0)
    o_ref[...] = y


def _pick_tm(m):
    # whole matrix if small; otherwise an evenly dividing tile so the grid is exact.
    if m <= 256:
        return m
    for cand in (512, 256, 128):
        if m % cand == 0:
            return cand
    return m


def pallas_linear(x, w, b=None, relu=False, bf16=False):
    M, K = x.shape
    N = w.shape[1]
    if b is None:
        b = jnp.zeros((N,), jnp.float32)
    tm = _pick_tm(M)
    return pl.pallas_call(
        functools.partial(_linear_kernel, relu=relu, bf16=bf16),
        out_shape=jax.ShapeDtypeStruct((M, N), jnp.float32),
        grid=(M // tm,),
        in_specs=[pl.BlockSpec((tm, K), lambda i: (i, 0)),
                  pl.BlockSpec((K, N), lambda i: (0, 0)),
                  pl.BlockSpec((1, N), lambda i: (0, 0))],
        out_specs=pl.BlockSpec((tm, N), lambda i: (i, 0)),
        compiler_params=pltpu.CompilerParams(dimension_semantics=("parallel",)),
    )(x, w, b.reshape(1, N))


def _head_kernel(z_ref, g_ref, x_ref, eye_ref, w1_ref, b1_ref, s1_ref, t1_ref,
                 w2_ref, b2_ref, zh_ref, o_ref):
    """Fused SCG adjacency + GCN layer1 (BN+ReLU) + GCN layer2 (+aux z_hat)."""
    z = z_ref[0]                                                   # (N, hidden)
    A = jax.lax.dot_general(z, z, (((1,), (1,)), ((), ())),
                            preferred_element_type=jnp.float32)    # z @ z^T
    A = jnp.maximum(A, 0.0)
    Ad = jnp.sum(z * z, axis=-1, keepdims=True)                    # diag(relu(zz^T)) (N,1)
    eye = eye_ref[...]                                             # constant identity
    gama = g_ref[0]                                                # (1,1) per-head scalar
    A = A + (gama * Ad) * eye + eye                                # enhance_diag + self-loop
    drow = jnp.sum(A, axis=-1, keepdims=True)                      # (N,1)
    dcol = jnp.sum(A, axis=0, keepdims=True)                       # (1,N)
    A = jax.lax.rsqrt(drow + 1e-5) * A * jax.lax.rsqrt(dcol + 1e-5)  # sym-norm Laplacian
    X = x_ref[0]                                                   # (N, C)
    h = jnp.dot(A, X, preferred_element_type=jnp.float32)          # bmm(A, x)
    h = jnp.dot(h, w1_ref[...], preferred_element_type=jnp.float32) + b1_ref[...]
    h = jnp.maximum(h * s1_ref[...] + t1_ref[...], 0.0)            # BN (eval) + ReLU
    h = jnp.dot(A, h, preferred_element_type=jnp.float32)          # bmm(A, y1)
    h = jnp.dot(h, w2_ref[...], preferred_element_type=jnp.float32) + b2_ref[...]
    o_ref[0] = h + zh_ref[0]                                       # aux_pred: += z_hat (padded)


def fused_head_call(z, gama_s, X, z_hat_pad, p):
    B3, N, Hd = z.shape
    C = X.shape[2]
    eye = jnp.eye(N, dtype=jnp.float32)
    return pl.pallas_call(
        _head_kernel,
        out_shape=jax.ShapeDtypeStruct((B3, N, OUT_PAD), jnp.float32),
        grid=(B3,),
        in_specs=[pl.BlockSpec((1, N, Hd), lambda b: (b, 0, 0)),
                  pl.BlockSpec((1, 1, 1), lambda b: (b, 0, 0)),
                  pl.BlockSpec((1, N, C), lambda b: (b, 0, 0)),
                  pl.BlockSpec((N, N), lambda b: (0, 0)),
                  pl.BlockSpec((C, G_HID), lambda b: (0, 0)),
                  pl.BlockSpec((1, G_HID), lambda b: (0, 0)),
                  pl.BlockSpec((1, G_HID), lambda b: (0, 0)),
                  pl.BlockSpec((1, G_HID), lambda b: (0, 0)),
                  pl.BlockSpec((G_HID, OUT_PAD), lambda b: (0, 0)),
                  pl.BlockSpec((1, OUT_PAD), lambda b: (0, 0)),
                  pl.BlockSpec((1, N, OUT_PAD), lambda b: (b, 0, 0))],
        out_specs=pl.BlockSpec((1, N, OUT_PAD), lambda b: (b, 0, 0)),
        compiler_params=pltpu.CompilerParams(dimension_semantics=("parallel",)),
    )(z, gama_s, X, eye, p['gcn1_w'], p['gcn1_b'], p['bn1_scale'], p['bn1_shift'],
      p['gcn2_wp'], p['gcn2_bp'], z_hat_pad)


# =============================== model glue (plain JAX) ==============================

def _im2col_3x3(x):
    # x: (B, C, H, W) -> (B*H*W, C*9), column order c*9 + kh*3 + kw (torch conv weight order)
    B, C, H, W = x.shape
    xp = jnp.pad(x, ((0, 0), (0, 0), (1, 1), (1, 1)))
    cols = [xp[:, :, dh:dh + H, dw:dw + W] for dh in range(3) for dw in range(3)]
    pt = jnp.stack(cols, axis=2)                          # (B, C, 9, H, W)
    return pt.transpose(0, 3, 4, 1, 2).reshape(B * H * W, C * 9)


def backbone(x, p):
    # stand-in for layer0..layer3 (see TODO at top): stride-16 patch conv + ReLU.
    B, C, H, W = x.shape
    ph, pw = H // PATCH, W // PATCH
    patches = x.reshape(B, C, ph, PATCH, pw, PATCH).transpose(0, 2, 4, 1, 3, 5)
    patches = patches.reshape(B * ph * pw, C * PATCH * PATCH)
    feat = pallas_linear(patches, p['bb_w'], p['bb_b'], relu=True, bf16=True)
    return feat.reshape(B, ph, pw, C_FEAT).transpose(0, 3, 1, 2)   # NCHW


def head_forward_batched(g_all, p):
    """SCG + 2-layer GCN for all three rotated heads at once (batch = 3B)."""
    B3, C, H, W = g_all.shape
    nh, nw = NODE
    N = nh * nw
    nheads, B = 3, B3 // 3
    # AdaptiveAvgPool2d(node_size) — integer-factor case
    gp = g_all.reshape(B3, C, nh, H // nh, nw, W // nw).mean(axis=(3, 5))    # (3B,C,nh,nw)
    # fused mu (3x3 conv) + logvar (1x1 conv) projection, lane-padded to 128 columns
    cols = _im2col_3x3(gp)                                                   # (3B*N, C*9)
    proj = pallas_linear(cols, p['proj_w'], p['proj_b'])                     # (3B*N, 128)
    mu_rows = proj[:, :NUM_CLUSTER]
    lv_rows = proj[:, NUM_CLUSTER:2 * NUM_CLUSTER]
    mu = mu_rows.reshape(B3, nh, nw, NUM_CLUSTER).transpose(0, 3, 1, 2)      # NCHW
    logvar = lv_rows.reshape(B3, nh, nw, NUM_CLUSTER).transpose(0, 3, 1, 2)  # NCHW
    # z = mu.reshape(B, nodes, hidden) — row-major NCHW reshape, exactly as torch .view
    z = mu.reshape(B3, N, NUM_CLUSTER)
    lv_flat = logvar.reshape(B3, N, NUM_CLUSTER)
    # gamma: one scalar per scg() call (per rotated head), averaged over that head's batch,
    # as in the PyTorch module; diag(relu(z z^T)) == sum(z*z) so no NxN product is needed.
    Ad = jnp.sum(z * z, axis=-1)                                             # (3B, N)
    mean_ad = Ad.reshape(nheads, B, N).mean(axis=(1, 2))                     # (3,)
    gama = jnp.sqrt(1.0 + 1.0 / (mean_ad + 1e-5))                            # eps guard
    gama_s = jnp.repeat(gama, B).reshape(B3, 1, 1)
    z_hat = gama_s * z * (1.0 - lv_flat)                                     # (3B, N, 7)
    z_hat_pad = jnp.pad(z_hat, ((0, 0), (0, 0), (0, OUT_PAD - NUM_CLUSTER)))
    X = gp.reshape(B3, N, C)                                                 # gx.view(B,-1,C)
    out = fused_head_call(z, gama_s, X, z_hat_pad, p)                        # (3B, N, 128)
    return out[:, :, :NUM_CLUSTER]                                           # (3B, N, 7)


def _bilinear_matrix(out_size, in_size):
    # Row-interpolation matrix for F.interpolate(mode='bilinear', align_corners=False).
    m = np.zeros((out_size, in_size), dtype=np.float32)
    if in_size == 1:
        m[:, 0] = 1.0
        return m
    scale = in_size / out_size
    for o in range(out_size):
        src = max((o + 0.5) * scale - 0.5, 0.0)
        i0 = min(int(np.floor(src)), in_size - 1)
        i1 = min(i0 + 1, in_size - 1)
        w1 = src - i0
        m[o, i0] += 1.0 - w1
        m[o, i1] += w1
    return m


def bilinear_resize(img, out_hw):
    B, C, Hi, Wi = img.shape
    Ho, Wo = int(out_hw[0]), int(out_hw[1])
    if (Ho, Wo) == (Hi, Wi):
        return img                                        # exact identity — skip
    wx_t = jnp.asarray(_bilinear_matrix(Wo, Wi).T)        # (Wi, Wo)
    wy_t = jnp.asarray(_bilinear_matrix(Ho, Hi).T)        # (Hi, Ho)
    # width pass: rows over (b, c, h); lane-dense N = Wo
    t = pallas_linear(img.reshape(B * C * Hi, Wi), wx_t)            # (B*C*Hi, Wo)
    # height pass: rows over (b, c, x); lane-dense N = Ho
    t = t.reshape(B * C, Hi, Wo).transpose(0, 2, 1).reshape(B * C * Wo, Hi)
    o = pallas_linear(t, wy_t)                                       # (B*C*Wo, Ho)
    return o.reshape(B, C, Wo, Ho).transpose(0, 1, 3, 2)             # (B, C, Ho, Wo)


def forward(x, p):
    B = x.shape[0]
    gx = backbone(x, p)                                   # (B, C_FEAT, H, W), H=W=NODE
    H, W = gx.shape[2], gx.shape[3]
    gx90 = jnp.transpose(gx, (0, 1, 3, 2))
    gx180 = jnp.flip(gx, axis=3)

    # run the three rotated heads as one batched pass
    g_all = jnp.concatenate([gx, gx90, gx180], axis=0)    # (3B, C, H, W)
    out_all = head_forward_batched(g_all, p)              # (3B, N, 7)

    o = out_all[:B].reshape(B, NUM_CLUSTER, NODE[0], NODE[1])
    o90 = out_all[B:2 * B].reshape(B, NUM_CLUSTER, NODE[1], NODE[0])
    o = o + jnp.transpose(o90, (0, 1, 3, 2))
    o180 = out_all[2 * B:].reshape(B, NUM_CLUSTER, NODE[0], NODE[1])
    o = o + jnp.flip(o180, axis=3)

    o = bilinear_resize(o, (H, W))                        # identity at this scale — skipped
    o = bilinear_resize(o, (x.shape[2], x.shape[3]))      # F.interpolate -> input size
    return o


# ================================= parameters ========================================

def _xavier(key, shape, fan_in, fan_out):
    std = float(np.sqrt(2.0 / (fan_in + fan_out)))
    return std * jax.random.normal(key, shape, jnp.float32)


def init_params(key):
    ks = jax.random.split(key, 6)
    p = {}
    # backbone stand-in (patch conv)
    kin = IN_CH * PATCH * PATCH
    p['bb_w'] = _xavier(ks[0], (kin, C_FEAT), kin, C_FEAT)
    p['bb_b'] = jnp.zeros((C_FEAT,), jnp.float32)
    # SCG mu: Conv2d(C_FEAT, 7, 3) and logvar: Conv2d(C_FEAT, 7, 1), fused into one
    # lane-padded projection: columns 0..6 = mu, 7..13 = logvar (rest zero).
    mu_w = _xavier(ks[1], (NUM_CLUSTER, C_FEAT, 3, 3), C_FEAT * 9, NUM_CLUSTER * 9)
    lv_w = _xavier(ks[2], (NUM_CLUSTER, C_FEAT, 1, 1), C_FEAT, NUM_CLUSTER)
    mu_wt = np.asarray(mu_w.reshape(NUM_CLUSTER, C_FEAT * 9).T)     # (C*9, 7)
    lv_wt = np.asarray(lv_w.reshape(NUM_CLUSTER, C_FEAT).T)         # (C, 7)
    proj_w = np.zeros((C_FEAT * 9, OUT_PAD), np.float32)
    proj_w[:, :NUM_CLUSTER] = mu_wt
    proj_w[np.arange(C_FEAT) * 9 + 4, NUM_CLUSTER:2 * NUM_CLUSTER] = lv_wt   # 1x1 = center tap
    p['proj_w'] = jnp.asarray(proj_w)
    p['proj_b'] = jnp.zeros((OUT_PAD,), jnp.float32)                 # both conv biases are zero
    # GCN layer 1: Linear(C_FEAT, G_HID) + BatchNorm_GCN (eval stats) + ReLU
    p['gcn1_w'] = _xavier(ks[3], (C_FEAT, G_HID), C_FEAT, G_HID)
    p['gcn1_b'] = jnp.zeros((1, G_HID), jnp.float32)
    p['bn1_scale'] = jnp.full((1, G_HID), 1.0 / np.sqrt(1.0 + BN_EPS), jnp.float32)
    p['bn1_shift'] = jnp.zeros((1, G_HID), jnp.float32)
    # GCN layer 2: Linear(G_HID, 7), zero-padded to 128 output lanes
    g2 = np.asarray(_xavier(ks[4], (G_HID, NUM_CLUSTER), G_HID, NUM_CLUSTER))
    g2p = np.zeros((G_HID, OUT_PAD), np.float32)
    g2p[:, :NUM_CLUSTER] = g2
    p['gcn2_wp'] = jnp.asarray(g2p)
    p['gcn2_bp'] = jnp.zeros((1, OUT_PAD), jnp.float32)
    return p


# =================================== main ============================================

if __name__ == "__main__":
    key = jax.random.PRNGKey(0)
    kx, kp = jax.random.split(key)
    params = init_params(kp)
    # input: NCHW, 3 channels, 128x128 so the /16 backbone feature matches NODE=(8,8)
    x = jax.random.normal(kx, (2, IN_CH, 128, 128), jnp.float32)

    out = jax.jit(forward)(x, params)
    out = jax.block_until_ready(out)

    assert out.shape == (2, NUM_CLUSTER, 128, 128), out.shape
    assert bool(jnp.all(jnp.isfinite(out)))
    print("KERNEL_OK")
</pallas_src>

<mosaic_0001>
module attributes {stable_mosaic.version = 11 : i64} {
  func.func @_linear_kernel(%arg0: i32, %arg1: memref<128x768xf32, #tpu.memory_space<vmem>>, %arg2: memref<768x64xf32, #tpu.memory_space<vmem>>, %arg3: memref<1x64xf32, #tpu.memory_space<vmem>>, %arg4: memref<128x64xf32, #tpu.memory_space<vmem>>) attributes {dimension_semantics = [#tpu.dimension_semantics<parallel>], iteration_bounds = array<i64: 1>, scalar_prefetch = 0 : i64, scratch_operands = 0 : i64, tpu.core_type = #tpu.core_type<tc>, window_params = [{transform_indices = @transform_0, window_bounds = array<i64: 128, 768>}, {pipeline_mode = #tpu.pipeline_mode<synchronous>, transform_indices = @transform_1, window_bounds = array<i64: 768, 64>}, {pipeline_mode = #tpu.pipeline_mode<synchronous>, transform_indices = @transform_2, window_bounds = array<i64: 1, 64>}, {transform_indices = @transform_3, window_bounds = array<i64: 128, 64>}]} {
    %c0 = arith.constant 0 : index
    %c0_0 = arith.constant 0 : index
    %0 = vector.load %arg1[%c0, %c0_0] : memref<128x768xf32, #tpu.memory_space<vmem>>, vector<128x768xf32>
    %c0_1 = arith.constant 0 : index
    %c0_2 = arith.constant 0 : index
    %1 = vector.load %arg2[%c0_1, %c0_2] : memref<768x64xf32, #tpu.memory_space<vmem>>, vector<768x64xf32>
    %2 = arith.truncf %0 : vector<128x768xf32> to vector<128x768xbf16>
    %3 = arith.truncf %1 : vector<768x64xf32> to vector<768x64xbf16>
    %cst = arith.constant dense<0.000000e+00> : vector<128x64xf32>
    %4 = tpu.matmul %2, %3, %cst {dimension_numbers = #tpu.dot_dimension_numbers<[1], [0], [0], [1], [0, 0, 1, 1], [], []>} : vector<128x768xbf16>, vector<768x64xbf16>, vector<128x64xf32> -> vector<128x64xf32>
    %c0_3 = arith.constant 0 : index
    %c0_4 = arith.constant 0 : index
    %5 = vector.load %arg3[%c0_3, %c0_4] : memref<1x64xf32, #tpu.memory_space<vmem>>, vector<1x64xf32>
    %6 = vector.broadcast %5 : vector<1x64xf32> to vector<128x64xf32>
    %7 = arith.addf %4, %6 : vector<128x64xf32>
    %cst_5 = arith.constant 0.000000e+00 : f32
    %8 = vector.broadcast %cst_5 : f32 to vector<128x64xf32>
    %9 = arith.maximumf %7, %8 : vector<128x64xf32>
    %c0_6 = arith.constant 0 : index
    %c0_7 = arith.constant 0 : index
    %10 = vector.load %arg4[%c0_6, %c0_7] : memref<128x64xf32, #tpu.memory_space<vmem>>, vector<128x64xf32>
    tpu.vector_store %arg4[%c0_6, %c0_7], %9 {strides = array<i32>} : memref<128x64xf32, #tpu.memory_space<vmem>>, vector<128x64xf32>,
    return
  }
  func.func @transform_0(%arg0: i32) -> (i32, i32) {
    %c0_i32 = arith.constant 0 : i32
    %c0_i32_0 = arith.constant 0 : i32
    return %arg0, %c0_i32 : i32, i32
  }
  func.func @transform_1(%arg0: i32) -> (i32, i32) {
    %c0_i32 = arith.constant 0 : i32
    %c0_i32_0 = arith.constant 0 : i32
    %c0_i32_1 = arith.constant 0 : i32
    return %c0_i32, %c0_i32_0 : i32, i32
  }
  func.func @transform_2(%arg0: i32) -> (i32, i32) {
    %c0_i32 = arith.constant 0 : i32
    %c0_i32_0 = arith.constant 0 : i32
    %c0_i32_1 = arith.constant 0 : i32
    return %c0_i32, %c0_i32_0 : i32, i32
  }
  func.func @transform_3(%arg0: i32) -> (i32, i32) {
    %c0_i32 = arith.constant 0 : i32
    %c0_i32_0 = arith.constant 0 : i32
    return %arg0, %c0_i32 : i32, i32
  }
}

module attributes {stable_mosaic.version = 11 : i64} {
  func.func @_linear_kernel(%arg0: i32, %arg1: memref<128x576xf32, #tpu.memory_space<vmem>>, %arg2: memref<576x128xf32, #tpu.memory_space<vmem>>, %arg3: memref<1x128xf32, #tpu.memory_space<vmem>>, %arg4: memref<128x128xf32, #tpu.memory_space<vmem>>) attributes {dimension_semantics = [#tpu.dimension_semantics<parallel>], iteration_bounds = array<i64: 3>, scalar_prefetch = 0 : i64, scratch_operands = 0 : i64, tpu.core_type = #tpu.core_type<tc>, window_params = [{transform_indices = @transform_0, window_bounds = array<i64: 128, 576>}, {pipeline_mode = #tpu.pipeline_mode<synchronous>, transform_indices = @transform_1, window_bounds = array<i64: 576, 128>}, {pipeline_mode = #tpu.pipeline_mode<synchronous>, transform_indices = @transform_2, window_bounds = array<i64: 1, 128>}, {transform_indices = @transform_3, window_bounds = array<i64: 128, 128>}]} {
    %c0 = arith.constant 0 : index
    %c0_0 = arith.constant 0 : index
    %0 = vector.load %arg1[%c0, %c0_0] : memref<128x576xf32, #tpu.memory_space<vmem>>, vector<128x576xf32>
    %c0_1 = arith.constant 0 : index
    %c0_2 = arith.constant 0 : index
    %1 = vector.load %arg2[%c0_1, %c0_2] : memref<576x128xf32, #tpu.memory_space<vmem>>, vector<576x128xf32>
    %cst = arith.constant dense<0.000000e+00> : vector<128x128xf32>
    %2 = tpu.matmul %0, %1, %cst {dimension_numbers = #tpu.dot_dimension_numbers<[1], [0], [0], [1], [0, 0, 1, 1], [], []>} : vector<128x576xf32>, vector<576x128xf32>, vector<128x128xf32> -> vector<128x128xf32>
    %c0_3 = arith.constant 0 : index
    %c0_4 = arith.constant 0 : index
    %3 = vector.load %arg3[%c0_3, %c0_4] : memref<1x128xf32, #tpu.memory_space<vmem>>, vector<1x128xf32>
    %4 = vector.broadcast %3 : vector<1x128xf32> to vector<128x128xf32>
    %5 = arith.addf %2, %4 : vector<128x128xf32>
    %c0_5 = arith.constant 0 : index
    %c0_6 = arith.constant 0 : index
    %6 = vector.load %arg4[%c0_5, %c0_6] : memref<128x128xf32, #tpu.memory_space<vmem>>, vector<128x128xf32>
    tpu.vector_store %arg4[%c0_5, %c0_6], %5 {strides = array<i32>} : memref<128x128xf32, #tpu.memory_space<vmem>>, vector<128x128xf32>,
    return
  }
  func.func @transform_0(%arg0: i32) -> (i32, i32) {
    %c0_i32 = arith.constant 0 : i32
    %c0_i32_0 = arith.constant 0 : i32
    return %arg0, %c0_i32 : i32, i32
  }
  func.func @transform_1(%arg0: i32) -> (i32, i32) {
    %c0_i32 = arith.constant 0 : i32
    %c0_i32_0 = arith.constant 0 : i32
    %c0_i32_1 = arith.constant 0 : i32
    return %c0_i32, %c0_i32_0 : i32, i32
  }
  func.func @transform_2(%arg0: i32) -> (i32, i32) {
    %c0_i32 = arith.constant 0 : i32
    %c0_i32_0 = arith.constant 0 : i32
    %c0_i32_1 = arith.constant 0 : i32
    return %c0_i32, %c0_i32_0 : i32, i32
  }
  func.func @transform_3(%arg0: i32) -> (i32, i32) {
    %c0_i32 = arith.constant 0 : i32
    %c0_i32_0 = arith.constant 0 : i32
    return %arg0, %c0_i32 : i32, i32
  }
}

module attributes {stable_mosaic.version = 11 : i64} {
  func.func @_head_kernel(%arg0: i32, %arg1: memref<1x64x7xf32, #tpu.memory_space<vmem>>, %arg2: memref<1x1x1xf32, #tpu.memory_space<vmem>>, %arg3: memref<1x64x64xf32, #tpu.memory_space<vmem>>, %arg4: memref<64x64xf32, #tpu.memory_space<vmem>>, %arg5: memref<64x32xf32, #tpu.memory_space<vmem>>, %arg6: memref<1x32xf32, #tpu.memory_space<vmem>>, %arg7: memref<1x32xf32, #tpu.memory_space<vmem>>, %arg8: memref<1x32xf32, #tpu.memory_space<vmem>>, %arg9: memref<32x128xf32, #tpu.memory_space<vmem>>, %arg10: memref<1x128xf32, #tpu.memory_space<vmem>>, %arg11: memref<1x64x128xf32, #tpu.memory_space<vmem>>, %arg12: memref<1x64x128xf32, #tpu.memory_space<vmem>>) attributes {dimension_semantics = [#tpu.dimension_semantics<parallel>], iteration_bounds = array<i64: 6>, scalar_prefetch = 0 : i64, scratch_operands = 0 : i64, tpu.core_type = #tpu.core_type<tc>, window_params = [{transform_indices = @transform_0, window_bounds = array<i64: 1, 64, 7>}, {transform_indices = @transform_1, window_bounds = array<i64: 1, 1, 1>}, {transform_indices = @transform_2, window_bounds = array<i64: 1, 64, 64>}, {pipeline_mode = #tpu.pipeline_mode<synchronous>, transform_indices = @transform_3, window_bounds = array<i64: 64, 64>}, {pipeline_mode = #tpu.pipeline_mode<synchronous>, transform_indices = @transform_4, window_bounds = array<i64: 64, 32>}, {pipeline_mode = #tpu.pipeline_mode<synchronous>, transform_indices = @transform_5, window_bounds = array<i64: 1, 32>}, {pipeline_mode = #tpu.pipeline_mode<synchronous>, transform_indices = @transform_6, window_bounds = array<i64: 1, 32>}, {pipeline_mode = #tpu.pipeline_mode<synchronous>, transform_indices = @transform_7, window_bounds = array<i64: 1, 32>}, {pipeline_mode = #tpu.pipeline_mode<synchronous>, transform_indices = @transform_8, window_bounds = array<i64: 32, 128>}, {pipeline_mode = #tpu.pipeline_mode<synchronous>, transform_indices = @transform_9, window_bounds = array<i64: 1, 128>}, {transform_indices = @transform_10, window_bounds = array<i64: 1, 64, 128>}, {transform_indices = @transform_11, window_bounds = array<i64: 1, 64, 128>}]} {
    %c0 = arith.constant 0 : index
    %c0_0 = arith.constant 0 : index
    %c0_1 = arith.constant 0 : index
    %0 = vector.load %arg1[%c0, %c0_0, %c0_1] : memref<1x64x7xf32, #tpu.memory_space<vmem>>, vector<1x64x7xf32>
    %1 = vector.shape_cast %0 : vector<1x64x7xf32> to vector<64x7xf32>
    %cst = arith.constant dense<0.000000e+00> : vector<64x64xf32>
    %2 = tpu.matmul %1, %1, %cst {dimension_numbers = #tpu.dot_dimension_numbers<[1], [1], [0], [0], [0, 0, 1, 0], [], []>} : vector<64x7xf32>, vector<64x7xf32>, vector<64x64xf32> -> vector<64x64xf32>
    %cst_2 = arith.constant 0.000000e+00 : f32
    %3 = vector.broadcast %cst_2 : f32 to vector<64x64xf32>
    %4 = arith.maximumf %2, %3 : vector<64x64xf32>
    %5 = arith.mulf %1, %1 : vector<64x7xf32>
    %cst_3 = arith.constant dense<0.000000e+00> : vector<64xf32>
    %6 = vector.multi_reduction <add>, %5, %cst_3 [1] : vector<64x7xf32> to vector<64xf32>
    %7 = vector.shape_cast %6 : vector<64xf32> to vector<64x1xf32>
    %c0_4 = arith.constant 0 : index
    %c0_5 = arith.constant 0 : index
    %8 = vector.load %arg4[%c0_4, %c0_5] : memref<64x64xf32, #tpu.memory_space<vmem>>, vector<64x64xf32>
    %c0_6 = arith.constant 0 : index
    %c0_7 = arith.constant 0 : index
    %c0_8 = arith.constant 0 : index
    %9 = vector.load %arg2[%c0_6, %c0_7, %c0_8] : memref<1x1x1xf32, #tpu.memory_space<vmem>>, vector<1x1x1xf32>
    %10 = vector.shape_cast %9 : vector<1x1x1xf32> to vector<1x1xf32>
    %11 = vector.broadcast %10 : vector<1x1xf32> to vector<64x1xf32>
    %12 = arith.mulf %11, %7 : vector<64x1xf32>
    %13 = vector.broadcast %12 : vector<64x1xf32> to vector<64x64xf32>
    %14 = arith.mulf %13, %8 : vector<64x64xf32>
    %15 = arith.addf %4, %14 : vector<64x64xf32>
    %16 = arith.addf %15, %8 : vector<64x64xf32>
    %cst_9 = arith.constant dense<0.000000e+00> : vector<64xf32>
    %17 = vector.multi_reduction <add>, %16, %cst_9 [1] : vector<64x64xf32> to vector<64xf32>
    %18 = vector.shape_cast %17 : vector<64xf32> to vector<64x1xf32>
    %cst_10 = arith.constant dense<0.000000e+00> : vector<64xf32>
    %19 = vector.multi_reduction <add>, %16, %cst_10 [0] : vector<64x64xf32> to vector<64xf32>
    %20 = vector.shape_cast %19 : vector<64xf32> to vector<1x64xf32>
    %cst_11 = arith.constant 9.99999974E-6 : f32
    %21 = vector.broadcast %cst_11 : f32 to vector<64x1xf32>
    %22 = arith.addf %18, %21 : vector<64x1xf32>
    %23 = math.rsqrt %22 : vector<64x1xf32>
    %24 = vector.broadcast %23 : vector<64x1xf32> to vector<64x64xf32>
    %25 = arith.mulf %24, %16 : vector<64x64xf32>
    %cst_12 = arith.constant 9.99999974E-6 : f32
    %26 = vector.broadcast %cst_12 : f32 to vector<1x64xf32>
    %27 = arith.addf %20, %26 : vector<1x64xf32>
    %28 = math.rsqrt %27 : vector<1x64xf32>
    %29 = vector.broadcast %28 : vector<1x64xf32> to vector<64x64xf32>
    %30 = arith.mulf %25, %29 : vector<64x64xf32>
    %c0_13 = arith.constant 0 : index
    %c0_14 = arith.constant 0 : index
    %c0_15 = arith.constant 0 : index
    %31 = vector.load %arg3[%c0_13, %c0_14, %c0_15] : memref<1x64x64xf32, #tpu.memory_space<vmem>>, vector<1x64x64xf32>
    %32 = vector.shape_cast %31 : vector<1x64x64xf32> to vector<64x64xf32>
    %cst_16 = arith.constant dense<0.000000e+00> : vector<64x64xf32>
    %33 = tpu.matmul %30, %32, %cst_16 {dimension_numbers = #tpu.dot_dimension_numbers<[1], [0], [0], [1], [0, 0, 1, 1], [], []>} : vector<64x64xf32>, vector<64x64xf32>, vector<64x64xf32> -> vector<64x64xf32>
    %c0_17 = arith.constant 0 : index
    %c0_18 = arith.constant 0 : index
    %34 = vector.load %arg5[%c0_17, %c0_18] : memref<64x32xf32, #tpu.memory_space<vmem>>, vector<64x32xf32>
    %cst_19 = arith.constant dense<0.000000e+00> : vector<64x32xf32>
    %35 = tpu.matmul %33, %34, %cst_19 {dimension_numbers = #tpu.dot_dimension_numbers<[1], [0], [0], [1], [0, 0, 1, 1], [], []>} : vector<64x64xf32>, vector<64x32xf32>, vector<64x32xf32> -> vector<64x32xf32>
    %c0_20 = arith.constant 0 : index
    %c0_21 = arith.constant 0 : index
    %36 = vector.load %arg6[%c0_20, %c0_21] : memref<1x32xf32, #tpu.memory_space<vmem>>, vector<1x32xf32>
    %37 = vector.broadcast %36 : vector<1x32xf32> to vector<64x32xf32>
    %38 = arith.addf %35, %37 : vector<64x32xf32>
    %c0_22 = arith.constant 0 : index
    %c0_23 = arith.constant 0 : index
    %39 = vector.load %arg7[%c0_22, %c0_23] : memref<1x32xf32, #tpu.memory_space<vmem>>, vector<1x32xf32>
    %40 = vector.broadcast %39 : vector<1x32xf32> to vector<64x32xf32>
    %41 = arith.mulf %38, %40 : vector<64x32xf32>
    %c0_24 = arith.constant 0 : index
    %c0_25 = arith.constant 0 : index
    %42 = vector.load %arg8[%c0_24, %c0_25] : memref<1x32xf32, #tpu.memory_space<vmem>>, vector<1x32xf32>
    %43 = vector.broadcast %42 : vector<1x32xf32> to vector<64x32xf32>
    %44 = arith.addf %41, %43 : vector<64x32xf32>
    %cst_26 = arith.constant 0.000000e+00 : f32
    %45 = vector.broadcast %cst_26 : f32 to vector<64x32xf32>
    %46 = arith.maximumf %44, %45 : vector<64x32xf32>
    %cst_27 = arith.constant dense<0.000000e+00> : vector<64x32xf32>
    %47 = tpu.matmul %30, %46, %cst_27 {dimension_numbers = #tpu.dot_dimension_numbers<[1], [0], [0], [1], [0, 0, 1, 1], [], []>} : vector<64x64xf32>, vector<64x32xf32>, vector<64x32xf32> -> vector<64x32xf32>
    %c0_28 = arith.constant 0 : index
    %c0_29 = arith.constant 0 : index
    %48 = vector.load %arg9[%c0_28, %c0_29] : memref<32x128xf32, #tpu.memory_space<vmem>>, vector<32x128xf32>
    %cst_30 = arith.constant dense<0.000000e+00> : vector<64x128xf32>
    %49 = tpu.matmul %47, %48, %cst_30 {dimension_numbers = #tpu.dot_dimension_numbers<[1], [0], [0], [1], [0, 0, 1, 1], [], []>} : vector<64x32xf32>, vector<32x128xf32>, vector<64x128xf32> -> vector<64x128xf32>
    %c0_31 = arith.constant 0 : index
    %c0_32 = arith.constant 0 : index
    %50 = vector.load %arg10[%c0_31, %c0_32] : memref<1x128xf32, #tpu.memory_space<vmem>>, vector<1x128xf32>
    %51 = vector.broadcast %50 : vector<1x128xf32> to vector<64x128xf32>
    %52 = arith.addf %49, %51 : vector<64x128xf32>
    %c0_33 = arith.constant 0 : index
    %c0_34 = arith.constant 0 : index
    %c0_35 = arith.constant 0 : index
    %53 = vector.load %arg11[%c0_33, %c0_34, %c0_35] : memref<1x64x128xf32, #tpu.memory_space<vmem>>, vector<1x64x128xf32>
    %54 = vector.shape_cast %53 : vector<1x64x128xf32> to vector<64x128xf32>
    %55 = arith.addf %52, %54 : vector<64x128xf32>
    %c0_36 = arith.constant 0 : index
    %c0_37 = arith.constant 0 : index
    %c0_38 = arith.constant 0 : index
    %56 = vector.load %arg12[%c0_36, %c0_37, %c0_38] : memref<1x64x128xf32, #tpu.memory_space<vmem>>, vector<1x64x128xf32>
    %57 = vector.shape_cast %56 : vector<1x64x128xf32> to vector<64x128xf32>
    %58 = vector.shape_cast %55 : vector<64x128xf32> to vector<1x64x128xf32>
    tpu.vector_store %arg12[%c0_36, %c0_37, %c0_38], %58 {strides = array<i32>} : memref<1x64x128xf32, #tpu.memory_space<vmem>>, vector<1x64x128xf32>,
    return
  }
  func.func @transform_0(%arg0: i32) -> (i32, i32, i32) {
    %c0_i32 = arith.constant 0 : i32
    %c0_i32_0 = arith.constant 0 : i32
    %c0_i32_1 = arith.constant 0 : i32
    return %arg0, %c0_i32, %c0_i32_0 : i32, i32, i32
  }
  func.func @transform_1(%arg0: i32) -> (i32, i32, i32) {
    %c0_i32 = arith.constant 0 : i32
    %c0_i32_0 = arith.constant 0 : i32
    %c0_i32_1 = arith.constant 0 : i32
    return %arg0, %c0_i32, %c0_i32_0 : i32, i32, i32
  }
  func.func @transform_2(%arg0: i32) -> (i32, i32, i32) {
    %c0_i32 = arith.constant 0 : i32
    %c0_i32_0 = arith.constant 0 : i32
    %c0_i32_1 = arith.constant 0 : i32
    return %arg0, %c0_i32, %c0_i32_0 : i32, i32, i32
  }
  func.func @transform_3(%arg0: i32) -> (i32, i32) {
    %c0_i32 = arith.constant 0 : i32
    %c0_i32_0 = arith.constant 0 : i32
    %c0_i32_1 = arith.constant 0 : i32
    return %c0_i32, %c0_i32_0 : i32, i32
  }
  func.func @transform_4(%arg0: i32) -> (i32, i32) {
    %c0_i32 = arith.constant 0 : i32
    %c0_i32_0 = arith.constant 0 : i32
    %c0_i32_1 = arith.constant 0 : i32
    return %c0_i32, %c0_i32_0 : i32, i32
  }
  func.func @transform_5(%arg0: i32) -> (i32, i32) {
    %c0_i32 = arith.constant 0 : i32
    %c0_i32_0 = arith.constant 0 : i32
    %c0_i32_1 = arith.constant 0 : i32
    return %c0_i32, %c0_i32_0 : i32, i32
  }
  func.func @transform_6(%arg0: i32) -> (i32, i32) {
    %c0_i32 = arith.constant 0 : i32
    %c0_i32_0 = arith.constant 0 : i32
    %c0_i32_1 = arith.constant 0 : i32
    return %c0_i32, %c0_i32_0 : i32, i32
  }
  func.func @transform_7(%arg0: i32) -> (i32, i32) {
    %c0_i32 = arith.constant 0 : i32
    %c0_i32_0 = arith.constant 0 : i32
    %c0_i32_1 = arith.constant 0 : i32
    return %c0_i32, %c0_i32_0 : i32, i32
  }
  func.func @transform_8(%arg0: i32) -> (i32, i32) {
    %c0_i32 = arith.constant 0 : i32
    %c0_i32_0 = arith.constant 0 : i32
    %c0_i32_1 = arith.constant 0 : i32
    return %c0_i32, %c0_i32_0 : i32, i32
  }
  func.func @transform_9(%arg0: i32) -> (i32, i32) {
    %c0_i32 = arith.constant 0 : i32
    %c0_i32_0 = arith.constant 0 : i32
    %c0_i32_1 = arith.constant 0 : i32
    return %c0_i32, %c0_i32_0 : i32, i32
  }
  func.func @transform_10(%arg0: i32) -> (i32, i32, i32) {
    %c0_i32 = arith.constant 0 : i32
    %c0_i32_0 = arith.constant 0 : i32
    %c0_i32_1 = arith.constant 0 : i32
    return %arg0, %c0_i32, %c0_i32_0 : i32, i32, i32
  }
  func.func @transform_11(%arg0: i32) -> (i32, i32, i32) {
    %c0_i32 = arith.constant 0 : i32
    %c0_i32_0 = arith.constant 0 : i32
    %c0_i32_1 = arith.constant 0 : i32
    return %arg0, %c0_i32, %c0_i32_0 : i32, i32, i32
  }
}

module attributes {stable_mosaic.version = 11 : i64} {
  func.func @_linear_kernel(%arg0: i32, %arg1: memref<112x8xf32, #tpu.memory_space<vmem>>, %arg2: memref<8x128xf32, #tpu.memory_space<vmem>>, %arg3: memref<1x128xf32, #tpu.memory_space<vmem>>, %arg4: memref<112x128xf32, #tpu.memory_space<vmem>>) attributes {dimension_semantics = [#tpu.dimension_semantics<parallel>], iteration_bounds = array<i64: 1>, scalar_prefetch = 0 : i64, scratch_operands = 0 : i64, tpu.core_type = #tpu.core_type<tc>, window_params = [{transform_indices = @transform_0, window_bounds = array<i64: 112, 8>}, {pipeline_mode = #tpu.pipeline_mode<synchronous>, transform_indices = @transform_1, window_bounds = array<i64: 8, 128>}, {pipeline_mode = #tpu.pipeline_mode<synchronous>, transform_indices = @transform_2, window_bounds = array<i64: 1, 128>}, {transform_indices = @transform_3, window_bounds = array<i64: 112, 128>}]} {
    %c0 = arith.constant 0 : index
    %c0_0 = arith.constant 0 : index
    %0 = vector.load %arg1[%c0, %c0_0] : memref<112x8xf32, #tpu.memory_space<vmem>>, vector<112x8xf32>
    %c0_1 = arith.constant 0 : index
    %c0_2 = arith.constant 0 : index
    %1 = vector.load %arg2[%c0_1, %c0_2] : memref<8x128xf32, #tpu.memory_space<vmem>>, vector<8x128xf32>
    %cst = arith.constant dense<0.000000e+00> : vector<112x128xf32>
    %2 = tpu.matmul %0, %1, %cst {dimension_numbers = #tpu.dot_dimension_numbers<[1], [0], [0], [1], [0, 0, 1, 1], [], []>} : vector<112x8xf32>, vector<8x128xf32>, vector<112x128xf32> -> vector<112x128xf32>
    %c0_3 = arith.constant 0 : index
    %c0_4 = arith.constant 0 : index
    %3 = vector.load %arg3[%c0_3, %c0_4] : memref<1x128xf32, #tpu.memory_space<vmem>>, vector<1x128xf32>
    %4 = vector.broadcast %3 : vector<1x128xf32> to vector<112x128xf32>
    %5 = arith.addf %2, %4 : vector<112x128xf32>
    %c0_5 = arith.constant 0 : index
    %c0_6 = arith.constant 0 : index
    %6 = vector.load %arg4[%c0_5, %c0_6] : memref<112x128xf32, #tpu.memory_space<vmem>>, vector<112x128xf32>
    tpu.vector_store %arg4[%c0_5, %c0_6], %5 {strides = array<i32>} : memref<112x128xf32, #tpu.memory_space<vmem>>, vector<112x128xf32>,
    return
  }
  func.func @transform_0(%arg0: i32) -> (i32, i32) {
    %c0_i32 = arith.constant 0 : i32
    %c0_i32_0 = arith.constant 0 : i32
    return %arg0, %c0_i32 : i32, i32
  }
  func.func @transform_1(%arg0: i32) -> (i32, i32) {
    %c0_i32 = arith.constant 0 : i32
    %c0_i32_0 = arith.constant 0 : i32
    %c0_i32_1 = arith.constant 0 : i32
    return %c0_i32, %c0_i32_0 : i32, i32
  }
  func.func @transform_2(%arg0: i32) -> (i32, i32) {
    %c0_i32 = arith.constant 0 : i32
    %c0_i32_0 = arith.constant 0 : i32
    %c0_i32_1 = arith.constant 0 : i32
    return %c0_i32, %c0_i32_0 : i32, i32
  }
  func.func @transform_3(%arg0: i32) -> (i32, i32) {
    %c0_i32 = arith.constant 0 : i32
    %c0_i32_0 = arith.constant 0 : i32
    return %arg0, %c0_i32 : i32, i32
  }
}

module attributes {stable_mosaic.version = 11 : i64} {
  func.func @_linear_kernel(%arg0: i32, %arg1: memref<256x8xf32, #tpu.memory_space<vmem>>, %arg2: memref<8x128xf32, #tpu.memory_space<vmem>>, %arg3: memref<1x128xf32, #tpu.memory_space<vmem>>, %arg4: memref<256x128xf32, #tpu.memory_space<vmem>>) attributes {dimension_semantics = [#tpu.dimension_semantics<parallel>], iteration_bounds = array<i64: 7>, scalar_prefetch = 0 : i64, scratch_operands = 0 : i64, tpu.core_type = #tpu.core_type<tc>, window_params = [{transform_indices = @transform_0, window_bounds = array<i64: 256, 8>}, {pipeline_mode = #tpu.pipeline_mode<synchronous>, transform_indices = @transform_1, window_bounds = array<i64: 8, 128>}, {pipeline_mode = #tpu.pipeline_mode<synchronous>, transform_indices = @transform_2, window_bounds = array<i64: 1, 128>}, {transform_indices = @transform_3, window_bounds = array<i64: 256, 128>}]} {
    %c0 = arith.constant 0 : index
    %c0_0 = arith.constant 0 : index
    %0 = vector.load %arg1[%c0, %c0_0] : memref<256x8xf32, #tpu.memory_space<vmem>>, vector<256x8xf32>
    %c0_1 = arith.constant 0 : index
    %c0_2 = arith.constant 0 : index
    %1 = vector.load %arg2[%c0_1, %c0_2] : memref<8x128xf32, #tpu.memory_space<vmem>>, vector<8x128xf32>
    %cst = arith.constant dense<0.000000e+00> : vector<256x128xf32>
    %2 = tpu.matmul %0, %1, %cst {dimension_numbers = #tpu.dot_dimension_numbers<[1], [0], [0], [1], [0, 0, 1, 1], [], []>} : vector<256x8xf32>, vector<8x128xf32>, vector<256x128xf32> -> vector<256x128xf32>
    %c0_3 = arith.constant 0 : index
    %c0_4 = arith.constant 0 : index
    %3 = vector.load %arg3[%c0_3, %c0_4] : memref<1x128xf32, #tpu.memory_space<vmem>>, vector<1x128xf32>
    %4 = vector.broadcast %3 : vector<1x128xf32> to vector<256x128xf32>
    %5 = arith.addf %2, %4 : vector<256x128xf32>
    %c0_5 = arith.constant 0 : index
    %c0_6 = arith.constant 0 : index
    %6 = vector.load %arg4[%c0_5, %c0_6] : memref<256x128xf32, #tpu.memory_space<vmem>>, vector<256x128xf32>
    tpu.vector_store %arg4[%c0_5, %c0_6], %5 {strides = array<i32>} : memref<256x128xf32, #tpu.memory_space<vmem>>, vector<256x128xf32>,
    return
  }
  func.func @transform_0(%arg0: i32) -> (i32, i32) {
    %c0_i32 = arith.constant 0 : i32
    %c0_i32_0 = arith.constant 0 : i32
    return %arg0, %c0_i32 : i32, i32
  }
  func.func @transform_1(%arg0: i32) -> (i32, i32) {
    %c0_i32 = arith.constant 0 : i32
    %c0_i32_0 = arith.constant 0 : i32
    %c0_i32_1 = arith.constant 0 : i32
    return %c0_i32, %c0_i32_0 : i32, i32
  }
  func.func @transform_2(%arg0: i32) -> (i32, i32) {
    %c0_i32 = arith.constant 0 : i32
    %c0_i32_0 = arith.constant 0 : i32
    %c0_i32_1 = arith.constant 0 : i32
    return %c0_i32, %c0_i32_0 : i32, i32
  }
  func.func @transform_3(%arg0: i32) -> (i32, i32) {
    %c0_i32 = arith.constant 0 : i32
    %c0_i32_0 = arith.constant 0 : i32
    return %arg0, %c0_i32 : i32, i32
  }
}

</mosaic_0001>

<llo_original>
// kernel: forward.5
$region0: #{forward.5}
  #allocation0 [shape = 'u32[]', space=smem, size = 0x4, offset = 0x4, fixed_abs, tag = 'smem constant byte address 0x4 - core index']
  #allocation1 [shape = 'u32[144,128]{1,0:T(1,128)}', space=vmem, size = 0x12000, scoped, tag = 'internal scratch']
  %s0 = inlined_call_operand.vmem [shape: f32[128,768], index: 0, kind: input, shape index: {}]
  %s1 = inlined_call_operand.vmem [shape: f32[768,64], index: 1, kind: input, shape index: {}]
  %s2 = inlined_call_operand.vmem [shape: f32[1,64], index: 2, kind: input, shape index: {}]
  %s3 = inlined_call_operand.vmem [shape: f32[128,64], index: 3, kind: output, shape index: {}]
  %s4 = sld [smem:[#allocation0]]
  $region22: #{forward.5} parent=0
    _
  %s6 = ssub.s32 1, %s4
  %s7 = scalar_select 0, %s6, %s4
  // Predicated region
  $region2: #{forward.5} parent=0 // pred_check
    _
  $region3: #{forward.5} parent=0 // pred_check_branch
    %9 = sbr.rel (0) target = $region5
  $region4: #{forward.5} parent=0 // pred_region
    _
  $region5: #{forward.5} parent=0 // pred_fallthru
    _
  // Predicated region
  $region6: #{forward.5} parent=0 // pred_check
    _
  $region7: #{forward.5} parent=0 // pred_check_branch
    %11 = sbr.rel (0) target = $region9
  $region8: #{forward.5} parent=0 // pred_region
    _
  $region9: #{forward.5} parent=0 // pred_fallthru
    _
  // Predicated region
  $region10: #{forward.5} parent=0 // pred_check
    _
  $region11: #{forward.5} parent=0 // pred_check_branch
    %13 = sbr.rel (0) target = $region13
  $region12: #{forward.5} parent=0 // pred_region
    _
  $region13: #{forward.5} parent=0 // pred_fallthru
    _
  %v15 = vld [vmem:[%s0] sm:$0xff]
  %v16 = vld [vmem:[%s0 + $0x8] sm:$0xff]
  %v17 = vld [vmem:[%s0 + $0x10] sm:$0xff]
  %v18 = vld [vmem:[%s0 + $0x18] sm:$0xff]
  %v19 = vld [vmem:[%s0 + $0x20] sm:$0xff]
  %v20 = vld [vmem:[%s0 + $0x28] sm:$0xff]
  %v21 = vld [vmem:[%s0 + $0x30] sm:$0xff]
  %v22 = vld [vmem:[%s0 + $0x38] sm:$0xff]
  %v23 = vld [vmem:[%s0 + $0x40] sm:$0xff]
  %v24 = vld [vmem:[%s0 + $0x48] sm:$0xff]
  %v25 = vld [vmem:[%s0 + $0x50] sm:$0xff]
  %v26 = vld [vmem:[%s0 + $0x58] sm:$0xff]
  %v27 = vld [vmem:[%s0 + $0x60] sm:$0xff]
  %v28 = vld [vmem:[%s0 + $0x68] sm:$0xff]
  %v29 = vld [vmem:[%s0 + $0x70] sm:$0xff]
  %v30 = vld [vmem:[%s0 + $0x78] sm:$0xff]
  %v31 = vld [vmem:[%s0 + $0x80] sm:$0xff]
  %v32 = vld [vmem:[%s0 + $0x88] sm:$0xff]
  %v33 = vld [vmem:[%s0 + $0x90] sm:$0xff]
  %v34 = vld [vmem:[%s0 + $0x98] sm:$0xff]
  %v35 = vld [vmem:[%s0 + $0xa0] sm:$0xff]
  %v36 = vld [vmem:[%s0 + $0xa8] sm:$0xff]
  %v37 = vld [vmem:[%s0 + $0xb0] sm:$0xff]
  %v38 = vld [vmem:[%s0 + $0xb8] sm:$0xff]
  %v39 = vld [vmem:[%s0 + $0xc0] sm:$0xff]
  %v40 = vld [vmem:[%s0 + $0xc8] sm:$0xff]
  %v41 = vld [vmem:[%s0 + $0xd0] sm:$0xff]
  %v42 = vld [vmem:[%s0 + $0xd8] sm:$0xff]
  %v43 = vld [vmem:[%s0 + $0xe0] sm:$0xff]
  %v44 = vld [vmem:[%s0 + $0xe8] sm:$0xff]
  %v45 = vld [vmem:[%s0 + $0xf0] sm:$0xff]
  %v46 = vld [vmem:[%s0 + $0xf8] sm:$0xff]
  %v47 = vld [vmem:[%s0 + $0x100] sm:$0xff]
  %v48 = vld [vmem:[%s0 + $0x108] sm:$0xff]
  %v49 = vld [vmem:[%s0 + $0x110] sm:$0xff]
  %v50 = vld [vmem:[%s0 + $0x118] sm:$0xff]
  %v51 = vld [vmem:[%s0 + $0x120] sm:$0xff]
  %v52 = vld [vmem:[%s0 + $0x128] sm:$0xff]
  %v53 = vld [vmem:[%s0 + $0x130] sm:$0xff]
  %v54 = vld [vmem:[%s0 + $0x138] sm:$0xff]
  %v55 = vld [vmem:[%s0 + $0x140] sm:$0xff]
  %v56 = vld [vmem:[%s0 + $0x148] sm:$0xff]
  %v57 = vld [vmem:[%s0 + $0x150] sm:$0xff]
  %v58 = vld [vmem:[%s0 + $0x158] sm:$0xff]
  %v59 = vld [vmem:[%s0 + $0x160] sm:$0xff]
  %v60 = vld [vmem:[%s0 + $0x168] sm:$0xff]
  %v61 = vld [vmem:[%s0 + $0x170] sm:$0xff]
  %v62 = vld [vmem:[%s0 + $0x178] sm:$0xff]
  %v63 = vld [vmem:[%s0 + $0x180] sm:$0xff]
  %v64 = vld [vmem:[%s0 + $0x188] sm:$0xff]
  %v65 = vld [vmem:[%s0 + $0x190] sm:$0xff]
  %v66 = vld [vmem:[%s0 + $0x198] sm:$0xff]
  %v67 = vld [vmem:[%s0 + $0x1a0] sm:$0xff]
  %v68 = vld [vmem:[%s0 + $0x1a8] sm:$0xff]
  %v69 = vld [vmem:[%s0 + $0x1b0] sm:$0xff]
  %v70 = vld [vmem:[%s0 + $0x1b8] sm:$0xff]
  %v71 = vld [vmem:[%s0 + $0x1c0] sm:$0xff]
  %v72 = vld [vmem:[%s0 + $0x1c8] sm:$0xff]
  %v73 = vld [vmem:[%s0 + $0x1d0] sm:$0xff]
  %v74 = vld [vmem:[%s0 + $0x1d8] sm:$0xff]
  %v75 = vld [vmem:[%s0 + $0x1e0] sm:$0xff]
  %v76 = vld [vmem:[%s0 + $0x1e8] sm:$0xff]
  %v77 = vld [vmem:[%s0 + $0x1f0] sm:$0xff]
  %v78 = vld [vmem:[%s0 + $0x1f8] sm:$0xff]
  %v79 = vld [vmem:[%s0 + $0x200] sm:$0xff]
  %v80 = vld [vmem:[%s0 + $0x208] sm:$0xff]
  %v81 = vld [vmem:[%s0 + $0x210] sm:$0xff]
  %v82 = vld [vmem:[%s0 + $0x218] sm:$0xff]
  %v83 = vld [vmem:[%s0 + $0x220] sm:$0xff]
  %v84 = vld [vmem:[%s0 + $0x228] sm:$0xff]
  %v85 = vld [vmem:[%s0 + $0x230] sm:$0xff]
  %v86 = vld [vmem:[%s0 + $0x238] sm:$0xff]
  %v87 = vld [vmem:[%s0 + $0x240] sm:$0xff]
  %v88 = vld [vmem:[%s0 + $0x248] sm:$0xff]
  %v89 = vld [vmem:[%s0 + $0x250] sm:$0xff]
  %v90 = vld [vmem:[%s0 + $0x258] sm:$0xff]
  %v91 = vld [vmem:[%s0 + $0x260] sm:$0xff]
  %v92 = vld [vmem:[%s0 + $0x268] sm:$0xff]
  %v93 = vld [vmem:[%s0 + $0x270] sm:$0xff]
  %v94 = vld [vmem:[%s0 + $0x278] sm:$0xff]
  %v95 = vld [vmem:[%s0 + $0x280] sm:$0xff]
  %v96 = vld [vmem:[%s0 + $0x288] sm:$0xff]
  %v97 = vld [vmem:[%s0 + $0x290] sm:$0xff]
  %v98 = vld [vmem:[%s0 + $0x298] sm:$0xff]
  %v99 = vld [vmem:[%s0 + $0x2a0] sm:$0xff]
  %v100 = vld [vmem:[%s0 + $0x2a8] sm:$0xff]
  %v101 = vld [vmem:[%s0 + $0x2b0] sm:$0xff]
  %v102 = vld [vmem:[%s0 + $0x2b8] sm:$0xff]
  %v103 = vld [vmem:[%s0 + $0x2c0] sm:$0xff]
  %v104 = vld [vmem:[%s0 + $0x2c8] sm:$0xff]
  %v105 = vld [vmem:[%s0 + $0x2d0] sm:$0xff]
  %v106 = vld [vmem:[%s0 + $0x2d8] sm:$0xff]
  %v107 = vld [vmem:[%s0 + $0x2e0] sm:$0xff]
  %v108 = vld [vmem:[%s0 + $0x2e8] sm:$0xff]
  %v109 = vld [vmem:[%s0 + $0x2f0] sm:$0xff]
  %v110 = vld [vmem:[%s0 + $0x2f8] sm:$0xff]
  %v111 = vld [vmem:[%s1] sm:$0xff]
  %v112 = vld [vmem:[%s1 + $0x8] sm:$0xff]
  %v113 = vld [vmem:[%s1 + $0x10] sm:$0xff]
  %v114 = vld [vmem:[%s1 + $0x18] sm:$0xff]
  %v115 = vld [vmem:[%s1 + $0x20] sm:$0xff]
  %v116 = vld [vmem:[%s1 + $0x28] sm:$0xff]
  %v117 = vld [vmem:[%s1 + $0x30] sm:$0xff]
  %v118 = vld [vmem:[%s1 + $0x38] sm:$0xff]
  %v119 = vld [vmem:[%s1 + $0x40] sm:$0xff]
  %v120 = vld [vmem:[%s1 + $0x48] sm:$0xff]
  %v121 = vld [vmem:[%s1 + $0x50] sm:$0xff]
  %v122 = vld [vmem:[%s1 + $0x58] sm:$0xff]
  %v123 = vld [vmem:[%s1 + $0x60] sm:$0xff]
  %v124 = vld [vmem:[%s1 + $0x68] sm:$0xff]
  %v125 = vld [vmem:[%s1 + $0x70] sm:$0xff]
  %v126 = vld [vmem:[%s1 + $0x78] sm:$0xff]
  %v127 = vld [vmem:[%s1 + $0x80] sm:$0xff]
  %v128 = vld [vmem:[%s1 + $0x88] sm:$0xff]
  %v129 = vld [vmem:[%s1 + $0x90] sm:$0xff]
  %v130 = vld [vmem:[%s1 + $0x98] sm:$0xff]
  %v131 = vld [vmem:[%s1 + $0xa0] sm:$0xff]
  %v132 = vld [vmem:[%s1 + $0xa8] sm:$0xff]
  %v133 = vld [vmem:[%s1 + $0xb0] sm:$0xff]
  %v134 = vld [vmem:[%s1 + $0xb8] sm:$0xff]
  %v135 = vld [vmem:[%s1 + $0xc0] sm:$0xff]
  %v136 = vld [vmem:[%s1 + $0xc8] sm:$0xff]
  %v137 = vld [vmem:[%s1 + $0xd0] sm:$0xff]
  %v138 = vld [vmem:[%s1 + $0xd8] sm:$0xff]
  %v139 = vld [vmem:[%s1 + $0xe0] sm:$0xff]
  %v140 = vld [vmem:[%s1 + $0xe8] sm:$0xff]
  %v141 = vld [vmem:[%s1 + $0xf0] sm:$0xff]
  %v142 = vld [vmem:[%s1 + $0xf8] sm:$0xff]
  %v143 = vld [vmem:[%s1 + $0x100] sm:$0xff]
  %v144 = vld [vmem:[%s1 + $0x108] sm:$0xff]
  %v145 = vld [vmem:[%s1 + $0x110] sm:$0xff]
  %v146 = vld [vmem:[%s1 + $0x118] sm:$0xff]
  %v147 = vld [vmem:[%s1 + $0x120] sm:$0xff]
  %v148 = vld [vmem:[%s1 + $0x128] sm:$0xff]
  %v149 = vld [vmem:[%s1 + $0x130] sm:$0xff]
  %v150 = vld [vmem:[%s1 + $0x138] sm:$0xff]
  %v151 = vld [vmem:[%s1 + $0x140] sm:$0xff]
  %v152 = vld [vmem:[%s1 + $0x148] sm:$0xff]
  %v153 = vld [vmem:[%s1 + $0x150] sm:$0xff]
  %v154 = vld [vmem:[%s1 + $0x158] sm:$0xff]
  %v155 = vld [vmem:[%s1 + $0x160] sm:$0xff]
  %v156 = vld [vmem:[%s1 + $0x168] sm:$0xff]
  %v157 = vld [vmem:[%s1 + $0x170] sm:$0xff]
  %v158 = vld [vmem:[%s1 + $0x178] sm:$0xff]
  %v159 = vld [vmem:[%s1 + $0x180] sm:$0xff]
  %v160 = vld [vmem:[%s1 + $0x188] sm:$0xff]
  %v161 = vld [vmem:[%s1 + $0x190] sm:$0xff]
  %v162 = vld [vmem:[%s1 + $0x198] sm:$0xff]
  %v163 = vld [vmem:[%s1 + $0x1a0] sm:$0xff]
  %v164 = vld [vmem:[%s1 + $0x1a8] sm:$0xff]
  %v165 = vld [vmem:[%s1 + $0x1b0] sm:$0xff]
  %v166 = vld [vmem:[%s1 + $0x1b8] sm:$0xff]
  %v167 = vld [vmem:[%s1 + $0x1c0] sm:$0xff]
  %v168 = vld [vmem:[%s1 + $0x1c8] sm:$0xff]
  %v169 = vld [vmem:[%s1 + $0x1d0] sm:$0xff]
  %v170 = vld [vmem:[%s1 + $0x1d8] sm:$0xff]
  %v171 = vld [vmem:[%s1 + $0x1e0] sm:$0xff]
  %v172 = vld [vmem:[%s1 + $0x1e8] sm:$0xff]
  %v173 = vld [vmem:[%s1 + $0x1f0] sm:$0xff]
  %v174 = vld [vmem:[%s1 + $0x1f8] sm:$0xff]
  %v175 = vld [vmem:[%s1 + $0x200] sm:$0xff]
  %v176 = vld [vmem:[%s1 + $0x208] sm:$0xff]
  %v177 = vld [vmem:[%s1 + $0x210] sm:$0xff]
  %v178 = vld [vmem:[%s1 + $0x218] sm:$0xff]
  %v179 = vld [vmem:[%s1 + $0x220] sm:$0xff]
  %v180 = vld [vmem:[%s1 + $0x228] sm:$0xff]
  %v181 = vld [vmem:[%s1 + $0x230] sm:$0xff]
  %v182 = vld [vmem:[%s1 + $0x238] sm:$0xff]
  %v183 = vld [vmem:[%s1 + $0x240] sm:$0xff]
  %v184 = vld [vmem:[%s1 + $0x248] sm:$0xff]
  %v185 = vld [vmem:[%s1 + $0x250] sm:$0xff]
  %v186 = vld [vmem:[%s1 + $0x258] sm:$0xff]
  %v187 = vld [vmem:[%s1 + $0x260] sm:$0xff]
  %v188 = vld [vmem:[%s1 + $0x268] sm:$0xff]
  %v189 = vld [vmem:[%s1 + $0x270] sm:$0xff]
  %v190 = vld [vmem:[%s1 + $0x278] sm:$0xff]
  %v191 = vld [vmem:[%s1 + $0x280] sm:$0xff]
  %v192 = vld [vmem:[%s1 + $0x288] sm:$0xff]
  %v193 = vld [vmem:[%s1 + $0x290] sm:$0xff]
  %v194 = vld [vmem:[%s1 + $0x298] sm:$0xff]
  %v195 = vld [vmem:[%s1 + $0x2a0] sm:$0xff]
  %v196 = vld [vmem:[%s1 + $0x2a8] sm:$0xff]
  %v197 = vld [vmem:[%s1 + $0x2b0] sm:$0xff]
  %v198 = vld [vmem:[%s1 + $0x2b8] sm:$0xff]
  %v199 = vld [vmem:[%s1 + $0x2c0] sm:$0xff]
  %v200 = vld [vmem:[%s1 + $0x2c8] sm:$0xff]
  %v201 = vld [vmem:[%s1 + $0x2d0] sm:$0xff]
  %v202 = vld [vmem:[%s1 + $0x2d8] sm:$0xff]
  %v203 = vld [vmem:[%s1 + $0x2e0] sm:$0xff]
  %v204 = vld [vmem:[%s1 + $0x2e8] sm:$0xff]
  %v205 = vld [vmem:[%s1 + $0x2f0] sm:$0xff]
  %v206 = vld [vmem:[%s1 + $0x2f8] sm:$0xff]
  %v207 = vpack.c.bf16 %v21, %v15
  %v208 = vpack.c.bf16 %v22, %v16
  %v209 = vpack.c.bf16 %v23, %v17
  %v210 = vpack.c.bf16 %v24, %v18
  %v211 = vpack.c.bf16 %v25, %v19
  %v212 = vpack.c.bf16 %v26, %v20
  %v213 = vpack.c.bf16 %v33, %v27
  %v214 = vpack.c.bf16 %v34, %v28
  %v215 = vpack.c.bf16 %v35, %v29
  %v216 = vpack.c.bf16 %v36, %v30
  %v217 = vpack.c.bf16 %v37, %v31
  %v218 = vpack.c.bf16 %v38, %v32
  %v219 = vpack.c.bf16 %v45, %v39
  %v220 = vpack.c.bf16 %v46, %v40
  %v221 = vpack.c.bf16 %v47, %v41
  %v222 = vpack.c.bf16 %v48, %v42
  %v223 = vpack.c.bf16 %v49, %v43
  %v224 = vpack.c.bf16 %v50, %v44
  %v225 = vpack.c.bf16 %v57, %v51
  %v226 = vpack.c.bf16 %v58, %v52
  %v227 = vpack.c.bf16 %v59, %v53
  %v228 = vpack.c.bf16 %v60, %v54
  %v229 = vpack.c.bf16 %v61, %v55
  %v230 = vpack.c.bf16 %v62, %v56
  %v231 = vpack.c.bf16 %v69, %v63
  %v232 = vpack.c.bf16 %v70, %v64
  %v233 = vpack.c.bf16 %v71, %v65
  %v234 = vpack.c.bf16 %v72, %v66
  %v235 = vpack.c.bf16 %v73, %v67
  %v236 = vpack.c.bf16 %v74, %v68
  %v237 = vpack.c.bf16 %v81, %v75
  %v238 = vpack.c.bf16 %v82, %v76
  %v239 = vpack.c.bf16 %v83, %v77
  %v240 = vpack.c.bf16 %v84, %v78
  %v241 = vpack.c.bf16 %v85, %v79
  %v242 = vpack.c.bf16 %v86, %v80
  %v243 = vpack.c.bf16 %v93, %v87
  %v244 = vpack.c.bf16 %v94, %v88
  %v245 = vpack.c.bf16 %v95, %v89
  %v246 = vpack.c.bf16 %v96, %v90
  %v247 = vpack.c.bf16 %v97, %v91
  %v248 = vpack.c.bf16 %v98, %v92
  %v249 = vpack.c.bf16 %v105, %v99
  %v250 = vpack.c.bf16 %v106, %v100
  %v251 = vpack.c.bf16 %v107, %v101
  %v252 = vpack.c.bf16 %v108, %v102
  %v253 = vpack.c.bf16 %v109, %v103
  %v254 = vpack.c.bf16 %v110, %v104
  %v255 = vpack.c.bf16 %v112, %v111
  %v256 = vpack.c.bf16 %v114, %v113
  %v257 = vpack.c.bf16 %v116, %v115
  %v258 = vpack.c.bf16 %v118, %v117
  %v259 = vpack.c.bf16 %v120, %v119
  %v260 = vpack.c.bf16 %v122, %v121
  %v261 = vpack.c.bf16 %v124, %v123
  %v262 = vpack.c.bf16 %v126, %v125
  %v263 = vpack.c.bf16 %v128, %v127
  %v264 = vpack.c.bf16 %v130, %v129
  %v265 = vpack.c.bf16 %v132, %v131
  %v266 = vpack.c.bf16 %v134, %v133
  %v267 = vpack.c.bf16 %v136, %v135
  %v268 = vpack.c.bf16 %v138, %v137
  %v269 = vpack.c.bf16 %v140, %v139
  %v270 = vpack.c.bf16 %v142, %v141
  %v271 = vpack.c.bf16 %v144, %v143
  %v272 = vpack.c.bf16 %v146, %v145
  %v273 = vpack.c.bf16 %v148, %v147
  %v274 = vpack.c.bf16 %v150, %v149
  %v275 = vpack.c.bf16 %v152, %v151
  %v276 = vpack.c.bf16 %v154, %v153
  %v277 = vpack.c.bf16 %v156, %v155
  %v278 = vpack.c.bf16 %v158, %v157
  %v279 = vpack.c.bf16 %v160, %v159
  %v280 = vpack.c.bf16 %v162, %v161
  %v281 = vpack.c.bf16 %v164, %v163
  %v282 = vpack.c.bf16 %v166, %v165
  %v283 = vpack.c.bf16 %v168, %v167
  %v284 = vpack.c.bf16 %v170, %v169
  %v285 = vpack.c.bf16 %v172, %v171
  %v286 = vpack.c.bf16 %v174, %v173
  %v287 = vpack.c.bf16 %v176, %v175
  %v288 = vpack.c.bf16 %v178, %v177
  %v289 = vpack.c.bf16 %v180, %v179
  %v290 = vpack.c.bf16 %v182, %v181
  %v291 = vpack.c.bf16 %v184, %v183
  %v292 = vpack.c.bf16 %v186, %v185
  %v293 = vpack.c.bf16 %v188, %v187
  %v294 = vpack.c.bf16 %v190, %v189
  %v295 = vpack.c.bf16 %v192, %v191
  %v296 = vpack.c.bf16 %v194, %v193
  %v297 = vpack.c.bf16 %v196, %v195
  %v298 = vpack.c.bf16 %v198, %v197
  %v299 = vpack.c.bf16 %v200, %v199
  %v300 = vpack.c.bf16 %v202, %v201
  %v301 = vpack.c.bf16 %v204, %v203
  %v302 = vpack.c.bf16 %v206, %v205
  %v303 = vld [vmem:[%s2] sm:$0x1]
  %v305 = vlaneseq
  %v306 = vshrl.u32 %v305, 7
  %v307 = vsub.s32 0, %v306
  %v308 = vrot.slane %v303, %v307
  %310 = vmatprep.subr.bf16.mxu0 0
  %311 = vmatpush1.bf16.msra.mxu0 %v255
  %312 = vmatprep.subr.bf16.mxu0 0
  %313 = vmatpush1.bf16.msra.mxu0 %v256
  %314 = vmatprep.subr.bf16.mxu0 0
  %315 = vmatpush1.bf16.msra.mxu0 %v257
  %316 = vmatprep.subr.bf16.mxu0 0
  %317 = vmatpush1.bf16.msra.mxu0 %v258
  %318 = vmatprep.subr.bf16.mxu0 0
  %319 = vmatpush1.bf16.msra.mxu0 %v259
  %320 = vmatprep.subr.bf16.mxu0 0
  %321 = vmatpush1.bf16.msra.mxu0 %v260
  %322 = vmatprep.subr.bf16.mxu0 0
  %323 = vmatpush1.bf16.msra.mxu0 %v261
  %324 = vmatprep.subr.bf16.mxu0 0
  %325 = vmatpush1.bf16.msra.mxu0 %v262
  %326 = vmatprep.subr.bf16.mxu0 0
  %327 = vmatpush1.bf16.msra.mxu0 %v263
  %328 = vmatprep.subr.bf16.mxu0 0
  %329 = vmatpush1.bf16.msra.mxu0 %v264
  %330 = vmatprep.subr.bf16.mxu0 0
  %331 = vmatpush1.bf16.msra.mxu0 %v265
  %332 = vmatprep.subr.bf16.mxu0 0
  %333 = vmatpush1.bf16.msra.mxu0 %v266
  %334 = vmatprep.subr.bf16.mxu0 0
  %335 = vmatpush1.bf16.msra.mxu0 %v267
  %336 = vmatprep.subr.bf16.mxu0 0
  %337 = vmatpush1.bf16.msra.mxu0 %v268
  %338 = vmatprep.subr.bf16.mxu0 0
  %339 = vmatpush1.bf16.msra.mxu0 %v269
  %340 = vmatprep.subr.bf16.mxu0 0
  %341 = vmatpush1.bf16.msra.mxu0 %v270
  %342 = vmatprep.mubr.bf16.mxu0 %v208
  %343 = vmatmul.mubr.bf16.gmra.mrb[0].mxu0 %v207
  %v344 = vpop.f32.mrb[0].mxu0
  %v345 = vadd.f32 %v308, %v344
  %v346 = vpop.f32.mrb[0].mxu0
  %v347 = vpop.f32.mrb[0].mxu0
  %v348 = vadd.f32 %v308, %v347
  %v349 = vpop.f32.mrb[0].mxu0
  %350 = vmatprep.mubr.bf16.mxu0 %v214
  %351 = vmatmul.mubr.bf16.gmra.mrb[0].mxu0 %v213
  %v352 = vpop.f32.mrb[0].mxu0
  %v353 = vadd.f32 %v308, %v352
  %v354 = vpop.f32.mrb[0].mxu0
  %v355 = vpop.f32.mrb[0].mxu0
  %v356 = vadd.f32 %v308, %v355
  %v357 = vpop.f32.mrb[0].mxu0
  %358 = vmatprep.mubr.bf16.mxu0 %v220
  %359 = vmatmul.mubr.bf16.gmra.mrb[0].mxu0 %v219
  %v360 = vpop.f32.mrb[0].mxu0
  %v361 = vadd.f32 %v308, %v360
  %v362 = vpop.f32.mrb[0].mxu0
  %v363 = vpop.f32.mrb[0].mxu0
  %v364 = vadd.f32 %v308, %v363
  %v365 = vpop.f32.mrb[0].mxu0
  %366 = vmatprep.mubr.bf16.mxu0 %v226
  %367 = vmatmul.mubr.bf16.gmra.mrb[0].mxu0 %v225
  %v368 = vpop.f32.mrb[0].mxu0
  %v369 = vadd.f32 %v308, %v368
  %v370 = vpop.f32.mrb[0].mxu0
  %v371 = vpop.f32.mrb[0].mxu0
  %v372 = vadd.f32 %v308, %v371
  %v373 = vpop.f32.mrb[0].mxu0
  %374 = vmatprep.mubr.bf16.mxu0 %v232
  %375 = vmatmul.mubr.bf16.gmra.mrb[0].mxu0 %v231
  %v376 = vpop.f32.mrb[0].mxu0
  %v377 = vadd.f32 %v308, %v376
  %v378 = vpop.f32.mrb[0].mxu0
  %v379 = vpop.f32.mrb[0].mxu0
  %v380 = vadd.f32 %v308, %v379
  %v381 = vpop.f32.mrb[0].mxu0
  %382 = vmatprep.mubr.bf16.mxu0 %v238
  %383 = vmatmul.mubr.bf16.gmra.mrb[0].mxu0 %v237
  %v384 = vpop.f32.mrb[0].mxu0
  %v385 = vadd.f32 %v308, %v384
  %v386 = vpop.f32.mrb[0].mxu0
  %v387 = vpop.f32.mrb[0].mxu0
  %v388 = vadd.f32 %v308, %v387
  %v389 = vpop.f32.mrb[0].mxu0
  %390 = vmatprep.mubr.bf16.mxu0 %v244
  %391 = vmatmul.mubr.bf16.gmra.mrb[0].mxu0 %v243
  %v392 = vpop.f32.mrb[0].mxu0
  %v393 = vadd.f32 %v308, %v392
  %v394 = vpop.f32.mrb[0].mxu0
  %v395 = vpop.f32.mrb[0].mxu0
  %v396 = vadd.f32 %v308, %v395
  %v397 = vpop.f32.mrb[0].mxu0
  %398 = vmatprep.mubr.bf16.mxu0 %v250
  %399 = vmatmul.mubr.bf16.gmra.mrb[0].mxu0 %v249
  %v400 = vpop.f32.mrb[0].mxu0
  %v401 = vadd.f32 %v308, %v400
  %v402 = vpop.f32.mrb[0].mxu0
  %v403 = vpop.f32.mrb[0].mxu0
  %v404 = vadd.f32 %v308, %v403
  %v405 = vpop.f32.mrb[0].mxu0
  %406 = vdwg.mxu0
  %407 = vmatprep.subr.bf16.mxu0 0
  %408 = vmatpush1.bf16.msra.mxu0 %v271
  %409 = vmatprep.subr.bf16.mxu0 0
  %410 = vmatpush1.bf16.msra.mxu0 %v272
  %411 = vmatprep.subr.bf16.mxu0 0
  %412 = vmatpush1.bf16.msra.mxu0 %v273
  %413 = vmatprep.subr.bf16.mxu0 0
  %414 = vmatpush1.bf16.msra.mxu0 %v274
  %415 = vmatprep.subr.bf16.mxu0 0
  %416 = vmatpush1.bf16.msra.mxu0 %v275
  %417 = vmatprep.subr.bf16.mxu0 0
  %418 = vmatpush1.bf16.msra.mxu0 %v276
  %419 = vmatprep.subr.bf16.mxu0 0
  %420 = vmatpush1.bf16.msra.mxu0 %v277
  %421 = vmatprep.subr.bf16.mxu0 0
  %422 = vmatpush1.bf16.msra.mxu0 %v278
  %423 = vmatprep.subr.bf16.mxu0 0
  %424 = vmatpush1.bf16.msra.mxu0 %v279
  %425 = vmatprep.subr.bf16.mxu0 0
  %426 = vmatpush1.bf16.msra.mxu0 %v280
  %427 = vmatprep.subr.bf16.mxu0 0
  %428 = vmatpush1.bf16.msra.mxu0 %v281
  %429 = vmatprep.subr.bf16.mxu0 0
  %430 = vmatpush1.bf16.msra.mxu0 %v282
  %431 = vmatprep.subr.bf16.mxu0 0
  %432 = vmatpush1.bf16.msra.mxu0 %v283
  %433 = vmatprep.subr.bf16.mxu0 0
  %434 = vmatpush1.bf16.msra.mxu0 %v284
  %435 = vmatprep.subr.bf16.mxu0 0
  %436 = vmatpush1.bf16.msra.mxu0 %v285
  %437 = vmatprep.subr.bf16.mxu0 0
  %438 = vmatpush1.bf16.msra.mxu0 %v286
  %439 = vmatprep.mubr.bf16.mxu0 %v210
  %440 = vmatmul.mubr.bf16.gmra.mrb[0].mxu0 %v209
  %v441 = vpop.f32.mrb[0].mxu0
  %v442 = vadd.f32 %v345, %v441
  %v443 = vpop.f32.mrb[0].mxu0
  %v444 = vpop.f32.mrb[0].mxu0
  %v445 = vadd.f32 %v348, %v444
  %v446 = vpop.f32.mrb[0].mxu0
  %447 = vmatprep.mubr.bf16.mxu0 %v216
  %448 = vmatmul.mubr.bf16.gmra.mrb[0].mxu0 %v215
  %v449 = vpop.f32.mrb[0].mxu0
  %v450 = vadd.f32 %v353, %v449
  %v451 = vpop.f32.mrb[0].mxu0
  %v452 = vpop.f32.mrb[0].mxu0
  %v453 = vadd.f32 %v356, %v452
  %v454 = vpop.f32.mrb[0].mxu0
  %455 = vmatprep.mubr.bf16.mxu0 %v222
  %456 = vmatmul.mubr.bf16.gmra.mrb[0].mxu0 %v221
  %v457 = vpop.f32.mrb[0].mxu0
  %v458 = vadd.f32 %v361, %v457
  %v459 = vpop.f32.mrb[0].mxu0
  %v460 = vpop.f32.mrb[0].mxu0
  %v461 = vadd.f32 %v364, %v460
  %v462 = vpop.f32.mrb[0].mxu0
  %463 = vmatprep.mubr.bf16.mxu0 %v228
  %464 = vmatmul.mubr.bf16.gmra.mrb[0].mxu0 %v227
  %v465 = vpop.f32.mrb[0].mxu0
  %v466 = vadd.f32 %v369, %v465
  %v467 = vpop.f32.mrb[0].mxu0
  %v468 = vpop.f32.mrb[0].mxu0
  %v469 = vadd.f32 %v372, %v468
  %v470 = vpop.f32.mrb[0].mxu0
  %471 = vmatprep.mubr.bf16.mxu0 %v234
  %472 = vmatmul.mubr.bf16.gmra.mrb[0].mxu0 %v233
  %v473 = vpop.f32.mrb[0].mxu0
  %v474 = vadd.f32 %v377, %v473
  %v475 = vpop.f32.mrb[0].mxu0
  %v476 = vpop.f32.mrb[0].mxu0
  %v477 = vadd.f32 %v380, %v476
  %v478 = vpop.f32.mrb[0].mxu0
  %479 = vmatprep.mubr.bf16.mxu0 %v240
  %480 = vmatmul.mubr.bf16.gmra.mrb[0].mxu0 %v239
  %v481 = vpop.f32.mrb[0].mxu0
  %v482 = vadd.f32 %v385, %v481
  %v483 = vpop.f32.mrb[0].mxu0
  %v484 = vpop.f32.mrb[0].mxu0
  %v485 = vadd.f32 %v388, %v484
  %v486 = vpop.f32.mrb[0].mxu0
  %487 = vmatprep.mubr.bf16.mxu0 %v246
  %488 = vmatmul.mubr.bf16.gmra.mrb[0].mxu0 %v245
  %v489 = vpop.f32.mrb[0].mxu0
  %v490 = vadd.f32 %v393, %v489
  %v491 = vpop.f32.mrb[0].mxu0
  %v492 = vpop.f32.mrb[0].mxu0
  %v493 = vadd.f32 %v396, %v492
  %v494 = vpop.f32.mrb[0].mxu0
  %495 = vmatprep.mubr.bf16.mxu0 %v252
  %496 = vmatmul.mubr.bf16.gmra.mrb[0].mxu0 %v251
  %v497 = vpop.f32.mrb[0].mxu0
  %v498 = vadd.f32 %v401, %v497
  %v499 = vpop.f32.mrb[0].mxu0
  %v500 = vpop.f32.mrb[0].mxu0
  %v501 = vadd.f32 %v404, %v500
  %v502 = vpop.f32.mrb[0].mxu0
  %503 = vdwg.mxu0
  %504 = vmatprep.subr.bf16.mxu0 0
  %505 = vmatpush1.bf16.msra.mxu0 %v287
  %506 = vmatprep.subr.bf16.mxu0 0
  %507 = vmatpush1.bf16.msra.mxu0 %v288
  %508 = vmatprep.subr.bf16.mxu0 0
  %509 = vmatpush1.bf16.msra.mxu0 %v289
  %510 = vmatprep.subr.bf16.mxu0 0
  %511 = vmatpush1.bf16.msra.mxu0 %v290
  %512 = vmatprep.subr.bf16.mxu0 0
  %513 = vmatpush1.bf16.msra.mxu0 %v291
  %514 = vmatprep.subr.bf16.mxu0 0
  %515 = vmatpush1.bf16.msra.mxu0 %v292
  %516 = vmatprep.subr.bf16.mxu0 0
  %517 = vmatpush1.bf16.msra.mxu0 %v293
  %518 = vmatprep.subr.bf16.mxu0 0
  %519 = vmatpush1.bf16.msra.mxu0 %v294
  %520 = vmatprep.subr.bf16.mxu0 0
  %521 = vmatpush1.bf16.msra.mxu0 %v295
  %522 = vmatprep.subr.bf16.mxu0 0
  %523 = vmatpush1.bf16.msra.mxu0 %v296
  %524 = vmatprep.subr.bf16.mxu0 0
  %525 = vmatpush1.bf16.msra.mxu0 %v297
  %526 = vmatprep.subr.bf16.mxu0 0
  %527 = vmatpush1.bf16.msra.mxu0 %v298
  %528 = vmatprep.subr.bf16.mxu0 0
  %529 = vmatpush1.bf16.msra.mxu0 %v299
  %530 = vmatprep.subr.bf16.mxu0 0
  %531 = vmatpush1.bf16.msra.mxu0 %v300
  %532 = vmatprep.subr.bf16.mxu0 0
  %533 = vmatpush1.bf16.msra.mxu0 %v301
  %534 = vmatprep.subr.bf16.mxu0 0
  %535 = vmatpush1.bf16.msra.mxu0 %v302
  %536 = vmatprep.mubr.bf16.mxu0 %v212
  %537 = vmatmul.mubr.bf16.gmra.mrb[0].mxu0 %v211
  %v538 = vpop.f32.mrb[0].mxu0
  %v539 = vadd.f32 %v442, %v538
  %v540 = vpop.f32.mrb[0].mxu0
  %v541 = vpop.f32.mrb[0].mxu0
  %v542 = vadd.f32 %v445, %v541
  %v543 = vpop.f32.mrb[0].mxu0
  %544 = vmatprep.mubr.bf16.mxu0 %v218
  %545 = vmatmul.mubr.bf16.gmra.mrb[0].mxu0 %v217
  %v546 = vpop.f32.mrb[0].mxu0
  %v547 = vadd.f32 %v450, %v546
  %v548 = vpop.f32.mrb[0].mxu0
  %v549 = vpop.f32.mrb[0].mxu0
  %v550 = vadd.f32 %v453, %v549
  %v551 = vpop.f32.mrb[0].mxu0
  %552 = vmatprep.mubr.bf16.mxu0 %v224
  %553 = vmatmul.mubr.bf16.gmra.mrb[0].mxu0 %v223
  %v554 = vpop.f32.mrb[0].mxu0
  %v555 = vadd.f32 %v458, %v554
  %v556 = vpop.f32.mrb[0].mxu0
  %v557 = vpop.f32.mrb[0].mxu0
  %v558 = vadd.f32 %v461, %v557
  %v559 = vpop.f32.mrb[0].mxu0
  %560 = vmatprep.mubr.bf16.mxu0 %v230
  %561 = vmatmul.mubr.bf16.gmra.mrb[0].mxu0 %v229
  %v562 = vpop.f32.mrb[0].mxu0
  %v563 = vadd.f32 %v466, %v562
  %v564 = vpop.f32.mrb[0].mxu0
  %v565 = vpop.f32.mrb[0].mxu0
  %v566 = vadd.f32 %v469, %v565
  %v567 = vpop.f32.mrb[0].mxu0
  %568 = vmatprep.mubr.bf16.mxu0 %v236
  %569 = vmatmul.mubr.bf16.gmra.mrb[0].mxu0 %v235
  %v570 = vpop.f32.mrb[0].mxu0
  %v571 = vadd.f32 %v474, %v570
  %v572 = vpop.f32.mrb[0].mxu0
  %v573 = vpop.f32.mrb[0].mxu0
  %v574 = vadd.f32 %v477, %v573
  %v575 = vpop.f32.mrb[0].mxu0
  %576 = vmatprep.mubr.bf16.mxu0 %v242
  %577 = vmatmul.mubr.bf16.gmra.mrb[0].mxu0 %v241
  %v578 = vpop.f32.mrb[0].mxu0
  %v579 = vadd.f32 %v482, %v578
  %v580 = vpop.f32.mrb[0].mxu0
  %v581 = vpop.f32.mrb[0].mxu0
  %v582 = vadd.f32 %v485, %v581
  %v583 = vpop.f32.mrb[0].mxu0
  %584 = vmatprep.mubr.bf16.mxu0 %v248
  %585 = vmatmul.mubr.bf16.gmra.mrb[0].mxu0 %v247
  %v586 = vpop.f32.mrb[0].mxu0
  %v587 = vadd.f32 %v490, %v586
  %v588 = vpop.f32.mrb[0].mxu0
  %v589 = vpop.f32.mrb[0].mxu0
  %v590 = vadd.f32 %v493, %v589
  %v591 = vpop.f32.mrb[0].mxu0
  %592 = vmatprep.mubr.bf16.mxu0 %v254
  %593 = vmatmul.mubr.bf16.gmra.mrb[0].mxu0 %v253
  %v594 = vpop.f32.mrb[0].mxu0
  %v595 = vadd.f32 %v498, %v594
  %v596 = vpop.f32.mrb[0].mxu0
  %v597 = vpop.f32.mrb[0].mxu0
  %v598 = vadd.f32 %v501, %v597
  %v599 = vpop.f32.mrb[0].mxu0
  %600 = vdwg.mxu0
  %v601 = vmax.f32 %v539, 0.0
  %v602 = vmax.f32 %v542, 0.0
  %v603 = vmax.f32 %v547, 0.0
  %v604 = vmax.f32 %v550, 0.0
  %v605 = vmax.f32 %v555, 0.0
  %v606 = vmax.f32 %v558, 0.0
  %v607 = vmax.f32 %v563, 0.0
  %v608 = vmax.f32 %v566, 0.0
  %v609 = vmax.f32 %v571, 0.0
  %v610 = vmax.f32 %v574, 0.0
  %v611 = vmax.f32 %v579, 0.0
  %v612 = vmax.f32 %v582, 0.0
  %v613 = vmax.f32 %v587, 0.0
  %v614 = vmax.f32 %v590, 0.0
  %v615 = vmax.f32 %v595, 0.0
  %v616 = vmax.f32 %v598, 0.0
  %vm617 = vcmask 523264
  %618 = vst.msk [vmem:[%s3] sm:$0xff] %vm617, %v601
  %619 = vst.msk [vmem:[%s3 + $0x8] sm:$0xff] %vm617, %v602
  %620 = vst.msk [vmem:[%s3 + $0x10] sm:$0xff] %vm617, %v603
  %621 = vst.msk [vmem:[%s3 + $0x18] sm:$0xff] %vm617, %v604
  %622 = vst.msk [vmem:[%s3 + $0x20] sm:$0xff] %vm617, %v605
  %623 = vst.msk [vmem:[%s3 + $0x28] sm:$0xff] %vm617, %v606
  %624 = vst.msk [vmem:[%s3 + $0x30] sm:$0xff] %vm617, %v607
  %625 = vst.msk [vmem:[%s3 + $0x38] sm:$0xff] %vm617, %v608
  %626 = vst.msk [vmem:[%s3 + $0x40] sm:$0xff] %vm617, %v609
  %627 = vst.msk [vmem:[%s3 + $0x48] sm:$0xff] %vm617, %v610
  %628 = vst.msk [vmem:[%s3 + $0x50] sm:$0xff] %vm617, %v611
  %629 = vst.msk [vmem:[%s3 + $0x58] sm:$0xff] %vm617, %v612
  %630 = vst.msk [vmem:[%s3 + $0x60] sm:$0xff] %vm617, %v613
  %631 = vst.msk [vmem:[%s3 + $0x68] sm:$0xff] %vm617, %v614
  %632 = vst.msk [vmem:[%s3 + $0x70] sm:$0xff] %vm617, %v615
  %633 = vst.msk [vmem:[%s3 + $0x78] sm:$0xff] %vm617, %v616
  // Predicated region
  $region14: #{forward.5} parent=0 // pred_check
    _
  $region15: #{forward.5} parent=0 // pred_check_branch
    %635 = sbr.rel (0) target = $region17
  $region16: #{forward.5} parent=0 // pred_region
    _
  $region17: #{forward.5} parent=0 // pred_fallthru
    _
  // Predicated region
  $region18: #{forward.5} parent=0 // pred_check
    _
  $region19: #{forward.5} parent=0 // pred_check_branch
    %637 = sbr.rel (0) target = $region21
  $region20: #{forward.5} parent=0 // pred_region
    _
  $region21: #{forward.5} parent=0 // pred_fallthru
    _

// kernel: forward.6
$region0: #{forward.6}
  #allocation0 [shape = 'u32[]', space=smem, size = 0x4, offset = 0x4, fixed_abs, tag = 'smem constant byte address 0x4 - core index']
  #allocation1 [shape = 'u32[144,128]{1,0:T(1,128)}', space=vmem, size = 0x12000, scoped, tag = 'internal scratch']
  %s0 = inlined_call_operand.vmem [shape: f32[384,576], index: 0, kind: input, shape index: {}]
  %s1 = inlined_call_operand.vmem [shape: f32[576,128], index: 1, kind: input, shape index: {}]
  %s2 = inlined_call_operand.vmem [shape: f32[1,128], index: 2, kind: input, shape index: {}]
  %s3 = inlined_call_operand.vmem [shape: f32[384,128], index: 3, kind: output, shape index: {}]
  %s4 = sld [smem:[#allocation0]]
  $region45: #{forward.6} parent=0
    _
  %s6 = ssub.s32 1, %s4
  %s7 = scalar_select 0, %s6, %s4
  loop: start=0, step=1, limit=5
  $region2: #{forward.6} parent=0 // loop_pre_header
    _
  $region3: #{forward.6} parent=0 // loop_header
    %s9 = sphi 0, %s13
    %p10 = scmp.ge.s32.totalorder %s9, 5
    %s19 = sphi 0, %s21
    %s22 = sphi 0, %s19
    %s23 = sphi 0, %s22
    %s39 = sphi 0, %s23
    %s43 = sphi 0, %s43
    %s45 = sphi 0, %s43
    %s46 = sphi 0, %s45
    %s60 = sphi 0, %s46
    %s64 = sphi 0, %s64
    %s66 = sphi 0, %s64
    %s67 = sphi 0, %s66
    %s81 = sphi 0, %s67
    %s87 = sphi 0, %s89
    %s90 = sphi 0, %s87
    %s91 = sphi 0, %s90
    %s107 = sphi 0, %s91
  $region4: #{forward.6} parent=0 // loop_header_branch
    %12 = sbr.rel (%p10) target = $region8
  $region5: #{forward.6} parent=0 // loop_body
    %s14 = ssub.s32 %s9, 1
    %s15 = ssub.s32 %s9, 2
    %s16 = sadd.s32 %s9, 1
    %s17 = ssub.s32 %s9, %s16
    %p18 = scmp.eq.s32.totalorder %s17, 0
    %s20 = sadd.s32 %s19, 1
    %s21 = scalar_select %p18, %s19, %s20
    %p24 = pneg %p18
    %p25 = scmp.eq.s32.totalorder %s9, 2
    %p26 = por %p24, %p25
    %p27 = scmp.ne.s32.totalorder %s19, %s22
    %p28 = scmp.eq.s32.totalorder %s9, 0
    %p29 = por %p27, %p28
    %p30 = scmp.ne.s32.totalorder %s19, %s22
    %p31 = scmp.eq.s32.totalorder %s14, 2
    %p32 = por %p30, %p31
    %p33 = scmp.ne.s32.totalorder %s22, %s23
    %p34 = scmp.eq.s32.totalorder %s14, 0
    %p35 = por %p33, %p34
    %p36 = scmp.ne.s32.totalorder %s22, %s23
    %p37 = scmp.eq.s32.totalorder %s15, 2
    %p38 = por %p36, %p37
    %p40 = scmp.ne.s32.totalorder %s23, %s39
    %p41 = scmp.eq.s32.totalorder %s15, 0
    %p42 = por %p40, %p41
    %s44 = sadd.s32 %s43, 1
    %p47 = scmp.eq.s32.totalorder %s9, 2
    %p48 = scmp.ne.s32.totalorder %s43, %s45
    %p49 = scmp.eq.s32.totalorder %s9, 0
    %p50 = por %p48, %p49
    %p51 = scmp.ne.s32.totalorder %s43, %s45
    %p52 = scmp.eq.s32.totalorder %s14, 2
    %p53 = por %p51, %p52
    %p54 = scmp.ne.s32.totalorder %s45, %s46
    %p55 = scmp.eq.s32.totalorder %s14, 0
    %p56 = por %p54, %p55
    %p57 = scmp.ne.s32.totalorder %s45, %s46
    %p58 = scmp.eq.s32.totalorder %s15, 2
    %p59 = por %p57, %p58
    %p61 = scmp.ne.s32.totalorder %s46, %s60
    %p62 = scmp.eq.s32.totalorder %s15, 0
    %p63 = por %p61, %p62
    %s65 = sadd.s32 %s64, 1
    %p68 = scmp.eq.s32.totalorder %s9, 2
    %p69 = scmp.ne.s32.totalorder %s64, %s66
    %p70 = scmp.eq.s32.totalorder %s9, 0
    %p71 = por %p69, %p70
    %p72 = scmp.ne.s32.totalorder %s64, %s66
    %p73 = scmp.eq.s32.totalorder %s14, 2
    %p74 = por %p72, %p73
    %p75 = scmp.ne.s32.totalorder %s66, %s67
    %p76 = scmp.eq.s32.totalorder %s14, 0
    %p77 = por %p75, %p76
    %p78 = scmp.ne.s32.totalorder %s66, %s67
    %p79 = scmp.eq.s32.totalorder %s15, 2
    %p80 = por %p78, %p79
    %p82 = scmp.ne.s32.totalorder %s67, %s81
    %p83 = scmp.eq.s32.totalorder %s15, 0
    %p84 = por %p82, %p83
    %s85 = ssub.s32 %s9, %s16
    %p86 = scmp.eq.s32.totalorder %s85, 0
    %s88 = sadd.s32 %s87, 1
    %s89 = scalar_select %p86, %s87, %s88
    %p92 = pneg %p86
    %p93 = scmp.eq.s32.totalorder %s9, 2
    %p94 = por %p92, %p93
    %p95 = scmp.ne.s32.totalorder %s87, %s90
    %p96 = scmp.eq.s32.totalorder %s9, 0
    %p97 = por %p95, %p96
    %p98 = scmp.ne.s32.totalorder %s87, %s90
    %p99 = scmp.eq.s32.totalorder %s14, 2
    %p100 = por %p98, %p99
    %p101 = scmp.ne.s32.totalorder %s90, %s91
    %p102 = scmp.eq.s32.totalorder %s14, 0
    %p103 = por %p101, %p102
    %p104 = scmp.ne.s32.totalorder %s90, %s91
    %p105 = scmp.eq.s32.totalorder %s15, 2
    %p106 = por %p104, %p105
    %p108 = scmp.ne.s32.totalorder %s91, %s107
    %p109 = scmp.eq.s32.totalorder %s15, 0
    %p110 = por %p108, %p109
    %p111 = scmp.le.s32.totalorder 1, %s9
    %p112 = scmp.lt.s32.totalorder %s9, 4
    %p113 = pnand %p111, %p112
    %p114 = pneg %p113
    // Predicated region
    $region9: #{forward.6} parent=5 // pred_check
      _
    $region10: #{forward.6} parent=5 // pred_check_branch
      %116 = sbr.rel (%p113) target = $region12
    $region11: #{forward.6} parent=5 // pred_region
      %s117 = ssub.s32 %s9, 1
      // Predicated region
      $region13: #{forward.6} parent=11 // pred_check
        %p118 = pneg %p56
      $region14: #{forward.6} parent=11 // pred_check_branch
        %120 = sbr.rel (%p118) target = $region16
      $region15: #{forward.6} parent=11 // pred_region
        _
      $region16: #{forward.6} parent=11 // pred_fallthru
        _
      // Predicated region
      $region17: #{forward.6} parent=11 // pred_check
        %p121 = pneg %p77
      $region18: #{forward.6} parent=11 // pred_check_branch
        %123 = sbr.rel (%p121) target = $region20
      $region19: #{forward.6} parent=11 // pred_region
        _
      $region20: #{forward.6} parent=11 // pred_fallthru
        _
    $region12: #{forward.6} parent=5 // pred_fallthru
      _
    %p124 = scmp.lt.s32.totalorder %s9, 3
    // Predicated region
    $region21: #{forward.6} parent=5 // pred_check
      %p125 = pneg %p124
    $region22: #{forward.6} parent=5 // pred_check_branch
      %127 = sbr.rel (%p125) target = $region24
    $region23: #{forward.6} parent=5 // pred_region
      // Predicated region
      $region25: #{forward.6} parent=23 // pred_check
        %p128 = pneg %p29
      $region26: #{forward.6} parent=23 // pred_check_branch
        %130 = sbr.rel (%p128) target = $region28
      $region27: #{forward.6} parent=23 // pred_region
        %s131 = smul.u32 16, %s9
        %p132 = scmp.lt.s32.totalorder %s131, 47
        %s133 = scalar_select %p132, %s131, 47
        %s134 = smul.addr %s133, 5
        %s135 = smul.addr %s134, 8
        %s136 = scalar_lea.vmem %s0, %s135
        %s137 = smul.u32 16, %s9
      $region28: #{forward.6} parent=23 // pred_fallthru
        _
    $region24: #{forward.6} parent=5 // pred_fallthru
      _
    %p138 = scmp.le.s32.totalorder 1, %s9
    %p139 = scmp.lt.s32.totalorder %s9, 4
    %p140 = pnand %p138, %p139
    %p141 = pneg %p140
    // Predicated region
    $region29: #{forward.6} parent=5 // pred_check
      _
    $region30: #{forward.6} parent=5 // pred_check_branch
      %143 = sbr.rel (%p140) target = $region32
    $region31: #{forward.6} parent=5 // pred_region
      %s144 = ssub.s32 %s9, 1
      %s145 = smul.u32 16, %s14
      %p146 = scmp.lt.s32.totalorder %s145, 47
      %s147 = scalar_select %p146, %s145, 47
      %s148 = smul.addr %s147, 5
      %s149 = smul.addr %s148, 8
      %s150 = scalar_lea.vmem %s0, %s149
      %p151 = pneg %p35
      %p152 = pneg %p32
      %p153 = pneg %p56
      %p154 = pneg %p53
      %p155 = pneg %p77
      %p156 = pneg %p74
      %p157 = pneg %p103
      %p158 = pneg %p100
      %s159 = smul.u32 16, %s14
      %p160 = scmp.lt.s32.totalorder %s159, 47
      %s161 = scalar_select %p160, %s159, 47
      %s162 = smul.addr %s161, 8
      %s163 = scalar_lea.vmem %s3, %s162
      %s164 = smul.u32 16, %s14
      %p165 = scmp.lt.s32.totalorder %s164, 47
      %s166 = scalar_select %p165, %s164, 47
      %s167 = smul.addr %s166, 5
      %s168 = smul.addr %s167, 8
      %s169 = scalar_lea.vmem %s0, %s168
      %s170 = smul.u32 16, %s14
      %s171 = smul.u32 16, %s14
      %p172 = scmp.lt.s32.totalorder %s171, 47
      %s173 = scalar_select %p172, %s171, 47
      %s174 = smul.addr %s173, 8
      %s175 = scalar_lea.vmem %s3, %s174
      %s176 = smul.u32 16, %s14
      %v177 = vld [vmem:[%s169] sm:$0xff]
      %v178 = vld [vmem:[%s169 + $0x8] sm:$0xff]
      %v179 = vld [vmem:[%s169 + $0x10] sm:$0xff]
      %v180 = vld [vmem:[%s169 + $0x18] sm:$0xff]
      %v181 = vld [vmem:[%s169 + $0x20] sm:$0xff]
      %v182 = vld [vmem:[%s169 + $0x28] sm:$0xff]
      %v183 = vld [vmem:[%s169 + $0x30] sm:$0xff]
      %v184 = vld [vmem:[%s169 + $0x38] sm:$0xff]
      %v185 = vld [vmem:[%s169 + $0x40] sm:$0xff]
      %v186 = vld [vmem:[%s169 + $0x48] sm:$0xff]
      %v187 = vld [vmem:[%s169 + $0x50] sm:$0xff]
      %v188 = vld [vmem:[%s169 + $0x58] sm:$0xff]
      %v189 = vld [vmem:[%s169 + $0x60] sm:$0xff]
      %v190 = vld [vmem:[%s169 + $0x68] sm:$0xff]
      %v191 = vld [vmem:[%s169 + $0x70] sm:$0xff]
      %v192 = vld [vmem:[%s169 + $0x78] sm:$0xff]
      %v193 = vld [vmem:[%s169 + $0x80] sm:$0xff]
      %v194 = vld [vmem:[%s169 + $0x88] sm:$0xff]
      %v195 = vld [vmem:[%s169 + $0x90] sm:$0xff]
      %v196 = vld [vmem:[%s169 + $0x98] sm:$0xff]
      %v197 = vld [vmem:[%s169 + $0xa0] sm:$0xff]
      %v198 = vld [vmem:[%s169 + $0xa8] sm:$0xff]
      %v199 = vld [vmem:[%s169 + $0xb0] sm:$0xff]
      %v200 = vld [vmem:[%s169 + $0xb8] sm:$0xff]
      %v201 = vld [vmem:[%s169 + $0xc0] sm:$0xff]
      %v202 = vld [vmem:[%s169 + $0xc8] sm:$0xff]
      %v203 = vld [vmem:[%s169 + $0xd0] sm:$0xff]
      %v204 = vld [vmem:[%s169 + $0xd8] sm:$0xff]
      %v205 = vld [vmem:[%s169 + $0xe0] sm:$0xff]
      %v206 = vld [vmem:[%s169 + $0xe8] sm:$0xff]
      %v207 = vld [vmem:[%s169 + $0xf0] sm:$0xff]
      %v208 = vld [vmem:[%s169 + $0xf8] sm:$0xff]
      %v209 = vld [vmem:[%s169 + $0x100] sm:$0xff]
      %v210 = vld [vmem:[%s169 + $0x108] sm:$0xff]
      %v211 = vld [vmem:[%s169 + $0x110] sm:$0xff]
      %v212 = vld [vmem:[%s169 + $0x118] sm:$0xff]
      %v213 = vld [vmem:[%s169 + $0x120] sm:$0xff]
      %v214 = vld [vmem:[%s169 + $0x128] sm:$0xff]
      %v215 = vld [vmem:[%s169 + $0x130] sm:$0xff]
      %v216 = vld [vmem:[%s169 + $0x138] sm:$0xff]
      %v217 = vld [vmem:[%s169 + $0x140] sm:$0xff]
      %v218 = vld [vmem:[%s169 + $0x148] sm:$0xff]
      %v219 = vld [vmem:[%s169 + $0x150] sm:$0xff]
      %v220 = vld [vmem:[%s169 + $0x158] sm:$0xff]
      %v221 = vld [vmem:[%s169 + $0x160] sm:$0xff]
      %v222 = vld [vmem:[%s169 + $0x168] sm:$0xff]
      %v223 = vld [vmem:[%s169 + $0x170] sm:$0xff]
      %v224 = vld [vmem:[%s169 + $0x178] sm:$0xff]
      %v225 = vld [vmem:[%s169 + $0x180] sm:$0xff]
      %v226 = vld [vmem:[%s169 + $0x188] sm:$0xff]
      %v227 = vld [vmem:[%s169 + $0x190] sm:$0xff]
      %v228 = vld [vmem:[%s169 + $0x198] sm:$0xff]
      %v229 = vld [vmem:[%s169 + $0x1a0] sm:$0xff]
      %v230 = vld [vmem:[%s169 + $0x1a8] sm:$0xff]
      %v231 = vld [vmem:[%s169 + $0x1b0] sm:$0xff]
      %v232 = vld [vmem:[%s169 + $0x1b8] sm:$0xff]
      %v233 = vld [vmem:[%s169 + $0x1c0] sm:$0xff]
      %v234 = vld [vmem:[%s169 + $0x1c8] sm:$0xff]
      %v235 = vld [vmem:[%s169 + $0x1d0] sm:$0xff]
      %v236 = vld [vmem:[%s169 + $0x1d8] sm:$0xff]
      %v237 = vld [vmem:[%s169 + $0x1e0] sm:$0xff]
      %v238 = vld [vmem:[%s169 + $0x1e8] sm:$0xff]
      %v239 = vld [vmem:[%s169 + $0x1f0] sm:$0xff]
      %v240 = vld [vmem:[%s169 + $0x1f8] sm:$0xff]
      %v241 = vld [vmem:[%s169 + $0x200] sm:$0xff]
      %v242 = vld [vmem:[%s169 + $0x208] sm:$0xff]
      %v243 = vld [vmem:[%s169 + $0x210] sm:$0xff]
      %v244 = vld [vmem:[%s169 + $0x218] sm:$0xff]
      %v245 = vld [vmem:[%s169 + $0x220] sm:$0xff]
      %v246 = vld [vmem:[%s169 + $0x228] sm:$0xff]
      %v247 = vld [vmem:[%s169 + $0x230] sm:$0xff]
      %v248 = vld [vmem:[%s169 + $0x238] sm:$0xff]
      %v249 = vld [vmem:[%s169 + $0x240] sm:$0xff]
      %v250 = vld [vmem:[%s169 + $0x248] sm:$0xff]
      %v251 = vld [vmem:[%s169 + $0x250] sm:$0xff]
      %v252 = vld [vmem:[%s169 + $0x258] sm:$0xff]
      %v253 = vld [vmem:[%s169 + $0x260] sm:$0xff]
      %v254 = vld [vmem:[%s169 + $0x268] sm:$0xff]
      %v255 = vld [vmem:[%s169 + $0x270] sm:$0xff]
      %v256 = vld [vmem:[%s169 + $0x278] sm:$0xff]
      %v257 = vld [vmem:[%s1] sm:$0xff]
      %v258 = vld [vmem:[%s1 + $0x8] sm:$0xff]
      %v259 = vld [vmem:[%s1 + $0x10] sm:$0xff]
      %v260 = vld [vmem:[%s1 + $0x18] sm:$0xff]
      %v261 = vld [vmem:[%s1 + $0x20] sm:$0xff]
      %v262 = vld [vmem:[%s1 + $0x28] sm:$0xff]
      %v263 = vld [vmem:[%s1 + $0x30] sm:$0xff]
      %v264 = vld [vmem:[%s1 + $0x38] sm:$0xff]
      %v265 = vld [vmem:[%s1 + $0x40] sm:$0xff]
      %v266 = vld [vmem:[%s1 + $0x48] sm:$0xff]
      %v267 = vld [vmem:[%s1 + $0x50] sm:$0xff]
      %v268 = vld [vmem:[%s1 + $0x58] sm:$0xff]
      %v269 = vld [vmem:[%s1 + $0x60] sm:$0xff]
      %v270 = vld [vmem:[%s1 + $0x68] sm:$0xff]
      %v271 = vld [vmem:[%s1 + $0x70] sm:$0xff]
      %v272 = vld [vmem:[%s1 + $0x78] sm:$0xff]
      %v273 = vld [vmem:[%s1 + $0x80] sm:$0xff]
      %v274 = vld [vmem:[%s1 + $0x88] sm:$0xff]
      %v275 = vld [vmem:[%s1 + $0x90] sm:$0xff]
      %v276 = vld [vmem:[%s1 + $0x98] sm:$0xff]
      %v277 = vld [vmem:[%s1 + $0xa0] sm:$0xff]
      %v278 = vld [vmem:[%s1 + $0xa8] sm:$0xff]
      %v279 = vld [vmem:[%s1 + $0xb0] sm:$0xff]
      %v280 = vld [vmem:[%s1 + $0xb8] sm:$0xff]
      %v281 = vld [vmem:[%s1 + $0xc0] sm:$0xff]
      %v282 = vld [vmem:[%s1 + $0xc8] sm:$0xff]
      %v283 = vld [vmem:[%s1 + $0xd0] sm:$0xff]
      %v284 = vld [vmem:[%s1 + $0xd8] sm:$0xff]
      %v285 = vld [vmem:[%s1 + $0xe0] sm:$0xff]
      %v286 = vld [vmem:[%s1 + $0xe8] sm:$0xff]
      %v287 = vld [vmem:[%s1 + $0xf0] sm:$0xff]
      %v288 = vld [vmem:[%s1 + $0xf8] sm:$0xff]
      %v289 = vld [vmem:[%s1 + $0x100] sm:$0xff]
      %v290 = vld [vmem:[%s1 + $0x108] sm:$0xff]
      %v291 = vld [vmem:[%s1 + $0x110] sm:$0xff]
      %v292 = vld [vmem:[%s1 + $0x118] sm:$0xff]
      %v293 = vld [vmem:[%s1 + $0x120] sm:$0xff]
      %v294 = vld [vmem:[%s1 + $0x128] sm:$0xff]
      %v295 = vld [vmem:[%s1 + $0x130] sm:$0xff]
      %v296 = vld [vmem:[%s1 + $0x138] sm:$0xff]
      %v297 = vld [vmem:[%s1 + $0x140] sm:$0xff]
      %v298 = vld [vmem:[%s1 + $0x148] sm:$0xff]
      %v299 = vld [vmem:[%s1 + $0x150] sm:$0xff]
      %v300 = vld [vmem:[%s1 + $0x158] sm:$0xff]
      %v301 = vld [vmem:[%s1 + $0x160] sm:$0xff]
      %v302 = vld [vmem:[%s1 + $0x168] sm:$0xff]
      %v303 = vld [vmem:[%s1 + $0x170] sm:$0xff]
      %v304 = vld [vmem:[%s1 + $0x178] sm:$0xff]
      %v305 = vld [vmem:[%s1 + $0x180] sm:$0xff]
      %v306 = vld [vmem:[%s1 + $0x188] sm:$0xff]
      %v307 = vld [vmem:[%s1 + $0x190] sm:$0xff]
      %v308 = vld [vmem:[%s1 + $0x198] sm:$0xff]
      %v309 = vld [vmem:[%s1 + $0x1a0] sm:$0xff]
      %v310 = vld [vmem:[%s1 + $0x1a8] sm:$0xff]
      %v311 = vld [vmem:[%s1 + $0x1b0] sm:$0xff]
      %v312 = vld [vmem:[%s1 + $0x1b8] sm:$0xff]
      %v313 = vld [vmem:[%s1 + $0x1c0] sm:$0xff]
      %v314 = vld [vmem:[%s1 + $0x1c8] sm:$0xff]
      %v315 = vld [vmem:[%s1 + $0x1d0] sm:$0xff]
      %v316 = vld [vmem:[%s1 + $0x1d8] sm:$0xff]
      %v317 = vld [vmem:[%s1 + $0x1e0] sm:$0xff]
      %v318 = vld [vmem:[%s1 + $0x1e8] sm:$0xff]
      %v319 = vld [vmem:[%s1 + $0x1f0] sm:$0xff]
      %v320 = vld [vmem:[%s1 + $0x1f8] sm:$0xff]
      %v321 = vld [vmem:[%s1 + $0x200] sm:$0xff]
      %v322 = vld [vmem:[%s1 + $0x208] sm:$0xff]
      %v323 = vld [vmem:[%s1 + $0x210] sm:$0xff]
      %v324 = vld [vmem:[%s1 + $0x218] sm:$0xff]
      %v325 = vld [vmem:[%s1 + $0x220] sm:$0xff]
      %v326 = vld [vmem:[%s1 + $0x228] sm:$0xff]
      %v327 = vld [vmem:[%s1 + $0x230] sm:$0xff]
      %v328 = vld [vmem:[%s1 + $0x238] sm:$0xff]
      %v329 = vld [vmem:[%s2] sm:$0x1]
      %v331 = vlaneseq
      %v332 = vshrl.u32 %v331, 7
      %v333 = vsub.s32 0, %v332
      %v334 = vrot.slane %v329, %v333
      %vm336 = vcmask 523264
      %v338 = vsel %vm336, %v181, 0
      %v341 = vsel %vm336, %v186, 0
      %v344 = vsel %vm336, %v191, 0
      %v347 = vsel %vm336, %v196, 0
      %v350 = vsel %vm336, %v201, 0
      %v353 = vsel %vm336, %v206, 0
      %v356 = vsel %vm336, %v211, 0
      %v359 = vsel %vm336, %v216, 0
      %v362 = vsel %vm336, %v221, 0
      %v365 = vsel %vm336, %v226, 0
      %v368 = vsel %vm336, %v231, 0
      %v371 = vsel %vm336, %v236, 0
      %v374 = vsel %vm336, %v241, 0
      %v377 = vsel %vm336, %v246, 0
      %v380 = vsel %vm336, %v251, 0
      %v383 = vsel %vm336, %v256, 0
      %385 = vmatprep.subr.mxu0 0.0
      %386 = vmatpush1.msra.mxu0 %v257
      %387 = vmatprep.subr.mxu0 0.0
      %388 = vmatpush1.msra.mxu0 %v258
      %389 = vmatprep.subr.mxu0 0.0
      %390 = vmatpush1.msra.mxu0 %v259
      %391 = vmatprep.subr.mxu0 0.0
      %392 = vmatpush1.msra.mxu0 %v260
      %393 = vmatprep.subr.mxu0 0.0
      %394 = vmatpush1.msra.mxu0 %v261
      %395 = vmatprep.subr.mxu0 0.0
      %396 = vmatpush1.msra.mxu0 %v262
      %397 = vmatprep.subr.mxu0 0.0
      %398 = vmatpush1.msra.mxu0 %v263
      %399 = vmatprep.subr.mxu0 0.0
      %400 = vmatpush1.msra.mxu0 %v264
      %401 = vmatprep.subr.mxu0 0.0
      %402 = vmatpush1.msra.mxu0 %v265
      %403 = vmatprep.subr.mxu0 0.0
      %404 = vmatpush1.msra.mxu0 %v266
      %405 = vmatprep.subr.mxu0 0.0
      %406 = vmatpush1.msra.mxu0 %v267
      %407 = vmatprep.subr.mxu0 0.0
      %408 = vmatpush1.msra.mxu0 %v268
      %409 = vmatprep.subr.mxu0 0.0
      %410 = vmatpush1.msra.mxu0 %v269
      %411 = vmatprep.subr.mxu0 0.0
      %412 = vmatpush1.msra.mxu0 %v270
      %413 = vmatprep.subr.mxu0 0.0
      %414 = vmatpush1.msra.mxu0 %v271
      %415 = vmatprep.subr.mxu0 0.0
      %416 = vmatpush1.msra.mxu0 %v272
      %417 = vmatprep.subr.mxu0 0.0
      %418 = vmatpush1.msra.mxu0 %v273
      %419 = vmatprep.subr.mxu0 0.0
      %420 = vmatpush1.msra.mxu0 %v274
      %421 = vmatprep.subr.mxu0 0.0
      %422 = vmatpush1.msra.mxu0 %v275
      %423 = vmatprep.subr.mxu0 0.0
      %424 = vmatpush1.msra.mxu0 %v276
      %425 = vmatprep.subr.mxu0 0.0
      %426 = vmatpush1.msra.mxu0 %v277
      %427 = vmatprep.subr.mxu0 0.0
      %428 = vmatpush1.msra.mxu0 %v278
      %429 = vmatprep.subr.mxu0 0.0
      %430 = vmatpush1.msra.mxu0 %v279
      %431 = vmatprep.subr.mxu0 0.0
      %432 = vmatpush1.msra.mxu0 %v280
      %433 = vmatprep.subr.mxu0 0.0
      %434 = vmatpush1.msra.mxu0 %v281
      %435 = vmatprep.subr.mxu0 0.0
      %436 = vmatpush1.msra.mxu0 %v282
      %437 = vmatprep.subr.mxu0 0.0
      %438 = vmatpush1.msra.mxu0 %v283
      %439 = vmatprep.subr.mxu0 0.0
      %440 = vmatpush1.msra.mxu0 %v284
      %441 = vmatprep.subr.mxu0 0.0
      %442 = vmatpush1.msra.mxu0 %v285
      %443 = vmatprep.subr.mxu0 0.0
      %444 = vmatpush1.msra.mxu0 %v286
      %445 = vmatprep.subr.mxu0 0.0
      %446 = vmatpush1.msra.mxu0 %v287
      %447 = vmatprep.subr.mxu0 0.0
      %448 = vmatpush1.msra.mxu0 %v288
      %449 = vmatprep.mubr.f32.mxu0 %v178
      %450 = vmatmul.mubr.f32.gmra.mrb[0].mxu0 %v177
      %v451 = vpop.f32.mrb[0].mxu0
      %v452 = vadd.f32 %v334, %v451
      %v453 = vpop.f32.mrb[0].mxu0
      %454 = vmatprep.mubr.f32.mxu0 %v183
      %455 = vmatmul.mubr.f32.gmra.mrb[0].mxu0 %v182
      %v456 = vpop.f32.mrb[0].mxu0
      %v457 = vadd.f32 %v334, %v456
      %v458 = vpop.f32.mrb[0].mxu0
      %459 = vmatprep.mubr.f32.mxu0 %v188
      %460 = vmatmul.mubr.f32.gmra.mrb[0].mxu0 %v187
      %v461 = vpop.f32.mrb[0].mxu0
      %v462 = vadd.f32 %v334, %v461
      %v463 = vpop.f32.mrb[0].mxu0
      %464 = vmatprep.mubr.f32.mxu0 %v193
      %465 = vmatmul.mubr.f32.gmra.mrb[0].mxu0 %v192
      %v466 = vpop.f32.mrb[0].mxu0
      %v467 = vadd.f32 %v334, %v466
      %v468 = vpop.f32.mrb[0].mxu0
      %469 = vmatprep.mubr.f32.mxu0 %v198
      %470 = vmatmul.mubr.f32.gmra.mrb[0].mxu0 %v197
      %v471 = vpop.f32.mrb[0].mxu0
      %v472 = vadd.f32 %v334, %v471
      %v473 = vpop.f32.mrb[0].mxu0
      %474 = vmatprep.mubr.f32.mxu0 %v203
      %475 = vmatmul.mubr.f32.gmra.mrb[0].mxu0 %v202
      %v476 = vpop.f32.mrb[0].mxu0
      %v477 = vadd.f32 %v334, %v476
      %v478 = vpop.f32.mrb[0].mxu0
      %479 = vmatprep.mubr.f32.mxu0 %v208
      %480 = vmatmul.mubr.f32.gmra.mrb[0].mxu0 %v207
      %v481 = vpop.f32.mrb[0].mxu0
      %v482 = vadd.f32 %v334, %v481
      %v483 = vpop.f32.mrb[0].mxu0
      %484 = vmatprep.mubr.f32.mxu0 %v213
      %485 = vmatmul.mubr.f32.gmra.mrb[0].mxu0 %v212
      %v486 = vpop.f32.mrb[0].mxu0
      %v487 = vadd.f32 %v334, %v486
      %v488 = vpop.f32.mrb[0].mxu0
      %489 = vmatprep.mubr.f32.mxu0 %v218
      %490 = vmatmul.mubr.f32.gmra.mrb[0].mxu0 %v217
      %v491 = vpop.f32.mrb[0].mxu0
      %v492 = vadd.f32 %v334, %v491
      %v493 = vpop.f32.mrb[0].mxu0
      %494 = vmatprep.mubr.f32.mxu0 %v223
      %495 = vmatmul.mubr.f32.gmra.mrb[0].mxu0 %v222
      %v496 = vpop.f32.mrb[0].mxu0
      %v497 = vadd.f32 %v334, %v496
      %v498 = vpop.f32.mrb[0].mxu0
      %499 = vmatprep.mubr.f32.mxu0 %v228
      %500 = vmatmul.mubr.f32.gmra.mrb[0].mxu0 %v227
      %v501 = vpop.f32.mrb[0].mxu0
      %v502 = vadd.f32 %v334, %v501
      %v503 = vpop.f32.mrb[0].mxu0
      %504 = vmatprep.mubr.f32.mxu0 %v233
      %505 = vmatmul.mubr.f32.gmra.mrb[0].mxu0 %v232
      %v506 = vpop.f32.mrb[0].mxu0
      %v507 = vadd.f32 %v334, %v506
      %v508 = vpop.f32.mrb[0].mxu0
      %509 = vmatprep.mubr.f32.mxu0 %v238
      %510 = vmatmul.mubr.f32.gmra.mrb[0].mxu0 %v237
      %v511 = vpop.f32.mrb[0].mxu0
      %v512 = vadd.f32 %v334, %v511
      %v513 = vpop.f32.mrb[0].mxu0
      %514 = vmatprep.mubr.f32.mxu0 %v243
      %515 = vmatmul.mubr.f32.gmra.mrb[0].mxu0 %v242
      %v516 = vpop.f32.mrb[0].mxu0
      %v517 = vadd.f32 %v334, %v516
      %v518 = vpop.f32.mrb[0].mxu0
      %519 = vmatprep.mubr.f32.mxu0 %v248
      %520 = vmatmul.mubr.f32.gmra.mrb[0].mxu0 %v247
      %v521 = vpop.f32.mrb[0].mxu0
      %v522 = vadd.f32 %v334, %v521
      %v523 = vpop.f32.mrb[0].mxu0
      %524 = vmatprep.mubr.f32.mxu0 %v253
      %525 = vmatmul.mubr.f32.gmra.mrb[0].mxu0 %v252
      %v526 = vpop.f32.mrb[0].mxu0
      %v527 = vadd.f32 %v334, %v526
      %v528 = vpop.f32.mrb[0].mxu0
      %529 = vdwg.mxu0
      %530 = vmatprep.subr.mxu0 0.0
      %531 = vmatpush1.msra.mxu0 %v289
      %532 = vmatprep.subr.mxu0 0.0
      %533 = vmatpush1.msra.mxu0 %v290
      %534 = vmatprep.subr.mxu0 0.0
      %535 = vmatpush1.msra.mxu0 %v291
      %536 = vmatprep.subr.mxu0 0.0
      %537 = vmatpush1.msra.mxu0 %v292
      %538 = vmatprep.subr.mxu0 0.0
      %539 = vmatpush1.msra.mxu0 %v293
      %540 = vmatprep.subr.mxu0 0.0
      %541 = vmatpush1.msra.mxu0 %v294
      %542 = vmatprep.subr.mxu0 0.0
      %543 = vmatpush1.msra.mxu0 %v295
      %544 = vmatprep.subr.mxu0 0.0
      %545 = vmatpush1.msra.mxu0 %v296
      %546 = vmatprep.subr.mxu0 0.0
      %547 = vmatpush1.msra.mxu0 %v297
      %548 = vmatprep.subr.mxu0 0.0
      %549 = vmatpush1.msra.mxu0 %v298
      %550 = vmatprep.subr.mxu0 0.0
      %551 = vmatpush1.msra.mxu0 %v299
      %552 = vmatprep.subr.mxu0 0.0
      %553 = vmatpush1.msra.mxu0 %v300
      %554 = vmatprep.subr.mxu0 0.0
      %555 = vmatpush1.msra.mxu0 %v301
      %556 = vmatprep.subr.mxu0 0.0
      %557 = vmatpush1.msra.mxu0 %v302
      %558 = vmatprep.subr.mxu0 0.0
      %559 = vmatpush1.msra.mxu0 %v303
      %560 = vmatprep.subr.mxu0 0.0
      %561 = vmatpush1.msra.mxu0 %v304
      %562 = vmatprep.subr.mxu0 0.0
      %563 = vmatpush1.msra.mxu0 %v305
      %564 = vmatprep.subr.mxu0 0.0
      %565 = vmatpush1.msra.mxu0 %v306
      %566 = vmatprep.subr.mxu0 0.0
      %567 = vmatpush1.msra.mxu0 %v307
      %568 = vmatprep.subr.mxu0 0.0
      %569 = vmatpush1.msra.mxu0 %v308
      %570 = vmatprep.subr.mxu0 0.0
      %571 = vmatpush1.msra.mxu0 %v309
      %572 = vmatprep.subr.mxu0 0.0
      %573 = vmatpush1.msra.mxu0 %v310
      %574 = vmatprep.subr.mxu0 0.0
      %575 = vmatpush1.msra.mxu0 %v311
      %576 = vmatprep.subr.mxu0 0.0
      %577 = vmatpush1.msra.mxu0 %v312
      %578 = vmatprep.subr.mxu0 0.0
      %579 = vmatpush1.msra.mxu0 %v313
      %580 = vmatprep.subr.mxu0 0.0
      %581 = vmatpush1.msra.mxu0 %v314
      %582 = vmatprep.subr.mxu0 0.0
      %583 = vmatpush1.msra.mxu0 %v315
      %584 = vmatprep.subr.mxu0 0.0
      %585 = vmatpush1.msra.mxu0 %v316
      %586 = vmatprep.subr.mxu0 0.0
      %587 = vmatpush1.msra.mxu0 %v317
      %588 = vmatprep.subr.mxu0 0.0
      %589 = vmatpush1.msra.mxu0 %v318
      %590 = vmatprep.subr.mxu0 0.0
      %591 = vmatpush1.msra.mxu0 %v319
      %592 = vmatprep.subr.mxu0 0.0
      %593 = vmatpush1.msra.mxu0 %v320
      %594 = vmatprep.mubr.f32.mxu0 %v180
      %595 = vmatmul.mubr.f32.gmra.mrb[0].mxu0 %v179
      %v596 = vpop.f32.mrb[0].mxu0
      %v597 = vadd.f32 %v452, %v596
      %v598 = vpop.f32.mrb[0].mxu0
      %599 = vmatprep.mubr.f32.mxu0 %v185
      %600 = vmatmul.mubr.f32.gmra.mrb[0].mxu0 %v184
      %v601 = vpop.f32.mrb[0].mxu0
      %v602 = vadd.f32 %v457, %v601
      %v603 = vpop.f32.mrb[0].mxu0
      %604 = vmatprep.mubr.f32.mxu0 %v190
      %605 = vmatmul.mubr.f32.gmra.mrb[0].mxu0 %v189
      %v606 = vpop.f32.mrb[0].mxu0
      %v607 = vadd.f32 %v462, %v606
      %v608 = vpop.f32.mrb[0].mxu0
      %609 = vmatprep.mubr.f32.mxu0 %v195
      %610 = vmatmul.mubr.f32.gmra.mrb[0].mxu0 %v194
      %v611 = vpop.f32.mrb[0].mxu0
      %v612 = vadd.f32 %v467, %v611
      %v613 = vpop.f32.mrb[0].mxu0
      %614 = vmatprep.mubr.f32.mxu0 %v200
      %615 = vmatmul.mubr.f32.gmra.mrb[0].mxu0 %v199
      %v616 = vpop.f32.mrb[0].mxu0
      %v617 = vadd.f32 %v472, %v616
      %v618 = vpop.f32.mrb[0].mxu0
      %619 = vmatprep.mubr.f32.mxu0 %v205
      %620 = vmatmul.mubr.f32.gmra.mrb[0].mxu0 %v204
      %v621 = vpop.f32.mrb[0].mxu0
      %v622 = vadd.f32 %v477, %v621
      %v623 = vpop.f32.mrb[0].mxu0
      %624 = vmatprep.mubr.f32.mxu0 %v210
      %625 = vmatmul.mubr.f32.gmra.mrb[0].mxu0 %v209
      %v626 = vpop.f32.mrb[0].mxu0
      %v627 = vadd.f32 %v482, %v626
      %v628 = vpop.f32.mrb[0].mxu0
      %629 = vmatprep.mubr.f32.mxu0 %v215
      %630 = vmatmul.mubr.f32.gmra.mrb[0].mxu0 %v214
      %v631 = vpop.f32.mrb[0].mxu0
      %v632 = vadd.f32 %v487, %v631
      %v633 = vpop.f32.mrb[0].mxu0
      %634 = vmatprep.mubr.f32.mxu0 %v220
      %635 = vmatmul.mubr.f32.gmra.mrb[0].mxu0 %v219
      %v636 = vpop.f32.mrb[0].mxu0
      %v637 = vadd.f32 %v492, %v636
      %v638 = vpop.f32.mrb[0].mxu0
      %639 = vmatprep.mubr.f32.mxu0 %v225
      %640 = vmatmul.mubr.f32.gmra.mrb[0].mxu0 %v224
      %v641 = vpop.f32.mrb[0].mxu0
      %v642 = vadd.f32 %v497, %v641
      %v643 = vpop.f32.mrb[0].mxu0
      %644 = vmatprep.mubr.f32.mxu0 %v230
      %645 = vmatmul.mubr.f32.gmra.mrb[0].mxu0 %v229
      %v646 = vpop.f32.mrb[0].mxu0
      %v647 = vadd.f32 %v502, %v646
      %v648 = vpop.f32.mrb[0].mxu0
      %649 = vmatprep.mubr.f32.mxu0 %v235
      %650 = vmatmul.mubr.f32.gmra.mrb[0].mxu0 %v234
      %v651 = vpop.f32.mrb[0].mxu0
      %v652 = vadd.f32 %v507, %v651
      %v653 = vpop.f32.mrb[0].mxu0
      %654 = vmatprep.mubr.f32.mxu0 %v240
      %655 = vmatmul.mubr.f32.gmra.mrb[0].mxu0 %v239
      %v656 = vpop.f32.mrb[0].mxu0
      %v657 = vadd.f32 %v512, %v656
      %v658 = vpop.f32.mrb[0].mxu0
      %659 = vmatprep.mubr.f32.mxu0 %v245
      %660 = vmatmul.mubr.f32.gmra.mrb[0].mxu0 %v244
      %v661 = vpop.f32.mrb[0].mxu0
      %v662 = vadd.f32 %v517, %v661
      %v663 = vpop.f32.mrb[0].mxu0
      %664 = vmatprep.mubr.f32.mxu0 %v250
      %665 = vmatmul.mubr.f32.gmra.mrb[0].mxu0 %v249
      %v666 = vpop.f32.mrb[0].mxu0
      %v667 = vadd.f32 %v522, %v666
      %v668 = vpop.f32.mrb[0].mxu0
      %669 = vmatprep.mubr.f32.mxu0 %v255
      %670 = vmatmul.mubr.f32.gmra.mrb[0].mxu0 %v254
      %v671 = vpop.f32.mrb[0].mxu0
      %v672 = vadd.f32 %v527, %v671
      %v673 = vpop.f32.mrb[0].mxu0
      %674 = vdwg.mxu0
      %675 = vmatprep.subr.mxu0 0.0
      %676 = vmatpush1.msra.mxu0 %v321
      %677 = vmatprep.subr.mxu0 0.0
      %678 = vmatpush1.msra.mxu0 %v322
      %679 = vmatprep.subr.mxu0 0.0
      %680 = vmatpush1.msra.mxu0 %v323
      %681 = vmatprep.subr.mxu0 0.0
      %682 = vmatpush1.msra.mxu0 %v324
      %683 = vmatprep.subr.mxu0 0.0
      %684 = vmatpush1.msra.mxu0 %v325
      %685 = vmatprep.subr.mxu0 0.0
      %686 = vmatpush1.msra.mxu0 %v326
      %687 = vmatprep.subr.mxu0 0.0
      %688 = vmatpush1.msra.mxu0 %v327
      %689 = vmatprep.subr.mxu0 0.0
      %690 = vmatpush1.msra.mxu0 %v328
      %691 = vmatprep.subr.mxu0 0.0
      %692 = vmatpush1.msra.mxu0 0.0
      %693 = vmatprep.subr.mxu0 0.0
      %694 = vmatpush1.msra.mxu0 0.0
      %695 = vmatprep.subr.mxu0 0.0
      %696 = vmatpush1.msra.mxu0 0.0
      %697 = vmatprep.subr.mxu0 0.0
      %698 = vmatpush1.msra.mxu0 0.0
      %699 = vmatprep.subr.mxu0 0.0
      %700 = vmatpush1.msra.mxu0 0.0
      %701 = vmatprep.subr.mxu0 0.0
      %702 = vmatpush1.msra.mxu0 0.0
      %703 = vmatprep.subr.mxu0 0.0
      %704 = vmatpush1.msra.mxu0 0.0
      %705 = vmatprep.subr.mxu0 0.0
      %706 = vmatpush1.msra.mxu0 0.0
      %707 = vmatprep.subr.mxu0 0.0
      %708 = vmatpush1.msra.mxu0 0.0
      %709 = vmatprep.subr.mxu0 0.0
      %710 = vmatpush1.msra.mxu0 0.0
      %711 = vmatprep.subr.mxu0 0.0
      %712 = vmatpush1.msra.mxu0 0.0
      %713 = vmatprep.subr.mxu0 0.0
      %714 = vmatpush1.msra.mxu0 0.0
      %715 = vmatprep.subr.mxu0 0.0
      %716 = vmatpush1.msra.mxu0 0.0
      %717 = vmatprep.subr.mxu0 0.0
      %718 = vmatpush1.msra.mxu0 0.0
      %719 = vmatprep.subr.mxu0 0.0
      %720 = vmatpush1.msra.mxu0 0.0
      %721 = vmatprep.subr.mxu0 0.0
      %722 = vmatpush1.msra.mxu0 0.0
      %723 = vmatprep.subr.mxu0 0.0
      %724 = vmatpush1.msra.mxu0 0.0
      %725 = vmatprep.subr.mxu0 0.0
      %726 = vmatpush1.msra.mxu0 0.0
      %727 = vmatprep.subr.mxu0 0.0
      %728 = vmatpush1.msra.mxu0 0.0
      %729 = vmatprep.subr.mxu0 0.0
      %730 = vmatpush1.msra.mxu0 0.0
      %731 = vmatprep.subr.mxu0 0.0
      %732 = vmatpush1.msra.mxu0 0.0
      %733 = vmatprep.subr.mxu0 0.0
      %734 = vmatpush1.msra.mxu0 0.0
      %735 = vmatprep.subr.mxu0 0.0
      %736 = vmatpush1.msra.mxu0 0.0
      %737 = vmatprep.subr.mxu0 0.0
      %738 = vmatpush1.msra.mxu0 0.0
      %739 = vmatprep.mubr.f32.mxu0 0.0
      %740 = vmatmul.mubr.f32.gmra.mrb[0].mxu0 %v338
      %v741 = vpop.f32.mrb[0].mxu0
      %v742 = vadd.f32 %v597, %v741
      %v743 = vpop.f32.mrb[0].mxu0
      %744 = vmatprep.mubr.f32.mxu0 0.0
      %745 = vmatmul.mubr.f32.gmra.mrb[0].mxu0 %v341
      %v746 = vpop.f32.mrb[0].mxu0
      %v747 = vadd.f32 %v602, %v746
      %v748 = vpop.f32.mrb[0].mxu0
      %749 = vmatprep.mubr.f32.mxu0 0.0
      %750 = vmatmul.mubr.f32.gmra.mrb[0].mxu0 %v344
      %v751 = vpop.f32.mrb[0].mxu0
      %v752 = vadd.f32 %v607, %v751
      %v753 = vpop.f32.mrb[0].mxu0
      %754 = vmatprep.mubr.f32.mxu0 0.0
      %755 = vmatmul.mubr.f32.gmra.mrb[0].mxu0 %v347
      %v756 = vpop.f32.mrb[0].mxu0
      %v757 = vadd.f32 %v612, %v756
      %v758 = vpop.f32.mrb[0].mxu0
      %759 = vmatprep.mubr.f32.mxu0 0.0
      %760 = vmatmul.mubr.f32.gmra.mrb[0].mxu0 %v350
      %v761 = vpop.f32.mrb[0].mxu0
      %v762 = vadd.f32 %v617, %v761
      %v763 = vpop.f32.mrb[0].mxu0
      %764 = vmatprep.mubr.f32.mxu0 0.0
      %765 = vmatmul.mubr.f32.gmra.mrb[0].mxu0 %v353
      %v766 = vpop.f32.mrb[0].mxu0
      %v767 = vadd.f32 %v622, %v766
      %v768 = vpop.f32.mrb[0].mxu0
      %769 = vmatprep.mubr.f32.mxu0 0.0
      %770 = vmatmul.mubr.f32.gmra.mrb[0].mxu0 %v356
      %v771 = vpop.f32.mrb[0].mxu0
      %v772 = vadd.f32 %v627, %v771
      %v773 = vpop.f32.mrb[0].mxu0
      %774 = vmatprep.mubr.f32.mxu0 0.0
      %775 = vmatmul.mubr.f32.gmra.mrb[0].mxu0 %v359
      %v776 = vpop.f32.mrb[0].mxu0
      %v777 = vadd.f32 %v632, %v776
      %v778 = vpop.f32.mrb[0].mxu0
      %779 = vmatprep.mubr.f32.mxu0 0.0
      %780 = vmatmul.mubr.f32.gmra.mrb[0].mxu0 %v362
      %v781 = vpop.f32.mrb[0].mxu0
      %v782 = vadd.f32 %v637, %v781
      %v783 = vpop.f32.mrb[0].mxu0
      %784 = vmatprep.mubr.f32.mxu0 0.0
      %785 = vmatmul.mubr.f32.gmra.mrb[0].mxu0 %v365
      %v786 = vpop.f32.mrb[0].mxu0
      %v787 = vadd.f32 %v642, %v786
      %v788 = vpop.f32.mrb[0].mxu0
      %789 = vmatprep.mubr.f32.mxu0 0.0
      %790 = vmatmul.mubr.f32.gmra.mrb[0].mxu0 %v368
      %v791 = vpop.f32.mrb[0].mxu0
      %v792 = vadd.f32 %v647, %v791
      %v793 = vpop.f32.mrb[0].mxu0
      %794 = vmatprep.mubr.f32.mxu0 0.0
      %795 = vmatmul.mubr.f32.gmra.mrb[0].mxu0 %v371
      %v796 = vpop.f32.mrb[0].mxu0
      %v797 = vadd.f32 %v652, %v796
      %v798 = vpop.f32.mrb[0].mxu0
      %799 = vmatprep.mubr.f32.mxu0 0.0
      %800 = vmatmul.mubr.f32.gmra.mrb[0].mxu0 %v374
      %v801 = vpop.f32.mrb[0].mxu0
      %v802 = vadd.f32 %v657, %v801
      %v803 = vpop.f32.mrb[0].mxu0
      %804 = vmatprep.mubr.f32.mxu0 0.0
      %805 = vmatmul.mubr.f32.gmra.mrb[0].mxu0 %v377
      %v806 = vpop.f32.mrb[0].mxu0
      %v807 = vadd.f32 %v662, %v806
      %v808 = vpop.f32.mrb[0].mxu0
      %809 = vmatprep.mubr.f32.mxu0 0.0
      %810 = vmatmul.mubr.f32.gmra.mrb[0].mxu0 %v380
      %v811 = vpop.f32.mrb[0].mxu0
      %v812 = vadd.f32 %v667, %v811
      %v813 = vpop.f32.mrb[0].mxu0
      %814 = vmatprep.mubr.f32.mxu0 0.0
      %815 = vmatmul.mubr.f32.gmra.mrb[0].mxu0 %v383
      %v816 = vpop.f32.mrb[0].mxu0
      %v817 = vadd.f32 %v672, %v816
      %v818 = vpop.f32.mrb[0].mxu0
      %819 = vdwg.mxu0
      %820 = vst [vmem:[%s175] sm:$0xff] %v742
      %821 = vst [vmem:[%s175 + $0x8] sm:$0xff] %v747
      %822 = vst [vmem:[%s175 + $0x10] sm:$0xff] %v752
      %823 = vst [vmem:[%s175 + $0x18] sm:$0xff] %v757
      %824 = vst [vmem:[%s175 + $0x20] sm:$0xff] %v762
      %825 = vst [vmem:[%s175 + $0x28] sm:$0xff] %v767
      %826 = vst [vmem:[%s175 + $0x30] sm:$0xff] %v772
      %827 = vst [vmem:[%s175 + $0x38] sm:$0xff] %v777
      %828 = vst [vmem:[%s175 + $0x40] sm:$0xff] %v782
      %829 = vst [vmem:[%s175 + $0x48] sm:$0xff] %v787
      %830 = vst [vmem:[%s175 + $0x50] sm:$0xff] %v792
      %831 = vst [vmem:[%s175 + $0x58] sm:$0xff] %v797
      %832 = vst [vmem:[%s175 + $0x60] sm:$0xff] %v802
      %833 = vst [vmem:[%s175 + $0x68] sm:$0xff] %v807
      %834 = vst [vmem:[%s175 + $0x70] sm:$0xff] %v812
      %835 = vst [vmem:[%s175 + $0x78] sm:$0xff] %v817
      %s836 = smul.u32 16, %s14
      %p837 = scmp.lt.s32.totalorder %s836, 47
      %s838 = scalar_select %p837, %s836, 47
      %s839 = smul.addr %s838, 8
      %s840 = scalar_lea.vmem %s3, %s839
      // Predicated region
      $region33: #{forward.6} parent=31 // pred_check
        %p841 = pneg %p100
      $region34: #{forward.6} parent=31 // pred_check_branch
        %843 = sbr.rel (%p841) target = $region36
      $region35: #{forward.6} parent=31 // pred_region
        %s844 = smul.u32 16, %s14
      $region36: #{forward.6} parent=31 // pred_fallthru
        _
    $region32: #{forward.6} parent=5 // pred_fallthru
      _
    %p845 = scmp.le.s32.totalorder 2, %s9
    // Predicated region
    $region37: #{forward.6} parent=5 // pred_check
      %p846 = pneg %p845
    $region38: #{forward.6} parent=5 // pred_check_branch
      %848 = sbr.rel (%p846) target = $region40
    $region39: #{forward.6} parent=5 // pred_region
      %s849 = ssub.s32 %s9, 2
      // Predicated region
      $region41: #{forward.6} parent=39 // pred_check
        %p850 = pneg %p106
      $region42: #{forward.6} parent=39 // pred_check_branch
        %852 = sbr.rel (%p850) target = $region44
      $region43: #{forward.6} parent=39 // pred_region
        %s853 = smul.u32 16, %s15
        %p854 = scmp.lt.s32.totalorder %s853, 47
        %s855 = scalar_select %p854, %s853, 47
        %s856 = smul.addr %s855, 8
        %s857 = scalar_lea.vmem %s3, %s856
      $region44: #{forward.6} parent=39 // pred_fallthru
        _
    $region40: #{forward.6} parent=5 // pred_fallthru
      _
  $region6: #{forward.6} parent=0 // loop_footer
    %s13 = sadd.s32 1, %s9
  $region7: #{forward.6} parent=0 // loop_footer_branch
    %8 = sbr.rel target = $region3
  $region8: #{forward.6} parent=0 // loop_exit
    _

// kernel: mul.8
$region0: #{mul.8}
  %s0 = inlined_call_operand.vmem [shape: f32[3,2], index: 0, kind: input, shape index: {}]
  %s1 = inlined_call_operand.vmem [shape: f32[6], index: 1, kind: output, shape index: {}]
  $region1: #{mul.8} parent=0
    #allocation0 [shape = 'u8[4096]{0}', space=vmem, size = 0x1000, scoped, tag = 'scoped mem for output reshape']
    #allocation1 [shape = 'u8[4096]{0}', space=vmem, size = 0x1000, scoped, tag = 'scoped mem for input reshape']
    %s3 = sshllo.u32 0, 4
    %v4 = vld [vmem:[%s0] sm:%s3]
    %5 = vst [vmem:[#allocation1] sm:%s3] %v4
    %v6 = vld [vmem:[#allocation1] sm:$0x1]
    %vm7 = vcmask 15360
    %8 = vst.msk [vmem:[#allocation0] sm:$0x1] %vm7, %v6
    %s9 = scalar_lea.vmem [#allocation1], 2
    %v10 = vld [vmem:[%s9] sm:$0x1]
    %11 = vrot.lane.b32.xlu0 %v10, 4
    %v12 = vpop.permute.xlu0 %11
    %vm13 = vcmask 48160
    %14 = vst.msk [vmem:[#allocation0] sm:$0x1] %vm13, %v12
    %s15 = scalar_lea.vmem [#allocation1], 1
    %v16 = vld [vmem:[%s15] sm:$0x1]
    %17 = vrot.lane.b32.xlu0 %v16, 2
    %v18 = vpop.permute.xlu0 %17
    %vm19 = vcmask 31760
    %20 = vst.msk [vmem:[#allocation0] sm:$0x1] %vm19, %v18
    %s22 = sshllo.u32 0, 1
    %v24 = vld [vmem:[#allocation0] sm:%s22]
    %s25 = sshllo.u32 0, 1
    %26 = vst [vmem:[%s1] sm:%s25] %v24

// kernel: forward.8
$region0: #{forward.8}
  #allocation0 [shape = 'u32[]', space=smem, size = 0x4, offset = 0x4, fixed_abs, tag = 'smem constant byte address 0x4 - core index']
  #allocation1 [shape = 'u32[144,128]{1,0:T(1,128)}', space=vmem, size = 0x12000, scoped, tag = 'internal scratch']
  %s0 = inlined_call_operand.vmem [shape: f32[112,8], index: 0, kind: input, shape index: {}]
  %s1 = inlined_call_operand.vmem [shape: f32[8,128], index: 1, kind: input, shape index: {}]
  %s2 = inlined_call_operand.vmem [shape: f32[1,128], index: 2, kind: input, shape index: {}]
  %s3 = inlined_call_operand.vmem [shape: f32[112,128], index: 3, kind: output, shape index: {}]
  %s4 = sld [smem:[#allocation0]]
  $region22: #{forward.8} parent=0
    _
  %s6 = ssub.s32 1, %s4
  %s7 = scalar_select 0, %s6, %s4
  // Predicated region
  $region2: #{forward.8} parent=0 // pred_check
    _
  $region3: #{forward.8} parent=0 // pred_check_branch
    %9 = sbr.rel (0) target = $region5
  $region4: #{forward.8} parent=0 // pred_region
    _
  $region5: #{forward.8} parent=0 // pred_fallthru
    _
  // Predicated region
  $region6: #{forward.8} parent=0 // pred_check
    _
  $region7: #{forward.8} parent=0 // pred_check_branch
    %11 = sbr.rel (0) target = $region9
  $region8: #{forward.8} parent=0 // pred_region
    _
  $region9: #{forward.8} parent=0 // pred_fallthru
    _
  // Predicated region
  $region10: #{forward.8} parent=0 // pred_check
    _
  $region11: #{forward.8} parent=0 // pred_check_branch
    %13 = sbr.rel (0) target = $region13
  $region12: #{forward.8} parent=0 // pred_region
    _
  $region13: #{forward.8} parent=0 // pred_fallthru
    _
  %v14 = vld [vmem:[%s0] sm:$0xff]
  %v15 = vld [vmem:[%s0 + $0x8] sm:$0xff]
  %v16 = vld [vmem:[%s0 + $0x10] sm:$0xff]
  %v17 = vld [vmem:[%s0 + $0x18] sm:$0xff]
  %v18 = vld [vmem:[%s0 + $0x20] sm:$0xff]
  %v19 = vld [vmem:[%s0 + $0x28] sm:$0xff]
  %v20 = vld [vmem:[%s0 + $0x30] sm:$0xff]
  %v21 = vld [vmem:[%s0 + $0x38] sm:$0xff]
  %v22 = vld [vmem:[%s0 + $0x40] sm:$0xff]
  %v23 = vld [vmem:[%s0 + $0x48] sm:$0xff]
  %v24 = vld [vmem:[%s0 + $0x50] sm:$0xff]
  %v25 = vld [vmem:[%s0 + $0x58] sm:$0xff]
  %v26 = vld [vmem:[%s0 + $0x60] sm:$0xff]
  %v27 = vld [vmem:[%s0 + $0x68] sm:$0xff]
  %v28 = vld [vmem:[%s1] sm:$0xff]
  %v29 = vld [vmem:[%s2] sm:$0x1]
  %v31 = vlaneseq
  %v32 = vshrl.u32 %v31, 7
  %v33 = vsub.s32 0, %v32
  %v34 = vrot.slane %v29, %v33
  %vm36 = vcmask 64512
  %v38 = vsel %vm36, %v14, 0
  %v41 = vsel %vm36, %v15, 0
  %v44 = vsel %vm36, %v16, 0
  %v47 = vsel %vm36, %v17, 0
  %v50 = vsel %vm36, %v18, 0
  %v53 = vsel %vm36, %v19, 0
  %v56 = vsel %vm36, %v20, 0
  %v59 = vsel %vm36, %v21, 0
  %v62 = vsel %vm36, %v22, 0
  %v65 = vsel %vm36, %v23, 0
  %v68 = vsel %vm36, %v24, 0
  %v71 = vsel %vm36, %v25, 0
  %v74 = vsel %vm36, %v26, 0
  %v77 = vsel %vm36, %v27, 0
  %79 = vmatprep.subr.mxu0 0.0
  %80 = vmatpush1.msra.mxu0 %v28
  %81 = vmatprep.subr.mxu0 0.0
  %82 = vmatpush1.msra.mxu0 0.0
  %83 = vmatprep.subr.mxu0 0.0
  %84 = vmatpush1.msra.mxu0 0.0
  %85 = vmatprep.subr.mxu0 0.0
  %86 = vmatpush1.msra.mxu0 0.0
  %87 = vmatprep.subr.mxu0 0.0
  %88 = vmatpush1.msra.mxu0 0.0
  %89 = vmatprep.subr.mxu0 0.0
  %90 = vmatpush1.msra.mxu0 0.0
  %91 = vmatprep.subr.mxu0 0.0
  %92 = vmatpush1.msra.mxu0 0.0
  %93 = vmatprep.subr.mxu0 0.0
  %94 = vmatpush1.msra.mxu0 0.0
  %95 = vmatprep.subr.mxu0 0.0
  %96 = vmatpush1.msra.mxu0 0.0
  %97 = vmatprep.subr.mxu0 0.0
  %98 = vmatpush1.msra.mxu0 0.0
  %99 = vmatprep.subr.mxu0 0.0
  %100 = vmatpush1.msra.mxu0 0.0
  %101 = vmatprep.subr.mxu0 0.0
  %102 = vmatpush1.msra.mxu0 0.0
  %103 = vmatprep.subr.mxu0 0.0
  %104 = vmatpush1.msra.mxu0 0.0
  %105 = vmatprep.subr.mxu0 0.0
  %106 = vmatpush1.msra.mxu0 0.0
  %107 = vmatprep.subr.mxu0 0.0
  %108 = vmatpush1.msra.mxu0 0.0
  %109 = vmatprep.subr.mxu0 0.0
  %110 = vmatpush1.msra.mxu0 0.0
  %111 = vmatprep.subr.mxu0 0.0
  %112 = vmatpush1.msra.mxu0 0.0
  %113 = vmatprep.subr.mxu0 0.0
  %114 = vmatpush1.msra.mxu0 0.0
  %115 = vmatprep.subr.mxu0 0.0
  %116 = vmatpush1.msra.mxu0 0.0
  %117 = vmatprep.subr.mxu0 0.0
  %118 = vmatpush1.msra.mxu0 0.0
  %119 = vmatprep.subr.mxu0 0.0
  %120 = vmatpush1.msra.mxu0 0.0
  %121 = vmatprep.subr.mxu0 0.0
  %122 = vmatpush1.msra.mxu0 0.0
  %123 = vmatprep.subr.mxu0 0.0
  %124 = vmatpush1.msra.mxu0 0.0
  %125 = vmatprep.subr.mxu0 0.0
  %126 = vmatpush1.msra.mxu0 0.0
  %127 = vmatprep.subr.mxu0 0.0
  %128 = vmatpush1.msra.mxu0 0.0
  %129 = vmatprep.subr.mxu0 0.0
  %130 = vmatpush1.msra.mxu0 0.0
  %131 = vmatprep.subr.mxu0 0.0
  %132 = vmatpush1.msra.mxu0 0.0
  %133 = vmatprep.subr.mxu0 0.0
  %134 = vmatpush1.msra.mxu0 0.0
  %135 = vmatprep.subr.mxu0 0.0
  %136 = vmatpush1.msra.mxu0 0.0
  %137 = vmatprep.subr.mxu0 0.0
  %138 = vmatpush1.msra.mxu0 0.0
  %139 = vmatprep.subr.mxu0 0.0
  %140 = vmatpush1.msra.mxu0 0.0
  %141 = vmatprep.subr.mxu0 0.0
  %142 = vmatpush1.msra.mxu0 0.0
  %143 = vmatprep.mubr.f32.mxu0 0.0
  %144 = vmatmul.mubr.f32.gmra.mrb[0].mxu0 %v38
  %v145 = vpop.f32.mrb[0].mxu0
  %v146 = vadd.f32 %v34, %v145
  %v147 = vpop.f32.mrb[0].mxu0
  %148 = vmatprep.mubr.f32.mxu0 0.0
  %149 = vmatmul.mubr.f32.gmra.mrb[0].mxu0 %v41
  %v150 = vpop.f32.mrb[0].mxu0
  %v151 = vadd.f32 %v34, %v150
  %v152 = vpop.f32.mrb[0].mxu0
  %153 = vmatprep.mubr.f32.mxu0 0.0
  %154 = vmatmul.mubr.f32.gmra.mrb[0].mxu0 %v44
  %v155 = vpop.f32.mrb[0].mxu0
  %v156 = vadd.f32 %v34, %v155
  %v157 = vpop.f32.mrb[0].mxu0
  %158 = vmatprep.mubr.f32.mxu0 0.0
  %159 = vmatmul.mubr.f32.gmra.mrb[0].mxu0 %v47
  %v160 = vpop.f32.mrb[0].mxu0
  %v161 = vadd.f32 %v34, %v160
  %v162 = vpop.f32.mrb[0].mxu0
  %163 = vmatprep.mubr.f32.mxu0 0.0
  %164 = vmatmul.mubr.f32.gmra.mrb[0].mxu0 %v50
  %v165 = vpop.f32.mrb[0].mxu0
  %v166 = vadd.f32 %v34, %v165
  %v167 = vpop.f32.mrb[0].mxu0
  %168 = vmatprep.mubr.f32.mxu0 0.0
  %169 = vmatmul.mubr.f32.gmra.mrb[0].mxu0 %v53
  %v170 = vpop.f32.mrb[0].mxu0
  %v171 = vadd.f32 %v34, %v170
  %v172 = vpop.f32.mrb[0].mxu0
  %173 = vmatprep.mubr.f32.mxu0 0.0
  %174 = vmatmul.mubr.f32.gmra.mrb[0].mxu0 %v56
  %v175 = vpop.f32.mrb[0].mxu0
  %v176 = vadd.f32 %v34, %v175
  %v177 = vpop.f32.mrb[0].mxu0
  %178 = vmatprep.mubr.f32.mxu0 0.0
  %179 = vmatmul.mubr.f32.gmra.mrb[0].mxu0 %v59
  %v180 = vpop.f32.mrb[0].mxu0
  %v181 = vadd.f32 %v34, %v180
  %v182 = vpop.f32.mrb[0].mxu0
  %183 = vmatprep.mubr.f32.mxu0 0.0
  %184 = vmatmul.mubr.f32.gmra.mrb[0].mxu0 %v62
  %v185 = vpop.f32.mrb[0].mxu0
  %v186 = vadd.f32 %v34, %v185
  %v187 = vpop.f32.mrb[0].mxu0
  %188 = vmatprep.mubr.f32.mxu0 0.0
  %189 = vmatmul.mubr.f32.gmra.mrb[0].mxu0 %v65
  %v190 = vpop.f32.mrb[0].mxu0
  %v191 = vadd.f32 %v34, %v190
  %v192 = vpop.f32.mrb[0].mxu0
  %193 = vmatprep.mubr.f32.mxu0 0.0
  %194 = vmatmul.mubr.f32.gmra.mrb[0].mxu0 %v68
  %v195 = vpop.f32.mrb[0].mxu0
  %v196 = vadd.f32 %v34, %v195
  %v197 = vpop.f32.mrb[0].mxu0
  %198 = vmatprep.mubr.f32.mxu0 0.0
  %199 = vmatmul.mubr.f32.gmra.mrb[0].mxu0 %v71
  %v200 = vpop.f32.mrb[0].mxu0
  %v201 = vadd.f32 %v34, %v200
  %v202 = vpop.f32.mrb[0].mxu0
  %203 = vmatprep.mubr.f32.mxu0 0.0
  %204 = vmatmul.mubr.f32.gmra.mrb[0].mxu0 %v74
  %v205 = vpop.f32.mrb[0].mxu0
  %v206 = vadd.f32 %v34, %v205
  %v207 = vpop.f32.mrb[0].mxu0
  %208 = vmatprep.mubr.f32.mxu0 0.0
  %209 = vmatmul.mubr.f32.gmra.mrb[0].mxu0 %v77
  %v210 = vpop.f32.mrb[0].mxu0
  %v211 = vadd.f32 %v34, %v210
  %v212 = vpop.f32.mrb[0].mxu0
  %213 = vdwg.mxu0
  %214 = vst [vmem:[%s3] sm:$0xff] %v146
  %215 = vst [vmem:[%s3 + $0x8] sm:$0xff] %v151
  %216 = vst [vmem:[%s3 + $0x10] sm:$0xff] %v156
  %217 = vst [vmem:[%s3 + $0x18] sm:$0xff] %v161
  %218 = vst [vmem:[%s3 + $0x20] sm:$0xff] %v166
  %219 = vst [vmem:[%s3 + $0x28] sm:$0xff] %v171
  %220 = vst [vmem:[%s3 + $0x30] sm:$0xff] %v176
  %221 = vst [vmem:[%s3 + $0x38] sm:$0xff] %v181
  %222 = vst [vmem:[%s3 + $0x40] sm:$0xff] %v186
  %223 = vst [vmem:[%s3 + $0x48] sm:$0xff] %v191
  %224 = vst [vmem:[%s3 + $0x50] sm:$0xff] %v196
  %225 = vst [vmem:[%s3 + $0x58] sm:$0xff] %v201
  %226 = vst [vmem:[%s3 + $0x60] sm:$0xff] %v206
  %227 = vst [vmem:[%s3 + $0x68] sm:$0xff] %v211
  // Predicated region
  $region14: #{forward.8} parent=0 // pred_check
    _
  $region15: #{forward.8} parent=0 // pred_check_branch
    %229 = sbr.rel (0) target = $region17
  $region16: #{forward.8} parent=0 // pred_region
    _
  $region17: #{forward.8} parent=0 // pred_fallthru
    _
  // Predicated region
  $region18: #{forward.8} parent=0 // pred_check
    _
  $region19: #{forward.8} parent=0 // pred_check_branch
    %231 = sbr.rel (0) target = $region21
  $region20: #{forward.8} parent=0 // pred_region
    _
  $region21: #{forward.8} parent=0 // pred_fallthru
    _

// kernel: forward.7
$region0: #{forward.7}
  #allocation0 [shape = 'u32[]', space=smem, size = 0x4, offset = 0x4, fixed_abs, tag = 'smem constant byte address 0x4 - core index']
  #allocation1 [shape = 'u32[144,128]{1,0:T(1,128)}', space=vmem, size = 0x12000, scoped, tag = 'internal scratch']
  %s0 = inlined_call_operand.vmem [shape: f32[6,64,7], index: 0, kind: input, shape index: {}]
  %s1 = inlined_call_operand.vmem [shape: f32[6,1,1], index: 1, kind: input, shape index: {}]
  %s2 = inlined_call_operand.vmem [shape: f32[6,64,64], index: 2, kind: input, shape index: {}]
  %s3 = inlined_call_operand.vmem [shape: f32[64,64], index: 3, kind: input, shape index: {}]
  %s4 = inlined_call_operand.vmem [shape: f32[64,32], index: 4, kind: input, shape index: {}]
  %s5 = inlined_call_operand.vmem [shape: f32[1,32], index: 5, kind: input, shape index: {}]
  %s6 = inlined_call_operand.vmem [shape: f32[1,32], index: 6, kind: input, shape index: {}]
  %s7 = inlined_call_operand.vmem [shape: f32[1,32], index: 7, kind: input, shape index: {}]
  %s8 = inlined_call_operand.vmem [shape: f32[32,128], index: 8, kind: input, shape index: {}]
  %s9 = inlined_call_operand.vmem [shape: f32[1,128], index: 9, kind: input, shape index: {}]
  %s10 = inlined_call_operand.vmem [shape: f32[6,64,128], index: 10, kind: input, shape index: {}]
  %s11 = inlined_call_operand.vmem [shape: f32[6,64,128], index: 11, kind: output, shape index: {}]
  %s12 = sld [smem:[#allocation0]]
  $region77: #{forward.7} parent=0
    _
  %s14 = ssub.s32 1, %s12
  %s15 = scalar_select 0, %s14, %s12
  loop: start=0, step=1, limit=8
  $region2: #{forward.7} parent=0 // loop_pre_header
    _
  $region3: #{forward.7} parent=0 // loop_header
    %s17 = sphi 0, %s21
    %p18 = scmp.ge.s32.totalorder %s17, 8
    %s27 = sphi 0, %s29
    %s30 = sphi 0, %s27
    %s31 = sphi 0, %s30
    %s47 = sphi 0, %s31
    %s53 = sphi 0, %s55
    %s56 = sphi 0, %s53
    %s57 = sphi 0, %s56
    %s73 = sphi 0, %s57
    %s79 = sphi 0, %s81
    %s82 = sphi 0, %s79
    %s83 = sphi 0, %s82
    %s99 = sphi 0, %s83
    %s103 = sphi 0, %s103
    %s105 = sphi 0, %s103
    %s106 = sphi 0, %s105
    %s120 = sphi 0, %s106
    %s124 = sphi 0, %s124
    %s126 = sphi 0, %s124
    %s127 = sphi 0, %s126
    %s141 = sphi 0, %s127
    %s145 = sphi 0, %s145
    %s147 = sphi 0, %s145
    %s148 = sphi 0, %s147
    %s162 = sphi 0, %s148
    %s166 = sphi 0, %s166
    %s168 = sphi 0, %s166
    %s169 = sphi 0, %s168
    %s183 = sphi 0, %s169
    %s187 = sphi 0, %s187
    %s189 = sphi 0, %s187
    %s190 = sphi 0, %s189
    %s204 = sphi 0, %s190
    %s208 = sphi 0, %s208
    %s210 = sphi 0, %s208
    %s211 = sphi 0, %s210
    %s225 = sphi 0, %s211
    %s229 = sphi 0, %s229
    %s231 = sphi 0, %s229
    %s232 = sphi 0, %s231
    %s246 = sphi 0, %s232
    %s252 = sphi 0, %s254
    %s255 = sphi 0, %s252
    %s256 = sphi 0, %s255
    %s272 = sphi 0, %s256
    %s278 = sphi 0, %s280
    %s281 = sphi 0, %s278
    %s282 = sphi 0, %s281
    %s298 = sphi 0, %s282
  $region4: #{forward.7} parent=0 // loop_header_branch
    %20 = sbr.rel (%p18) target = $region8
  $region5: #{forward.7} parent=0 // loop_body
    %s22 = ssub.s32 %s17, 1
    %s23 = ssub.s32 %s17, 2
    %s24 = sadd.s32 %s17, 1
    %s25 = ssub.s32 %s17, %s24
    %p26 = scmp.eq.s32.totalorder %s25, 0
    %s28 = sadd.s32 %s27, 1
    %s29 = scalar_select %p26, %s27, %s28
    %p32 = pneg %p26
    %p33 = scmp.eq.s32.totalorder %s17, 5
    %p34 = por %p32, %p33
    %p35 = scmp.ne.s32.totalorder %s27, %s30
    %p36 = scmp.eq.s32.totalorder %s17, 0
    %p37 = por %p35, %p36
    %p38 = scmp.ne.s32.totalorder %s27, %s30
    %p39 = scmp.eq.s32.totalorder %s22, 5
    %p40 = por %p38, %p39
    %p41 = scmp.ne.s32.totalorder %s30, %s31
    %p42 = scmp.eq.s32.totalorder %s22, 0
    %p43 = por %p41, %p42
    %p44 = scmp.ne.s32.totalorder %s30, %s31
    %p45 = scmp.eq.s32.totalorder %s23, 5
    %p46 = por %p44, %p45
    %p48 = scmp.ne.s32.totalorder %s31, %s47
    %p49 = scmp.eq.s32.totalorder %s23, 0
    %p50 = por %p48, %p49
    %s51 = ssub.s32 %s17, %s24
    %p52 = scmp.eq.s32.totalorder %s51, 0
    %s54 = sadd.s32 %s53, 1
    %s55 = scalar_select %p52, %s53, %s54
    %p58 = pneg %p52
    %p59 = scmp.eq.s32.totalorder %s17, 5
    %p60 = por %p58, %p59
    %p61 = scmp.ne.s32.totalorder %s53, %s56
    %p62 = scmp.eq.s32.totalorder %s17, 0
    %p63 = por %p61, %p62
    %p64 = scmp.ne.s32.totalorder %s53, %s56
    %p65 = scmp.eq.s32.totalorder %s22, 5
    %p66 = por %p64, %p65
    %p67 = scmp.ne.s32.totalorder %s56, %s57
    %p68 = scmp.eq.s32.totalorder %s22, 0
    %p69 = por %p67, %p68
    %p70 = scmp.ne.s32.totalorder %s56, %s57
    %p71 = scmp.eq.s32.totalorder %s23, 5
    %p72 = por %p70, %p71
    %p74 = scmp.ne.s32.totalorder %s57, %s73
    %p75 = scmp.eq.s32.totalorder %s23, 0
    %p76 = por %p74, %p75
    %s77 = ssub.s32 %s17, %s24
    %p78 = scmp.eq.s32.totalorder %s77, 0
    %s80 = sadd.s32 %s79, 1
    %s81 = scalar_select %p78, %s79, %s80
    %p84 = pneg %p78
    %p85 = scmp.eq.s32.totalorder %s17, 5
    %p86 = por %p84, %p85
    %p87 = scmp.ne.s32.totalorder %s79, %s82
    %p88 = scmp.eq.s32.totalorder %s17, 0
    %p89 = por %p87, %p88
    %p90 = scmp.ne.s32.totalorder %s79, %s82
    %p91 = scmp.eq.s32.totalorder %s22, 5
    %p92 = por %p90, %p91
    %p93 = scmp.ne.s32.totalorder %s82, %s83
    %p94 = scmp.eq.s32.totalorder %s22, 0
    %p95 = por %p93, %p94
    %p96 = scmp.ne.s32.totalorder %s82, %s83
    %p97 = scmp.eq.s32.totalorder %s23, 5
    %p98 = por %p96, %p97
    %p100 = scmp.ne.s32.totalorder %s83, %s99
    %p101 = scmp.eq.s32.totalorder %s23, 0
    %p102 = por %p100, %p101
    %s104 = sadd.s32 %s103, 1
    %p107 = scmp.eq.s32.totalorder %s17, 5
    %p108 = scmp.ne.s32.totalorder %s103, %s105
    %p109 = scmp.eq.s32.totalorder %s17, 0
    %p110 = por %p108, %p109
    %p111 = scmp.ne.s32.totalorder %s103, %s105
    %p112 = scmp.eq.s32.totalorder %s22, 5
    %p113 = por %p111, %p112
    %p114 = scmp.ne.s32.totalorder %s105, %s106
    %p115 = scmp.eq.s32.totalorder %s22, 0
    %p116 = por %p114, %p115
    %p117 = scmp.ne.s32.totalorder %s105, %s106
    %p118 = scmp.eq.s32.totalorder %s23, 5
    %p119 = por %p117, %p118
    %p121 = scmp.ne.s32.totalorder %s106, %s120
    %p122 = scmp.eq.s32.totalorder %s23, 0
    %p123 = por %p121, %p122
    %s125 = sadd.s32 %s124, 1
    %p128 = scmp.eq.s32.totalorder %s17, 5
    %p129 = scmp.ne.s32.totalorder %s124, %s126
    %p130 = scmp.eq.s32.totalorder %s17, 0
    %p131 = por %p129, %p130
    %p132 = scmp.ne.s32.totalorder %s124, %s126
    %p133 = scmp.eq.s32.totalorder %s22, 5
    %p134 = por %p132, %p133
    %p135 = scmp.ne.s32.totalorder %s126, %s127
    %p136 = scmp.eq.s32.totalorder %s22, 0
    %p137 = por %p135, %p136
    %p138 = scmp.ne.s32.totalorder %s126, %s127
    %p139 = scmp.eq.s32.totalorder %s23, 5
    %p140 = por %p138, %p139
    %p142 = scmp.ne.s32.totalorder %s127, %s141
    %p143 = scmp.eq.s32.totalorder %s23, 0
    %p144 = por %p142, %p143
    %s146 = sadd.s32 %s145, 1
    %p149 = scmp.eq.s32.totalorder %s17, 5
    %p150 = scmp.ne.s32.totalorder %s145, %s147
    %p151 = scmp.eq.s32.totalorder %s17, 0
    %p152 = por %p150, %p151
    %p153 = scmp.ne.s32.totalorder %s145, %s147
    %p154 = scmp.eq.s32.totalorder %s22, 5
    %p155 = por %p153, %p154
    %p156 = scmp.ne.s32.totalorder %s147, %s148
    %p157 = scmp.eq.s32.totalorder %s22, 0
    %p158 = por %p156, %p157
    %p159 = scmp.ne.s32.totalorder %s147, %s148
    %p160 = scmp.eq.s32.totalorder %s23, 5
    %p161 = por %p159, %p160
    %p163 = scmp.ne.s32.totalorder %s148, %s162
    %p164 = scmp.eq.s32.totalorder %s23, 0
    %p165 = por %p163, %p164
    %s167 = sadd.s32 %s166, 1
    %p170 = scmp.eq.s32.totalorder %s17, 5
    %p171 = scmp.ne.s32.totalorder %s166, %s168
    %p172 = scmp.eq.s32.totalorder %s17, 0
    %p173 = por %p171, %p172
    %p174 = scmp.ne.s32.totalorder %s166, %s168
    %p175 = scmp.eq.s32.totalorder %s22, 5
    %p176 = por %p174, %p175
    %p177 = scmp.ne.s32.totalorder %s168, %s169
    %p178 = scmp.eq.s32.totalorder %s22, 0
    %p179 = por %p177, %p178
    %p180 = scmp.ne.s32.totalorder %s168, %s169
    %p181 = scmp.eq.s32.totalorder %s23, 5
    %p182 = por %p180, %p181
    %p184 = scmp.ne.s32.totalorder %s169, %s183
    %p185 = scmp.eq.s32.totalorder %s23, 0
    %p186 = por %p184, %p185
    %s188 = sadd.s32 %s187, 1
    %p191 = scmp.eq.s32.totalorder %s17, 5
    %p192 = scmp.ne.s32.totalorder %s187, %s189
    %p193 = scmp.eq.s32.totalorder %s17, 0
    %p194 = por %p192, %p193
    %p195 = scmp.ne.s32.totalorder %s187, %s189
    %p196 = scmp.eq.s32.totalorder %s22, 5
    %p197 = por %p195, %p196
    %p198 = scmp.ne.s32.totalorder %s189, %s190
    %p199 = scmp.eq.s32.totalorder %s22, 0
    %p200 = por %p198, %p199
    %p201 = scmp.ne.s32.totalorder %s189, %s190
    %p202 = scmp.eq.s32.totalorder %s23, 5
    %p203 = por %p201, %p202
    %p205 = scmp.ne.s32.totalorder %s190, %s204
    %p206 = scmp.eq.s32.totalorder %s23, 0
    %p207 = por %p205, %p206
    %s209 = sadd.s32 %s208, 1
    %p212 = scmp.eq.s32.totalorder %s17, 5
    %p213 = scmp.ne.s32.totalorder %s208, %s210
    %p214 = scmp.eq.s32.totalorder %s17, 0
    %p215 = por %p213, %p214
    %p216 = scmp.ne.s32.totalorder %s208, %s210
    %p217 = scmp.eq.s32.totalorder %s22, 5
    %p218 = por %p216, %p217
    %p219 = scmp.ne.s32.totalorder %s210, %s211
    %p220 = scmp.eq.s32.totalorder %s22, 0
    %p221 = por %p219, %p220
    %p222 = scmp.ne.s32.totalorder %s210, %s211
    %p223 = scmp.eq.s32.totalorder %s23, 5
    %p224 = por %p222, %p223
    %p226 = scmp.ne.s32.totalorder %s211, %s225
    %p227 = scmp.eq.s32.totalorder %s23, 0
    %p228 = por %p226, %p227
    %s230 = sadd.s32 %s229, 1
    %p233 = scmp.eq.s32.totalorder %s17, 5
    %p234 = scmp.ne.s32.totalorder %s229, %s231
    %p235 = scmp.eq.s32.totalorder %s17, 0
    %p236 = por %p234, %p235
    %p237 = scmp.ne.s32.totalorder %s229, %s231
    %p238 = scmp.eq.s32.totalorder %s22, 5
    %p239 = por %p237, %p238
    %p240 = scmp.ne.s32.totalorder %s231, %s232
    %p241 = scmp.eq.s32.totalorder %s22, 0
    %p242 = por %p240, %p241
    %p243 = scmp.ne.s32.totalorder %s231, %s232
    %p244 = scmp.eq.s32.totalorder %s23, 5
    %p245 = por %p243, %p244
    %p247 = scmp.ne.s32.totalorder %s232, %s246
    %p248 = scmp.eq.s32.totalorder %s23, 0
    %p249 = por %p247, %p248
    %s250 = ssub.s32 %s17, %s24
    %p251 = scmp.eq.s32.totalorder %s250, 0
    %s253 = sadd.s32 %s252, 1
    %s254 = scalar_select %p251, %s252, %s253
    %p257 = pneg %p251
    %p258 = scmp.eq.s32.totalorder %s17, 5
    %p259 = por %p257, %p258
    %p260 = scmp.ne.s32.totalorder %s252, %s255
    %p261 = scmp.eq.s32.totalorder %s17, 0
    %p262 = por %p260, %p261
    %p263 = scmp.ne.s32.totalorder %s252, %s255
    %p264 = scmp.eq.s32.totalorder %s22, 5
    %p265 = por %p263, %p264
    %p266 = scmp.ne.s32.totalorder %s255, %s256
    %p267 = scmp.eq.s32.totalorder %s22, 0
    %p268 = por %p266, %p267
    %p269 = scmp.ne.s32.totalorder %s255, %s256
    %p270 = scmp.eq.s32.totalorder %s23, 5
    %p271 = por %p269, %p270
    %p273 = scmp.ne.s32.totalorder %s256, %s272
    %p274 = scmp.eq.s32.totalorder %s23, 0
    %p275 = por %p273, %p274
    %s276 = ssub.s32 %s17, %s24
    %p277 = scmp.eq.s32.totalorder %s276, 0
    %s279 = sadd.s32 %s278, 1
    %s280 = scalar_select %p277, %s278, %s279
    %p283 = pneg %p277
    %p284 = scmp.eq.s32.totalorder %s17, 5
    %p285 = por %p283, %p284
    %p286 = scmp.ne.s32.totalorder %s278, %s281
    %p287 = scmp.eq.s32.totalorder %s17, 0
    %p288 = por %p286, %p287
    %p289 = scmp.ne.s32.totalorder %s278, %s281
    %p290 = scmp.eq.s32.totalorder %s22, 5
    %p291 = por %p289, %p290
    %p292 = scmp.ne.s32.totalorder %s281, %s282
    %p293 = scmp.eq.s32.totalorder %s22, 0
    %p294 = por %p292, %p293
    %p295 = scmp.ne.s32.totalorder %s281, %s282
    %p296 = scmp.eq.s32.totalorder %s23, 5
    %p297 = por %p295, %p296
    %p299 = scmp.ne.s32.totalorder %s282, %s298
    %p300 = scmp.eq.s32.totalorder %s23, 0
    %p301 = por %p299, %p300
    %p302 = scmp.le.s32.totalorder 1, %s17
    %p303 = scmp.lt.s32.totalorder %s17, 7
    %p304 = pnand %p302, %p303
    %p305 = pneg %p304
    // Predicated region
    $region9: #{forward.7} parent=5 // pred_check
      _
    $region10: #{forward.7} parent=5 // pred_check_branch
      %307 = sbr.rel (%p304) target = $region12
    $region11: #{forward.7} parent=5 // pred_region
      %s308 = ssub.s32 %s17, 1
      // Predicated region
      $region13: #{forward.7} parent=11 // pred_check
        %p309 = pneg %p116
      $region14: #{forward.7} parent=11 // pred_check_branch
        %311 = sbr.rel (%p309) target = $region16
      $region15: #{forward.7} parent=11 // pred_region
        _
      $region16: #{forward.7} parent=11 // pred_fallthru
        _
      // Predicated region
      $region17: #{forward.7} parent=11 // pred_check
        %p312 = pneg %p137
      $region18: #{forward.7} parent=11 // pred_check_branch
        %314 = sbr.rel (%p312) target = $region20
      $region19: #{forward.7} parent=11 // pred_region
        _
      $region20: #{forward.7} parent=11 // pred_fallthru
        _
      // Predicated region
      $region21: #{forward.7} parent=11 // pred_check
        %p315 = pneg %p158
      $region22: #{forward.7} parent=11 // pred_check_branch
        %317 = sbr.rel (%p315) target = $region24
      $region23: #{forward.7} parent=11 // pred_region
        _
      $region24: #{forward.7} parent=11 // pred_fallthru
        _
      // Predicated region
      $region25: #{forward.7} parent=11 // pred_check
        %p318 = pneg %p179
      $region26: #{forward.7} parent=11 // pred_check_branch
        %320 = sbr.rel (%p318) target = $region28
      $region27: #{forward.7} parent=11 // pred_region
        _
      $region28: #{forward.7} parent=11 // pred_fallthru
        _
      // Predicated region
      $region29: #{forward.7} parent=11 // pred_check
        %p321 = pneg %p200
      $region30: #{forward.7} parent=11 // pred_check_branch
        %323 = sbr.rel (%p321) target = $region32
      $region31: #{forward.7} parent=11 // pred_region
        _
      $region32: #{forward.7} parent=11 // pred_fallthru
        _
      // Predicated region
      $region33: #{forward.7} parent=11 // pred_check
        %p324 = pneg %p221
      $region34: #{forward.7} parent=11 // pred_check_branch
        %326 = sbr.rel (%p324) target = $region36
      $region35: #{forward.7} parent=11 // pred_region
        _
      $region36: #{forward.7} parent=11 // pred_fallthru
        _
      // Predicated region
      $region37: #{forward.7} parent=11 // pred_check
        %p327 = pneg %p242
      $region38: #{forward.7} parent=11 // pred_check_branch
        %329 = sbr.rel (%p327) target = $region40
      $region39: #{forward.7} parent=11 // pred_region
        _
      $region40: #{forward.7} parent=11 // pred_fallthru
        _
    $region12: #{forward.7} parent=5 // pred_fallthru
      _
    %p330 = scmp.lt.s32.totalorder %s17, 6
    // Predicated region
    $region41: #{forward.7} parent=5 // pred_check
      %p331 = pneg %p330
    $region42: #{forward.7} parent=5 // pred_check_branch
      %333 = sbr.rel (%p331) target = $region44
    $region43: #{forward.7} parent=5 // pred_region
      // Predicated region
      $region45: #{forward.7} parent=43 // pred_check
        %p334 = pneg %p37
      $region46: #{forward.7} parent=43 // pred_check_branch
        %336 = sbr.rel (%p334) target = $region48
      $region47: #{forward.7} parent=43 // pred_region
        %p337 = scmp.lt.s32.totalorder %s17, 5
        %s338 = scalar_select %p337, %s17, 5
        %s339 = smul.addr %s338, 8
        %s340 = smul.addr %s339, 8
        %s341 = scalar_lea.vmem %s0, %s340
      $region48: #{forward.7} parent=43 // pred_fallthru
        _
      // Predicated region
      $region49: #{forward.7} parent=43 // pred_check
        %p342 = pneg %p63
      $region50: #{forward.7} parent=43 // pred_check_branch
        %344 = sbr.rel (%p342) target = $region52
      $region51: #{forward.7} parent=43 // pred_region
        %p345 = scmp.lt.s32.totalorder %s17, 5
        %s346 = scalar_select %p345, %s17, 5
        %s347 = scalar_lea.vmem %s1, %s346
      $region52: #{forward.7} parent=43 // pred_fallthru
        _
      // Predicated region
      $region53: #{forward.7} parent=43 // pred_check
        %p348 = pneg %p89
      $region54: #{forward.7} parent=43 // pred_check_branch
        %350 = sbr.rel (%p348) target = $region56
      $region55: #{forward.7} parent=43 // pred_region
        %p351 = scmp.lt.s32.totalorder %s17, 5
        %s352 = scalar_select %p351, %s17, 5
        %s353 = smul.addr %s352, 8
        %s354 = smul.addr %s353, 8
        %s355 = scalar_lea.vmem %s2, %s354
      $region56: #{forward.7} parent=43 // pred_fallthru
        _
      // Predicated region
      $region57: #{forward.7} parent=43 // pred_check
        %p356 = pneg %p262
      $region58: #{forward.7} parent=43 // pred_check_branch
        %358 = sbr.rel (%p356) target = $region60
      $region59: #{forward.7} parent=43 // pred_region
        %p359 = scmp.lt.s32.totalorder %s17, 5
        %s360 = scalar_select %p359, %s17, 5
        %s361 = smul.addr %s360, 8
        %s362 = smul.addr %s361, 8
        %s363 = scalar_lea.vmem %s10, %s362
      $region60: #{forward.7} parent=43 // pred_fallthru
        _
    $region44: #{forward.7} parent=5 // pred_fallthru
      _
    %p364 = scmp.le.s32.totalorder 1, %s17
    %p365 = scmp.lt.s32.totalorder %s17, 7
    %p366 = pnand %p364, %p365
    %p367 = pneg %p366
    // Predicated region
    $region61: #{forward.7} parent=5 // pred_check
      _
    $region62: #{forward.7} parent=5 // pred_check_branch
      %369 = sbr.rel (%p366) target = $region64
    $region63: #{forward.7} parent=5 // pred_region
      %s370 = ssub.s32 %s17, 1
      %p371 = scmp.lt.s32.totalorder %s22, 5
      %s372 = scalar_select %p371, %s22, 5
      %s373 = smul.addr %s372, 8
      %s374 = smul.addr %s373, 8
      %s375 = scalar_lea.vmem %s0, %s374
      %p376 = pneg %p43
      %p377 = pneg %p40
      %p378 = scmp.lt.s32.totalorder %s22, 5
      %s379 = scalar_select %p378, %s22, 5
      %s380 = scalar_lea.vmem %s1, %s379
      %p381 = pneg %p69
      %p382 = pneg %p66
      %p383 = scmp.lt.s32.totalorder %s22, 5
      %s384 = scalar_select %p383, %s22, 5
      %s385 = smul.addr %s384, 8
      %s386 = smul.addr %s385, 8
      %s387 = scalar_lea.vmem %s2, %s386
      %p388 = pneg %p95
      %p389 = pneg %p92
      %p390 = pneg %p116
      %p391 = pneg %p113
      %p392 = pneg %p137
      %p393 = pneg %p134
      %p394 = pneg %p158
      %p395 = pneg %p155
      %p396 = pneg %p179
      %p397 = pneg %p176
      %p398 = pneg %p200
      %p399 = pneg %p197
      %p400 = pneg %p221
      %p401 = pneg %p218
      %p402 = pneg %p242
      %p403 = pneg %p239
      %p404 = scmp.lt.s32.totalorder %s22, 5
      %s405 = scalar_select %p404, %s22, 5
      %s406 = smul.addr %s405, 8
      %s407 = smul.addr %s406, 8
      %s408 = scalar_lea.vmem %s10, %s407
      %p409 = pneg %p268
      %p410 = pneg %p265
      %p411 = pneg %p294
      %p412 = pneg %p291
      %p413 = scmp.lt.s32.totalorder %s22, 5
      %s414 = scalar_select %p413, %s22, 5
      %s415 = smul.addr %s414, 8
      %s416 = smul.addr %s415, 8
      %s417 = scalar_lea.vmem %s11, %s416
      %p418 = scmp.lt.s32.totalorder %s22, 5
      %s419 = scalar_select %p418, %s22, 5
      %s420 = smul.addr %s419, 8
      %s421 = smul.addr %s420, 8
      %s422 = scalar_lea.vmem %s0, %s421
      %p423 = scmp.lt.s32.totalorder %s22, 5
      %s424 = scalar_select %p423, %s22, 5
      %s425 = scalar_lea.vmem %s1, %s424
      %p426 = scmp.lt.s32.totalorder %s22, 5
      %s427 = scalar_select %p426, %s22, 5
      %s428 = smul.addr %s427, 8
      %s429 = smul.addr %s428, 8
      %s430 = scalar_lea.vmem %s2, %s429
      %p431 = scmp.lt.s32.totalorder %s22, 5
      %s432 = scalar_select %p431, %s22, 5
      %s433 = smul.addr %s432, 8
      %s434 = smul.addr %s433, 8
      %s435 = scalar_lea.vmem %s10, %s434
      %p436 = scmp.lt.s32.totalorder %s22, 5
      %s437 = scalar_select %p436, %s22, 5
      %s438 = smul.addr %s437, 8
      %s439 = smul.addr %s438, 8
      %s440 = scalar_lea.vmem %s11, %s439
      %v441 = vld [vmem:[%s422] sm:$0xff]
      %v442 = vld [vmem:[%s422 + $0x8] sm:$0xff]
      %v443 = vld [vmem:[%s422 + $0x10] sm:$0xff]
      %v444 = vld [vmem:[%s422 + $0x18] sm:$0xff]
      %v445 = vld [vmem:[%s422 + $0x20] sm:$0xff]
      %v446 = vld [vmem:[%s422 + $0x28] sm:$0xff]
      %v447 = vld [vmem:[%s422 + $0x30] sm:$0xff]
      %v448 = vld [vmem:[%s422 + $0x38] sm:$0xff]
      %vm449 = vcmask 56320
      %v451 = vsel %vm449, %v441, 0
      %v454 = vsel %vm449, %v442, 0
      %v457 = vsel %vm449, %v443, 0
      %v460 = vsel %vm449, %v444, 0
      %v463 = vsel %vm449, %v445, 0
      %v466 = vsel %vm449, %v446, 0
      %v469 = vsel %vm449, %v447, 0
      %v472 = vsel %vm449, %v448, 0
      %474 = vmatprep.subr.mxu0 0.0
      %475 = vmatpush1.xpose.msra.mxu0 %v451
      %476 = vmatprep.subr.mxu0 0.0
      %477 = vmatpush1.xpose.msra.mxu0 %v454
      %478 = vmatprep.subr.mxu0 0.0
      %479 = vmatpush1.xpose.msra.mxu0 %v457
      %480 = vmatprep.subr.mxu0 0.0
      %481 = vmatpush1.xpose.msra.mxu0 %v460
      %482 = vmatprep.subr.mxu0 0.0
      %483 = vmatpush1.xpose.msra.mxu0 %v463
      %484 = vmatprep.subr.mxu0 0.0
      %485 = vmatpush1.xpose.msra.mxu0 %v466
      %486 = vmatprep.subr.mxu0 0.0
      %487 = vmatpush1.xpose.msra.mxu0 %v469
      %488 = vmatprep.subr.mxu0 0.0
      %489 = vmatpush1.xpose.msra.mxu0 %v472
      %490 = vmatprep.subr.mxu0 0.0
      %491 = vmatpush1.xpose.msra.mxu0 0.0
      %492 = vmatprep.subr.mxu0 0.0
      %493 = vmatpush1.xpose.msra.mxu0 0.0
      %494 = vmatprep.subr.mxu0 0.0
      %495 = vmatpush1.xpose.msra.mxu0 0.0
      %496 = vmatprep.subr.mxu0 0.0
      %497 = vmatpush1.xpose.msra.mxu0 0.0
      %498 = vmatprep.subr.mxu0 0.0
      %499 = vmatpush1.xpose.msra.mxu0 0.0
      %500 = vmatprep.subr.mxu0 0.0
      %501 = vmatpush1.xpose.msra.mxu0 0.0
      %502 = vmatprep.subr.mxu0 0.0
      %503 = vmatpush1.xpose.msra.mxu0 0.0
      %504 = vmatprep.subr.mxu0 0.0
      %505 = vmatpush1.xpose.msra.mxu0 0.0
      %506 = vmatprep.subr.mxu0 0.0
      %507 = vmatpush1.xpose.msra.mxu0 0.0
      %508 = vmatprep.subr.mxu0 0.0
      %509 = vmatpush1.xpose.msra.mxu0 0.0
      %510 = vmatprep.subr.mxu0 0.0
      %511 = vmatpush1.xpose.msra.mxu0 0.0
      %512 = vmatprep.subr.mxu0 0.0
      %513 = vmatpush1.xpose.msra.mxu0 0.0
      %514 = vmatprep.subr.mxu0 0.0
      %515 = vmatpush1.xpose.msra.mxu0 0.0
      %516 = vmatprep.subr.mxu0 0.0
      %517 = vmatpush1.xpose.msra.mxu0 0.0
      %518 = vmatprep.subr.mxu0 0.0
      %519 = vmatpush1.xpose.msra.mxu0 0.0
      %520 = vmatprep.subr.mxu0 0.0
      %521 = vmatpush1.xpose.msra.mxu0 0.0
      %522 = vmatprep.subr.mxu0 0.0
      %523 = vmatpush1.xpose.msra.mxu0 0.0
      %524 = vmatprep.subr.mxu0 0.0
      %525 = vmatpush1.xpose.msra.mxu0 0.0
      %526 = vmatprep.subr.mxu0 0.0
      %527 = vmatpush1.xpose.msra.mxu0 0.0
      %528 = vmatprep.subr.mxu0 0.0
      %529 = vmatpush1.xpose.msra.mxu0 0.0
      %530 = vmatprep.subr.mxu0 0.0
      %531 = vmatpush1.xpose.msra.mxu0 0.0
      %532 = vmatprep.subr.mxu0 0.0
      %533 = vmatpush1.xpose.msra.mxu0 0.0
      %534 = vmatprep.subr.mxu0 0.0
      %535 = vmatpush1.xpose.msra.mxu0 0.0
      %536 = vmatprep.subr.mxu0 0.0
      %537 = vmatpush1.xpose.msra.mxu0 0.0
      %538 = vmatprep.mubr.f32.mxu0 0.0
      %539 = vmatmul.mubr.f32.gmra.mrb[0].mxu0 %v451
      %v540 = vpop.f32.mrb[0].mxu0
      %v541 = vadd.f32 0.0, %v540
      %v542 = vpop.f32.mrb[0].mxu0
      %543 = vmatprep.mubr.f32.mxu0 0.0
      %544 = vmatmul.mubr.f32.gmra.mrb[0].mxu0 %v454
      %v545 = vpop.f32.mrb[0].mxu0
      %v546 = vadd.f32 0.0, %v545
      %v547 = vpop.f32.mrb[0].mxu0
      %548 = vmatprep.mubr.f32.mxu0 0.0
      %549 = vmatmul.mubr.f32.gmra.mrb[0].mxu0 %v457
      %v550 = vpop.f32.mrb[0].mxu0
      %v551 = vadd.f32 0.0, %v550
      %v552 = vpop.f32.mrb[0].mxu0
      %553 = vmatprep.mubr.f32.mxu0 0.0
      %554 = vmatmul.mubr.f32.gmra.mrb[0].mxu0 %v460
      %v555 = vpop.f32.mrb[0].mxu0
      %v556 = vadd.f32 0.0, %v555
      %v557 = vpop.f32.mrb[0].mxu0
      %558 = vmatprep.mubr.f32.mxu0 0.0
      %559 = vmatmul.mubr.f32.gmra.mrb[0].mxu0 %v463
      %v560 = vpop.f32.mrb[0].mxu0
      %v561 = vadd.f32 0.0, %v560
      %v562 = vpop.f32.mrb[0].mxu0
      %563 = vmatprep.mubr.f32.mxu0 0.0
      %564 = vmatmul.mubr.f32.gmra.mrb[0].mxu0 %v466
      %v565 = vpop.f32.mrb[0].mxu0
      %v566 = vadd.f32 0.0, %v565
      %v567 = vpop.f32.mrb[0].mxu0
      %568 = vmatprep.mubr.f32.mxu0 0.0
      %569 = vmatmul.mubr.f32.gmra.mrb[0].mxu0 %v469
      %v570 = vpop.f32.mrb[0].mxu0
      %v571 = vadd.f32 0.0, %v570
      %v572 = vpop.f32.mrb[0].mxu0
      %573 = vmatprep.mubr.f32.mxu0 0.0
      %574 = vmatmul.mubr.f32.gmra.mrb[0].mxu0 %v472
      %v575 = vpop.f32.mrb[0].mxu0
      %v576 = vadd.f32 0.0, %v575
      %v577 = vpop.f32.mrb[0].mxu0
      %578 = vdwg.mxu0
      %v579 = vmax.f32 %v541, 0.0
      %v580 = vmax.f32 %v546, 0.0
      %v581 = vmax.f32 %v551, 0.0
      %v582 = vmax.f32 %v556, 0.0
      %v583 = vmax.f32 %v561, 0.0
      %v584 = vmax.f32 %v566, 0.0
      %v585 = vmax.f32 %v571, 0.0
      %v586 = vmax.f32 %v576, 0.0
      %v587 = vmul.f32 %v441, %v441
      %v588 = vmul.f32 %v442, %v442
      %v589 = vmul.f32 %v443, %v443
      %v590 = vmul.f32 %v444, %v444
      %v591 = vmul.f32 %v445, %v445
      %v592 = vmul.f32 %v446, %v446
      %v593 = vmul.f32 %v447, %v447
      %v594 = vmul.f32 %v448, %v448
      %v595 = vsel %vm449, %v587, 0.0
      %596 = vadd.xlane.f32.xlu0 %v595
      %v597 = vpop.xlane.xlu0 %596
      %v598 = vsel %vm449, %v588, 0.0
      %599 = vadd.xlane.f32.xlu0 %v598
      %v600 = vpop.xlane.xlu0 %599
      %v601 = vsel %vm449, %v589, 0.0
      %602 = vadd.xlane.f32.xlu0 %v601
      %v603 = vpop.xlane.xlu0 %602
      %v604 = vsel %vm449, %v590, 0.0
      %605 = vadd.xlane.f32.xlu0 %v604
      %v606 = vpop.xlane.xlu0 %605
      %v607 = vsel %vm449, %v591, 0.0
      %608 = vadd.xlane.f32.xlu0 %v607
      %v609 = vpop.xlane.xlu0 %608
      %v610 = vsel %vm449, %v592, 0.0
      %611 = vadd.xlane.f32.xlu0 %v610
      %v612 = vpop.xlane.xlu0 %611
      %v613 = vsel %vm449, %v593, 0.0
      %614 = vadd.xlane.f32.xlu0 %v613
      %v615 = vpop.xlane.xlu0 %614
      %v616 = vsel %vm449, %v594, 0.0
      %617 = vadd.xlane.f32.xlu0 %v616
      %v618 = vpop.xlane.xlu0 %617
      %v619 = vld [vmem:[%s3] sm:$0xff]
      %v620 = vld [vmem:[%s3 + $0x8] sm:$0xff]
      %v621 = vld [vmem:[%s3 + $0x10] sm:$0xff]
      %v622 = vld [vmem:[%s3 + $0x18] sm:$0xff]
      %v623 = vld [vmem:[%s3 + $0x20] sm:$0xff]
      %v624 = vld [vmem:[%s3 + $0x28] sm:$0xff]
      %v625 = vld [vmem:[%s3 + $0x30] sm:$0xff]
      %v626 = vld [vmem:[%s3 + $0x38] sm:$0xff]
      %v627 = vld [vmem:[%s425] sm:$0x1]
      %v629 = vlaneseq
      %v630 = vshrl.u32 %v629, 7
      %v631 = vsub.s32 0, %v630
      %v632 = vrot.slane %v627, %v631
      %v634 = vmul.f32 %v632, %v597
      %v635 = vmul.f32 %v632, %v600
      %v636 = vmul.f32 %v632, %v603
      %v637 = vmul.f32 %v632, %v606
      %v638 = vmul.f32 %v632, %v609
      %v639 = vmul.f32 %v632, %v612
      %v640 = vmul.f32 %v632, %v615
      %v641 = vmul.f32 %v632, %v618
      %643 = vset.pattern.permute.xlu0 0
      %644 = vperm.xlu0 %643, %v634
      %v645 = vpop.permute.xlu0 %644
      %648 = vset.pattern.permute.xlu0 0
      %649 = vperm.xlu0 %648, %v635
      %v650 = vpop.permute.xlu0 %649
      %653 = vset.pattern.permute.xlu0 0
      %654 = vperm.xlu0 %653, %v636
      %v655 = vpop.permute.xlu0 %654
      %658 = vset.pattern.permute.xlu0 0
      %659 = vperm.xlu0 %658, %v637
      %v660 = vpop.permute.xlu0 %659
      %663 = vset.pattern.permute.xlu0 0
      %664 = vperm.xlu0 %663, %v638
      %v665 = vpop.permute.xlu0 %664
      %668 = vset.pattern.permute.xlu0 0
      %669 = vperm.xlu0 %668, %v639
      %v670 = vpop.permute.xlu0 %669
      %673 = vset.pattern.permute.xlu0 0
      %674 = vperm.xlu0 %673, %v640
      %v675 = vpop.permute.xlu0 %674
      %678 = vset.pattern.permute.xlu0 0
      %679 = vperm.xlu0 %678, %v641
      %v680 = vpop.permute.xlu0 %679
      %v682 = vmul.f32 %v645, %v619
      %v683 = vmul.f32 %v650, %v620
      %v684 = vmul.f32 %v655, %v621
      %v685 = vmul.f32 %v660, %v622
      %v686 = vmul.f32 %v665, %v623
      %v687 = vmul.f32 %v670, %v624
      %v688 = vmul.f32 %v675, %v625
      %v689 = vmul.f32 %v680, %v626
      %v690 = vadd.f32 %v579, %v682
      %v691 = vadd.f32 %v580, %v683
      %v692 = vadd.f32 %v581, %v684
      %v693 = vadd.f32 %v582, %v685
      %v694 = vadd.f32 %v583, %v686
      %v695 = vadd.f32 %v584, %v687
      %v696 = vadd.f32 %v585, %v688
      %v697 = vadd.f32 %v586, %v689
      %v698 = vadd.f32 %v690, %v619
      %v699 = vadd.f32 %v691, %v620
      %v700 = vadd.f32 %v692, %v621
      %v701 = vadd.f32 %v693, %v622
      %v702 = vadd.f32 %v694, %v623
      %v703 = vadd.f32 %v695, %v624
      %v704 = vadd.f32 %v696, %v625
      %v705 = vadd.f32 %v697, %v626
      %vm706 = vcmask 523264
      %v707 = vsel %vm706, %v698, 0.0
      %708 = vadd.xlane.f32.xlu0 %v707
      %v709 = vpop.xlane.xlu0 %708
      %v710 = vsel %vm706, %v699, 0.0
      %711 = vadd.xlane.f32.xlu0 %v710
      %v712 = vpop.xlane.xlu0 %711
      %v713 = vsel %vm706, %v700, 0.0
      %714 = vadd.xlane.f32.xlu0 %v713
      %v715 = vpop.xlane.xlu0 %714
      %v716 = vsel %vm706, %v701, 0.0
      %717 = vadd.xlane.f32.xlu0 %v716
      %v718 = vpop.xlane.xlu0 %717
      %v719 = vsel %vm706, %v702, 0.0
      %720 = vadd.xlane.f32.xlu0 %v719
      %v721 = vpop.xlane.xlu0 %720
      %v722 = vsel %vm706, %v703, 0.0
      %723 = vadd.xlane.f32.xlu0 %v722
      %v724 = vpop.xlane.xlu0 %723
      %v725 = vsel %vm706, %v704, 0.0
      %726 = vadd.xlane.f32.xlu0 %v725
      %v727 = vpop.xlane.xlu0 %726
      %v728 = vsel %vm706, %v705, 0.0
      %729 = vadd.xlane.f32.xlu0 %v728
      %v730 = vpop.xlane.xlu0 %729
      %v731 = vadd.f32 %v707, %v710
      %v732 = vadd.f32 %v731, %v713
      %v733 = vadd.f32 %v732, %v716
      %v734 = vadd.f32 %v733, %v719
      %v735 = vadd.f32 %v734, %v722
      %v736 = vadd.f32 %v735, %v725
      %v737 = vadd.f32 %v736, %v728
      %v738 = vrot.slane %v737, 4
      %v739 = vadd.f32 %v737, %v738
      %v740 = vrot.slane %v739, 2
      %v741 = vadd.f32 %v739, %v740
      %v742 = vrot.slane %v741, 1
      %v743 = vadd.f32 %v741, %v742
      %v744 = vadd.f32 %v709, 1e-05
      %v745 = vadd.f32 %v712, 1e-05
      %v746 = vadd.f32 %v715, 1e-05
      %v747 = vadd.f32 %v718, 1e-05
      %v748 = vadd.f32 %v721, 1e-05
      %v749 = vadd.f32 %v724, 1e-05
      %v750 = vadd.f32 %v727, 1e-05
      %v751 = vadd.f32 %v730, 1e-05
      %v752 = vrsqrt.pop %v744
      %v753 = vrsqrt.pop %v745
      %v754 = vrsqrt.pop %v746
      %v755 = vrsqrt.pop %v747
      %v756 = vrsqrt.pop %v748
      %v757 = vrsqrt.pop %v749
      %v758 = vrsqrt.pop %v750
      %v759 = vrsqrt.pop %v751
      %v760 = vmul.f32 %v752, %v698
      %v761 = vmul.f32 %v753, %v699
      %v762 = vmul.f32 %v754, %v700
      %v763 = vmul.f32 %v755, %v701
      %v764 = vmul.f32 %v756, %v702
      %v765 = vmul.f32 %v757, %v703
      %v766 = vmul.f32 %v758, %v704
      %v767 = vmul.f32 %v759, %v705
      %v768 = vadd.f32 %v743, 1e-05
      %v769 = vrsqrt.pop %v768
      %v770 = vmul.f32 %v760, %v769
      %v771 = vmul.f32 %v761, %v769
      %v772 = vmul.f32 %v762, %v769
      %v773 = vmul.f32 %v763, %v769
      %v774 = vmul.f32 %v764, %v769
      %v775 = vmul.f32 %v765, %v769
      %v776 = vmul.f32 %v766, %v769
      %v777 = vmul.f32 %v767, %v769
      %v778 = vld [vmem:[%s430] sm:$0xff]
      %v779 = vld [vmem:[%s430 + $0x8] sm:$0xff]
      %v780 = vld [vmem:[%s430 + $0x10] sm:$0xff]
      %v781 = vld [vmem:[%s430 + $0x18] sm:$0xff]
      %v782 = vld [vmem:[%s430 + $0x20] sm:$0xff]
      %v783 = vld [vmem:[%s430 + $0x28] sm:$0xff]
      %v784 = vld [vmem:[%s430 + $0x30] sm:$0xff]
      %v785 = vld [vmem:[%s430 + $0x38] sm:$0xff]
      %v787 = vsel %vm706, %v770, 0
      %v790 = vsel %vm706, %v771, 0
      %v793 = vsel %vm706, %v772, 0
      %v796 = vsel %vm706, %v773, 0
      %v799 = vsel %vm706, %v774, 0
      %v802 = vsel %vm706, %v775, 0
      %v805 = vsel %vm706, %v776, 0
      %v808 = vsel %vm706, %v777, 0
      %810 = vmatprep.subr.mxu0 0.0
      %811 = vmatpush1.msra.mxu0 %v778
      %812 = vmatprep.subr.mxu0 0.0
      %813 = vmatpush1.msra.mxu0 %v779
      %814 = vmatprep.subr.mxu0 0.0
      %815 = vmatpush1.msra.mxu0 %v780
      %816 = vmatprep.subr.mxu0 0.0
      %817 = vmatpush1.msra.mxu0 %v781
      %818 = vmatprep.subr.mxu0 0.0
      %819 = vmatpush1.msra.mxu0 %v782
      %820 = vmatprep.subr.mxu0 0.0
      %821 = vmatpush1.msra.mxu0 %v783
      %822 = vmatprep.subr.mxu0 0.0
      %823 = vmatpush1.msra.mxu0 %v784
      %824 = vmatprep.subr.mxu0 0.0
      %825 = vmatpush1.msra.mxu0 %v785
      %826 = vmatprep.subr.mxu0 0.0
      %827 = vmatpush1.msra.mxu0 0.0
      %828 = vmatprep.subr.mxu0 0.0
      %829 = vmatpush1.msra.mxu0 0.0
      %830 = vmatprep.subr.mxu0 0.0
      %831 = vmatpush1.msra.mxu0 0.0
      %832 = vmatprep.subr.mxu0 0.0
      %833 = vmatpush1.msra.mxu0 0.0
      %834 = vmatprep.subr.mxu0 0.0
      %835 = vmatpush1.msra.mxu0 0.0
      %836 = vmatprep.subr.mxu0 0.0
      %837 = vmatpush1.msra.mxu0 0.0
      %838 = vmatprep.subr.mxu0 0.0
      %839 = vmatpush1.msra.mxu0 0.0
      %840 = vmatprep.subr.mxu0 0.0
      %841 = vmatpush1.msra.mxu0 0.0
      %842 = vmatprep.subr.mxu0 0.0
      %843 = vmatpush1.msra.mxu0 0.0
      %844 = vmatprep.subr.mxu0 0.0
      %845 = vmatpush1.msra.mxu0 0.0
      %846 = vmatprep.subr.mxu0 0.0
      %847 = vmatpush1.msra.mxu0 0.0
      %848 = vmatprep.subr.mxu0 0.0
      %849 = vmatpush1.msra.mxu0 0.0
      %850 = vmatprep.subr.mxu0 0.0
      %851 = vmatpush1.msra.mxu0 0.0
      %852 = vmatprep.subr.mxu0 0.0
      %853 = vmatpush1.msra.mxu0 0.0
      %854 = vmatprep.subr.mxu0 0.0
      %855 = vmatpush1.msra.mxu0 0.0
      %856 = vmatprep.subr.mxu0 0.0
      %857 = vmatpush1.msra.mxu0 0.0
      %858 = vmatprep.subr.mxu0 0.0
      %859 = vmatpush1.msra.mxu0 0.0
      %860 = vmatprep.subr.mxu0 0.0
      %861 = vmatpush1.msra.mxu0 0.0
      %862 = vmatprep.subr.mxu0 0.0
      %863 = vmatpush1.msra.mxu0 0.0
      %864 = vmatprep.subr.mxu0 0.0
      %865 = vmatpush1.msra.mxu0 0.0
      %866 = vmatprep.subr.mxu0 0.0
      %867 = vmatpush1.msra.mxu0 0.0
      %868 = vmatprep.subr.mxu0 0.0
      %869 = vmatpush1.msra.mxu0 0.0
      %870 = vmatprep.subr.mxu0 0.0
      %871 = vmatpush1.msra.mxu0 0.0
      %872 = vmatprep.subr.mxu0 0.0
      %873 = vmatpush1.msra.mxu0 0.0
      %874 = vmatprep.mubr.f32.mxu0 0.0
      %875 = vmatmul.mubr.f32.gmra.mrb[0].mxu0 %v787
      %v876 = vpop.f32.mrb[0].mxu0
      %v877 = vadd.f32 0.0, %v876
      %v878 = vpop.f32.mrb[0].mxu0
      %879 = vmatprep.mubr.f32.mxu0 0.0
      %880 = vmatmul.mubr.f32.gmra.mrb[0].mxu0 %v790
      %v881 = vpop.f32.mrb[0].mxu0
      %v882 = vadd.f32 0.0, %v881
      %v883 = vpop.f32.mrb[0].mxu0
      %884 = vmatprep.mubr.f32.mxu0 0.0
      %885 = vmatmul.mubr.f32.gmra.mrb[0].mxu0 %v793
      %v886 = vpop.f32.mrb[0].mxu0
      %v887 = vadd.f32 0.0, %v886
      %v888 = vpop.f32.mrb[0].mxu0
      %889 = vmatprep.mubr.f32.mxu0 0.0
      %890 = vmatmul.mubr.f32.gmra.mrb[0].mxu0 %v796
      %v891 = vpop.f32.mrb[0].mxu0
      %v892 = vadd.f32 0.0, %v891
      %v893 = vpop.f32.mrb[0].mxu0
      %894 = vmatprep.mubr.f32.mxu0 0.0
      %895 = vmatmul.mubr.f32.gmra.mrb[0].mxu0 %v799
      %v896 = vpop.f32.mrb[0].mxu0
      %v897 = vadd.f32 0.0, %v896
      %v898 = vpop.f32.mrb[0].mxu0
      %899 = vmatprep.mubr.f32.mxu0 0.0
      %900 = vmatmul.mubr.f32.gmra.mrb[0].mxu0 %v802
      %v901 = vpop.f32.mrb[0].mxu0
      %v902 = vadd.f32 0.0, %v901
      %v903 = vpop.f32.mrb[0].mxu0
      %904 = vmatprep.mubr.f32.mxu0 0.0
      %905 = vmatmul.mubr.f32.gmra.mrb[0].mxu0 %v805
      %v906 = vpop.f32.mrb[0].mxu0
      %v907 = vadd.f32 0.0, %v906
      %v908 = vpop.f32.mrb[0].mxu0
      %909 = vmatprep.mubr.f32.mxu0 0.0
      %910 = vmatmul.mubr.f32.gmra.mrb[0].mxu0 %v808
      %v911 = vpop.f32.mrb[0].mxu0
      %v912 = vadd.f32 0.0, %v911
      %v913 = vpop.f32.mrb[0].mxu0
      %914 = vdwg.mxu0
      %v915 = vld [vmem:[%s4] sm:$0xff]
      %v916 = vld [vmem:[%s4 + $0x8] sm:$0xff]
      %v917 = vld [vmem:[%s4 + $0x10] sm:$0xff]
      %v918 = vld [vmem:[%s4 + $0x18] sm:$0xff]
      %v919 = vld [vmem:[%s4 + $0x20] sm:$0xff]
      %v920 = vld [vmem:[%s4 + $0x28] sm:$0xff]
      %v921 = vld [vmem:[%s4 + $0x30] sm:$0xff]
      %v922 = vld [vmem:[%s4 + $0x38] sm:$0xff]
      %v923 = vld [vmem:[%s5] sm:$0x1]
      %v925 = vlaneseq
      %v926 = vshrl.u32 %v925, 7
      %v927 = vsub.s32 0, %v926
      %v928 = vrot.slane %v923, %v927
      %v931 = vsel %vm706, %v877, 0
      %v934 = vsel %vm706, %v882, 0
      %v937 = vsel %vm706, %v887, 0
      %v940 = vsel %vm706, %v892, 0
      %v943 = vsel %vm706, %v897, 0
      %v946 = vsel %vm706, %v902, 0
      %v949 = vsel %vm706, %v907, 0
      %v952 = vsel %vm706, %v912, 0
      %954 = vmatprep.subr.mxu0 0.0
      %955 = vmatpush1.msra.mxu0 %v915
      %956 = vmatprep.subr.mxu0 0.0
      %957 = vmatpush1.msra.mxu0 %v916
      %958 = vmatprep.subr.mxu0 0.0
      %959 = vmatpush1.msra.mxu0 %v917
      %960 = vmatprep.subr.mxu0 0.0
      %961 = vmatpush1.msra.mxu0 %v918
      %962 = vmatprep.subr.mxu0 0.0
      %963 = vmatpush1.msra.mxu0 %v919
      %964 = vmatprep.subr.mxu0 0.0
      %965 = vmatpush1.msra.mxu0 %v920
      %966 = vmatprep.subr.mxu0 0.0
      %967 = vmatpush1.msra.mxu0 %v921
      %968 = vmatprep.subr.mxu0 0.0
      %969 = vmatpush1.msra.mxu0 %v922
      %970 = vmatprep.subr.mxu0 0.0
      %971 = vmatpush1.msra.mxu0 0.0
      %972 = vmatprep.subr.mxu0 0.0
      %973 = vmatpush1.msra.mxu0 0.0
      %974 = vmatprep.subr.mxu0 0.0
      %975 = vmatpush1.msra.mxu0 0.0
      %976 = vmatprep.subr.mxu0 0.0
      %977 = vmatpush1.msra.mxu0 0.0
      %978 = vmatprep.subr.mxu0 0.0
      %979 = vmatpush1.msra.mxu0 0.0
      %980 = vmatprep.subr.mxu0 0.0
      %981 = vmatpush1.msra.mxu0 0.0
      %982 = vmatprep.subr.mxu0 0.0
      %983 = vmatpush1.msra.mxu0 0.0
      %984 = vmatprep.subr.mxu0 0.0
      %985 = vmatpush1.msra.mxu0 0.0
      %986 = vmatprep.subr.mxu0 0.0
      %987 = vmatpush1.msra.mxu0 0.0
      %988 = vmatprep.subr.mxu0 0.0
      %989 = vmatpush1.msra.mxu0 0.0
      %990 = vmatprep.subr.mxu0 0.0
      %991 = vmatpush1.msra.mxu0 0.0
      %992 = vmatprep.subr.mxu0 0.0
      %993 = vmatpush1.msra.mxu0 0.0
      %994 = vmatprep.subr.mxu0 0.0
      %995 = vmatpush1.msra.mxu0 0.0
      %996 = vmatprep.subr.mxu0 0.0
      %997 = vmatpush1.msra.mxu0 0.0
      %998 = vmatprep.subr.mxu0 0.0
      %999 = vmatpush1.msra.mxu0 0.0
      %1000 = vmatprep.subr.mxu0 0.0
      %1001 = vmatpush1.msra.mxu0 0.0
      %1002 = vmatprep.subr.mxu0 0.0
      %1003 = vmatpush1.msra.mxu0 0.0
      %1004 = vmatprep.subr.mxu0 0.0
      %1005 = vmatpush1.msra.mxu0 0.0
      %1006 = vmatprep.subr.mxu0 0.0
      %1007 = vmatpush1.msra.mxu0 0.0
      %1008 = vmatprep.subr.mxu0 0.0
      %1009 = vmatpush1.msra.mxu0 0.0
      %1010 = vmatprep.subr.mxu0 0.0
      %1011 = vmatpush1.msra.mxu0 0.0
      %1012 = vmatprep.subr.mxu0 0.0
      %1013 = vmatpush1.msra.mxu0 0.0
      %1014 = vmatprep.subr.mxu0 0.0
      %1015 = vmatpush1.msra.mxu0 0.0
      %1016 = vmatprep.subr.mxu0 0.0
      %1017 = vmatpush1.msra.mxu0 0.0
      %1018 = vmatprep.mubr.f32.mxu0 0.0
      %1019 = vmatmul.mubr.f32.gmra.mrb[0].mxu0 %v931
      %v1020 = vpop.f32.mrb[0].mxu0
      %v1021 = vadd.f32 %v928, %v1020
      %v1022 = vpop.f32.mrb[0].mxu0
      %1023 = vmatprep.mubr.f32.mxu0 0.0
      %1024 = vmatmul.mubr.f32.gmra.mrb[0].mxu0 %v934
      %v1025 = vpop.f32.mrb[0].mxu0
      %v1026 = vadd.f32 %v928, %v1025
      %v1027 = vpop.f32.mrb[0].mxu0
      %1028 = vmatprep.mubr.f32.mxu0 0.0
      %1029 = vmatmul.mubr.f32.gmra.mrb[0].mxu0 %v937
      %v1030 = vpop.f32.mrb[0].mxu0
      %v1031 = vadd.f32 %v928, %v1030
      %v1032 = vpop.f32.mrb[0].mxu0
      %1033 = vmatprep.mubr.f32.mxu0 0.0
      %1034 = vmatmul.mubr.f32.gmra.mrb[0].mxu0 %v940
      %v1035 = vpop.f32.mrb[0].mxu0
      %v1036 = vadd.f32 %v928, %v1035
      %v1037 = vpop.f32.mrb[0].mxu0
      %1038 = vmatprep.mubr.f32.mxu0 0.0
      %1039 = vmatmul.mubr.f32.gmra.mrb[0].mxu0 %v943
      %v1040 = vpop.f32.mrb[0].mxu0
      %v1041 = vadd.f32 %v928, %v1040
      %v1042 = vpop.f32.mrb[0].mxu0
      %1043 = vmatprep.mubr.f32.mxu0 0.0
      %1044 = vmatmul.mubr.f32.gmra.mrb[0].mxu0 %v946
      %v1045 = vpop.f32.mrb[0].mxu0
      %v1046 = vadd.f32 %v928, %v1045
      %v1047 = vpop.f32.mrb[0].mxu0
      %1048 = vmatprep.mubr.f32.mxu0 0.0
      %1049 = vmatmul.mubr.f32.gmra.mrb[0].mxu0 %v949
      %v1050 = vpop.f32.mrb[0].mxu0
      %v1051 = vadd.f32 %v928, %v1050
      %v1052 = vpop.f32.mrb[0].mxu0
      %1053 = vmatprep.mubr.f32.mxu0 0.0
      %1054 = vmatmul.mubr.f32.gmra.mrb[0].mxu0 %v952
      %v1055 = vpop.f32.mrb[0].mxu0
      %v1056 = vadd.f32 %v928, %v1055
      %v1057 = vpop.f32.mrb[0].mxu0
      %1058 = vdwg.mxu0
      %v1059 = vld [vmem:[%s6] sm:$0x1]
      %v1061 = vlaneseq
      %v1062 = vshrl.u32 %v1061, 7
      %v1063 = vsub.s32 0, %v1062
      %v1064 = vrot.slane %v1059, %v1063
      %v1066 = vmul.f32 %v1021, %v1064
      %v1067 = vmul.f32 %v1026, %v1064
      %v1068 = vmul.f32 %v1031, %v1064
      %v1069 = vmul.f32 %v1036, %v1064
      %v1070 = vmul.f32 %v1041, %v1064
      %v1071 = vmul.f32 %v1046, %v1064
      %v1072 = vmul.f32 %v1051, %v1064
      %v1073 = vmul.f32 %v1056, %v1064
      %v1074 = vld [vmem:[%s7] sm:$0x1]
      %v1076 = vlaneseq
      %v1077 = vshrl.u32 %v1076, 7
      %v1078 = vsub.s32 0, %v1077
      %v1079 = vrot.slane %v1074, %v1078
      %v1081 = vadd.f32 %v1066, %v1079
      %v1082 = vadd.f32 %v1067, %v1079
      %v1083 = vadd.f32 %v1068, %v1079
      %v1084 = vadd.f32 %v1069, %v1079
      %v1085 = vadd.f32 %v1070, %v1079
      %v1086 = vadd.f32 %v1071, %v1079
      %v1087 = vadd.f32 %v1072, %v1079
      %v1088 = vadd.f32 %v1073, %v1079
      %v1089 = vmax.f32 %v1081, 0.0
      %v1090 = vmax.f32 %v1082, 0.0
      %v1091 = vmax.f32 %v1083, 0.0
      %v1092 = vmax.f32 %v1084, 0.0
      %v1093 = vmax.f32 %v1085, 0.0
      %v1094 = vmax.f32 %v1086, 0.0
      %v1095 = vmax.f32 %v1087, 0.0
      %v1096 = vmax.f32 %v1088, 0.0
      %1097 = vmatprep.subr.mxu0 0.0
      %1098 = vmatpush1.msra.mxu0 %v1089
      %1099 = vmatprep.subr.mxu0 0.0
      %1100 = vmatpush1.msra.mxu0 %v1090
      %1101 = vmatprep.subr.mxu0 0.0
      %1102 = vmatpush1.msra.mxu0 %v1091
      %1103 = vmatprep.subr.mxu0 0.0
      %1104 = vmatpush1.msra.mxu0 %v1092
      %1105 = vmatprep.subr.mxu0 0.0
      %1106 = vmatpush1.msra.mxu0 %v1093
      %1107 = vmatprep.subr.mxu0 0.0
      %1108 = vmatpush1.msra.mxu0 %v1094
      %1109 = vmatprep.subr.mxu0 0.0
      %1110 = vmatpush1.msra.mxu0 %v1095
      %1111 = vmatprep.subr.mxu0 0.0
      %1112 = vmatpush1.msra.mxu0 %v1096
      %1113 = vmatprep.subr.mxu0 0.0
      %1114 = vmatpush1.msra.mxu0 0.0
      %1115 = vmatprep.subr.mxu0 0.0
      %1116 = vmatpush1.msra.mxu0 0.0
      %1117 = vmatprep.subr.mxu0 0.0
      %1118 = vmatpush1.msra.mxu0 0.0
      %1119 = vmatprep.subr.mxu0 0.0
      %1120 = vmatpush1.msra.mxu0 0.0
      %1121 = vmatprep.subr.mxu0 0.0
      %1122 = vmatpush1.msra.mxu0 0.0
      %1123 = vmatprep.subr.mxu0 0.0
      %1124 = vmatpush1.msra.mxu0 0.0
      %1125 = vmatprep.subr.mxu0 0.0
      %1126 = vmatpush1.msra.mxu0 0.0
      %1127 = vmatprep.subr.mxu0 0.0
      %1128 = vmatpush1.msra.mxu0 0.0
      %1129 = vmatprep.subr.mxu0 0.0
      %1130 = vmatpush1.msra.mxu0 0.0
      %1131 = vmatprep.subr.mxu0 0.0
      %1132 = vmatpush1.msra.mxu0 0.0
      %1133 = vmatprep.subr.mxu0 0.0
      %1134 = vmatpush1.msra.mxu0 0.0
      %1135 = vmatprep.subr.mxu0 0.0
      %1136 = vmatpush1.msra.mxu0 0.0
      %1137 = vmatprep.subr.mxu0 0.0
      %1138 = vmatpush1.msra.mxu0 0.0
      %1139 = vmatprep.subr.mxu0 0.0
      %1140 = vmatpush1.msra.mxu0 0.0
      %1141 = vmatprep.subr.mxu0 0.0
      %1142 = vmatpush1.msra.mxu0 0.0
      %1143 = vmatprep.subr.mxu0 0.0
      %1144 = vmatpush1.msra.mxu0 0.0
      %1145 = vmatprep.subr.mxu0 0.0
      %1146 = vmatpush1.msra.mxu0 0.0
      %1147 = vmatprep.subr.mxu0 0.0
      %1148 = vmatpush1.msra.mxu0 0.0
      %1149 = vmatprep.subr.mxu0 0.0
      %1150 = vmatpush1.msra.mxu0 0.0
      %1151 = vmatprep.subr.mxu0 0.0
      %1152 = vmatpush1.msra.mxu0 0.0
      %1153 = vmatprep.subr.mxu0 0.0
      %1154 = vmatpush1.msra.mxu0 0.0
      %1155 = vmatprep.subr.mxu0 0.0
      %1156 = vmatpush1.msra.mxu0 0.0
      %1157 = vmatprep.subr.mxu0 0.0
      %1158 = vmatpush1.msra.mxu0 0.0
      %1159 = vmatprep.subr.mxu0 0.0
      %1160 = vmatpush1.msra.mxu0 0.0
      %1161 = vmatprep.mubr.f32.mxu0 0.0
      %1162 = vmatmul.mubr.f32.gmra.mrb[0].mxu0 %v787
      %v1163 = vpop.f32.mrb[0].mxu0
      %v1164 = vadd.f32 0.0, %v1163
      %v1165 = vpop.f32.mrb[0].mxu0
      %1166 = vmatprep.mubr.f32.mxu0 0.0
      %1167 = vmatmul.mubr.f32.gmra.mrb[0].mxu0 %v790
      %v1168 = vpop.f32.mrb[0].mxu0
      %v1169 = vadd.f32 0.0, %v1168
      %v1170 = vpop.f32.mrb[0].mxu0
      %1171 = vmatprep.mubr.f32.mxu0 0.0
      %1172 = vmatmul.mubr.f32.gmra.mrb[0].mxu0 %v793
      %v1173 = vpop.f32.mrb[0].mxu0
      %v1174 = vadd.f32 0.0, %v1173
      %v1175 = vpop.f32.mrb[0].mxu0
      %1176 = vmatprep.mubr.f32.mxu0 0.0
      %1177 = vmatmul.mubr.f32.gmra.mrb[0].mxu0 %v796
      %v1178 = vpop.f32.mrb[0].mxu0
      %v1179 = vadd.f32 0.0, %v1178
      %v1180 = vpop.f32.mrb[0].mxu0
      %1181 = vmatprep.mubr.f32.mxu0 0.0
      %1182 = vmatmul.mubr.f32.gmra.mrb[0].mxu0 %v799
      %v1183 = vpop.f32.mrb[0].mxu0
      %v1184 = vadd.f32 0.0, %v1183
      %v1185 = vpop.f32.mrb[0].mxu0
      %1186 = vmatprep.mubr.f32.mxu0 0.0
      %1187 = vmatmul.mubr.f32.gmra.mrb[0].mxu0 %v802
      %v1188 = vpop.f32.mrb[0].mxu0
      %v1189 = vadd.f32 0.0, %v1188
      %v1190 = vpop.f32.mrb[0].mxu0
      %1191 = vmatprep.mubr.f32.mxu0 0.0
      %1192 = vmatmul.mubr.f32.gmra.mrb[0].mxu0 %v805
      %v1193 = vpop.f32.mrb[0].mxu0
      %v1194 = vadd.f32 0.0, %v1193
      %v1195 = vpop.f32.mrb[0].mxu0
      %1196 = vmatprep.mubr.f32.mxu0 0.0
      %1197 = vmatmul.mubr.f32.gmra.mrb[0].mxu0 %v808
      %v1198 = vpop.f32.mrb[0].mxu0
      %v1199 = vadd.f32 0.0, %v1198
      %v1200 = vpop.f32.mrb[0].mxu0
      %1201 = vdwg.mxu0
      %v1202 = vld [vmem:[%s8] sm:$0xff]
      %v1203 = vld [vmem:[%s8 + $0x8] sm:$0xff]
      %v1204 = vld [vmem:[%s8 + $0x10] sm:$0xff]
      %v1205 = vld [vmem:[%s8 + $0x18] sm:$0xff]
      %v1206 = vld [vmem:[%s9] sm:$0x1]
      %v1208 = vlaneseq
      %v1209 = vshrl.u32 %v1208, 7
      %v1210 = vsub.s32 0, %v1209
      %v1211 = vrot.slane %v1206, %v1210
      %vm1213 = vcmask 261120
      %v1215 = vsel %vm1213, %v1164, 0
      %v1218 = vsel %vm1213, %v1169, 0
      %v1221 = vsel %vm1213, %v1174, 0
      %v1224 = vsel %vm1213, %v1179, 0
      %v1227 = vsel %vm1213, %v1184, 0
      %v1230 = vsel %vm1213, %v1189, 0
      %v1233 = vsel %vm1213, %v1194, 0
      %v1236 = vsel %vm1213, %v1199, 0
      %1238 = vmatprep.subr.mxu0 0.0
      %1239 = vmatpush1.msra.mxu0 %v1202
      %1240 = vmatprep.subr.mxu0 0.0
      %1241 = vmatpush1.msra.mxu0 %v1203
      %1242 = vmatprep.subr.mxu0 0.0
      %1243 = vmatpush1.msra.mxu0 %v1204
      %1244 = vmatprep.subr.mxu0 0.0
      %1245 = vmatpush1.msra.mxu0 %v1205
      %1246 = vmatprep.subr.mxu0 0.0
      %1247 = vmatpush1.msra.mxu0 0.0
      %1248 = vmatprep.subr.mxu0 0.0
      %1249 = vmatpush1.msra.mxu0 0.0
      %1250 = vmatprep.subr.mxu0 0.0
      %1251 = vmatpush1.msra.mxu0 0.0
      %1252 = vmatprep.subr.mxu0 0.0
      %1253 = vmatpush1.msra.mxu0 0.0
      %1254 = vmatprep.subr.mxu0 0.0
      %1255 = vmatpush1.msra.mxu0 0.0
      %1256 = vmatprep.subr.mxu0 0.0
      %1257 = vmatpush1.msra.mxu0 0.0
      %1258 = vmatprep.subr.mxu0 0.0
      %1259 = vmatpush1.msra.mxu0 0.0
      %1260 = vmatprep.subr.mxu0 0.0
      %1261 = vmatpush1.msra.mxu0 0.0
      %1262 = vmatprep.subr.mxu0 0.0
      %1263 = vmatpush1.msra.mxu0 0.0
      %1264 = vmatprep.subr.mxu0 0.0
      %1265 = vmatpush1.msra.mxu0 0.0
      %1266 = vmatprep.subr.mxu0 0.0
      %1267 = vmatpush1.msra.mxu0 0.0
      %1268 = vmatprep.subr.mxu0 0.0
      %1269 = vmatpush1.msra.mxu0 0.0
      %1270 = vmatprep.subr.mxu0 0.0
      %1271 = vmatpush1.msra.mxu0 0.0
      %1272 = vmatprep.subr.mxu0 0.0
      %1273 = vmatpush1.msra.mxu0 0.0
      %1274 = vmatprep.subr.mxu0 0.0
      %1275 = vmatpush1.msra.mxu0 0.0
      %1276 = vmatprep.subr.mxu0 0.0
      %1277 = vmatpush1.msra.mxu0 0.0
      %1278 = vmatprep.subr.mxu0 0.0
      %1279 = vmatpush1.msra.mxu0 0.0
      %1280 = vmatprep.subr.mxu0 0.0
      %1281 = vmatpush1.msra.mxu0 0.0
      %1282 = vmatprep.subr.mxu0 0.0
      %1283 = vmatpush1.msra.mxu0 0.0
      %1284 = vmatprep.subr.mxu0 0.0
      %1285 = vmatpush1.msra.mxu0 0.0
      %1286 = vmatprep.subr.mxu0 0.0
      %1287 = vmatpush1.msra.mxu0 0.0
      %1288 = vmatprep.subr.mxu0 0.0
      %1289 = vmatpush1.msra.mxu0 0.0
      %1290 = vmatprep.subr.mxu0 0.0
      %1291 = vmatpush1.msra.mxu0 0.0
      %1292 = vmatprep.subr.mxu0 0.0
      %1293 = vmatpush1.msra.mxu0 0.0
      %1294 = vmatprep.subr.mxu0 0.0
      %1295 = vmatpush1.msra.mxu0 0.0
      %1296 = vmatprep.subr.mxu0 0.0
      %1297 = vmatpush1.msra.mxu0 0.0
      %1298 = vmatprep.subr.mxu0 0.0
      %1299 = vmatpush1.msra.mxu0 0.0
      %1300 = vmatprep.subr.mxu0 0.0
      %1301 = vmatpush1.msra.mxu0 0.0
      %1302 = vmatprep.mubr.f32.mxu0 0.0
      %1303 = vmatmul.mubr.f32.gmra.mrb[0].mxu0 %v1215
      %v1304 = vpop.f32.mrb[0].mxu0
      %v1305 = vadd.f32 %v1211, %v1304
      %v1306 = vpop.f32.mrb[0].mxu0
      %1307 = vmatprep.mubr.f32.mxu0 0.0
      %1308 = vmatmul.mubr.f32.gmra.mrb[0].mxu0 %v1218
      %v1309 = vpop.f32.mrb[0].mxu0
      %v1310 = vadd.f32 %v1211, %v1309
      %v1311 = vpop.f32.mrb[0].mxu0
      %1312 = vmatprep.mubr.f32.mxu0 0.0
      %1313 = vmatmul.mubr.f32.gmra.mrb[0].mxu0 %v1221
      %v1314 = vpop.f32.mrb[0].mxu0
      %v1315 = vadd.f32 %v1211, %v1314
      %v1316 = vpop.f32.mrb[0].mxu0
      %1317 = vmatprep.mubr.f32.mxu0 0.0
      %1318 = vmatmul.mubr.f32.gmra.mrb[0].mxu0 %v1224
      %v1319 = vpop.f32.mrb[0].mxu0
      %v1320 = vadd.f32 %v1211, %v1319
      %v1321 = vpop.f32.mrb[0].mxu0
      %1322 = vmatprep.mubr.f32.mxu0 0.0
      %1323 = vmatmul.mubr.f32.gmra.mrb[0].mxu0 %v1227
      %v1324 = vpop.f32.mrb[0].mxu0
      %v1325 = vadd.f32 %v1211, %v1324
      %v1326 = vpop.f32.mrb[0].mxu0
      %1327 = vmatprep.mubr.f32.mxu0 0.0
      %1328 = vmatmul.mubr.f32.gmra.mrb[0].mxu0 %v1230
      %v1329 = vpop.f32.mrb[0].mxu0
      %v1330 = vadd.f32 %v1211, %v1329
      %v1331 = vpop.f32.mrb[0].mxu0
      %1332 = vmatprep.mubr.f32.mxu0 0.0
      %1333 = vmatmul.mubr.f32.gmra.mrb[0].mxu0 %v1233
      %v1334 = vpop.f32.mrb[0].mxu0
      %v1335 = vadd.f32 %v1211, %v1334
      %v1336 = vpop.f32.mrb[0].mxu0
      %1337 = vmatprep.mubr.f32.mxu0 0.0
      %1338 = vmatmul.mubr.f32.gmra.mrb[0].mxu0 %v1236
      %v1339 = vpop.f32.mrb[0].mxu0
      %v1340 = vadd.f32 %v1211, %v1339
      %v1341 = vpop.f32.mrb[0].mxu0
      %1342 = vdwg.mxu0
      %v1343 = vld [vmem:[%s435] sm:$0xff]
      %v1344 = vld [vmem:[%s435 + $0x8] sm:$0xff]
      %v1345 = vld [vmem:[%s435 + $0x10] sm:$0xff]
      %v1346 = vld [vmem:[%s435 + $0x18] sm:$0xff]
      %v1347 = vld [vmem:[%s435 + $0x20] sm:$0xff]
      %v1348 = vld [vmem:[%s435 + $0x28] sm:$0xff]
      %v1349 = vld [vmem:[%s435 + $0x30] sm:$0xff]
      %v1350 = vld [vmem:[%s435 + $0x38] sm:$0xff]
      %v1351 = vadd.f32 %v1305, %v1343
      %v1352 = vadd.f32 %v1310, %v1344
      %v1353 = vadd.f32 %v1315, %v1345
      %v1354 = vadd.f32 %v1320, %v1346
      %v1355 = vadd.f32 %v1325, %v1347
      %v1356 = vadd.f32 %v1330, %v1348
      %v1357 = vadd.f32 %v1335, %v1349
      %v1358 = vadd.f32 %v1340, %v1350
      %1359 = vst [vmem:[%s440] sm:$0xff] %v1351
      %1360 = vst [vmem:[%s440 + $0x8] sm:$0xff] %v1352
      %1361 = vst [vmem:[%s440 + $0x10] sm:$0xff] %v1353
      %1362 = vst [vmem:[%s440 + $0x18] sm:$0xff] %v1354
      %1363 = vst [vmem:[%s440 + $0x20] sm:$0xff] %v1355
      %1364 = vst [vmem:[%s440 + $0x28] sm:$0xff] %v1356
      %1365 = vst [vmem:[%s440 + $0x30] sm:$0xff] %v1357
      %1366 = vst [vmem:[%s440 + $0x38] sm:$0xff] %v1358
      %p1367 = scmp.lt.s32.totalorder %s22, 5
      %s1368 = scalar_select %p1367, %s22, 5
      %s1369 = smul.addr %s1368, 8
      %s1370 = smul.addr %s1369, 8
      %s1371 = scalar_lea.vmem %s11, %s1370
      // Predicated region
      $region65: #{forward.7} parent=63 // pred_check
        %p1372 = pneg %p291
      $region66: #{forward.7} parent=63 // pred_check_branch
        %1374 = sbr.rel (%p1372) target = $region68
      $region67: #{forward.7} parent=63 // pred_region
        _
      $region68: #{forward.7} parent=63 // pred_fallthru
        _
    $region64: #{forward.7} parent=5 // pred_fallthru
      _
    %p1375 = scmp.le.s32.totalorder 2, %s17
    // Predicated region
    $region69: #{forward.7} parent=5 // pred_check
      %p1376 = pneg %p1375
    $region70: #{forward.7} parent=5 // pred_check_branch
      %1378 = sbr.rel (%p1376) target = $region72
    $region71: #{forward.7} parent=5 // pred_region
      %s1379 = ssub.s32 %s17, 2
      // Predicated region
      $region73: #{forward.7} parent=71 // pred_check
        %p1380 = pneg %p297
      $region74: #{forward.7} parent=71 // pred_check_branch
        %1382 = sbr.rel (%p1380) target = $region76
      $region75: #{forward.7} parent=71 // pred_region
        %p1383 = scmp.lt.s32.totalorder %s23, 5
        %s1384 = scalar_select %p1383, %s23, 5
        %s1385 = smul.addr %s1384, 8
        %s1386 = smul.addr %s1385, 8
        %s1387 = scalar_lea.vmem %s11, %s1386
      $region76: #{forward.7} parent=71 // pred_fallthru
        _
    $region72: #{forward.7} parent=5 // pred_fallthru
      _
  $region6: #{forward.7} parent=0 // loop_footer
    %s21 = sadd.s32 1, %s17
  $region7: #{forward.7} parent=0 // loop_footer_branch
    %16 = sbr.rel target = $region3
  $region8: #{forward.7} parent=0 // loop_exit
    _

// kernel: forward.9
$region0: #{forward.9}
  #allocation0 [shape = 'u32[]', space=smem, size = 0x4, offset = 0x4, fixed_abs, tag = 'smem constant byte address 0x4 - core index']
  #allocation1 [shape = 'u32[144,128]{1,0:T(1,128)}', space=vmem, size = 0x12000, scoped, tag = 'internal scratch']
  %s0 = inlined_call_operand.vmem [shape: f32[1792,8], index: 0, kind: input, shape index: {}]
  %s1 = inlined_call_operand.vmem [shape: f32[8,128], index: 1, kind: input, shape index: {}]
  %s2 = inlined_call_operand.vmem [shape: f32[1,128], index: 2, kind: input, shape index: {}]
  %s3 = inlined_call_operand.vmem [shape: f32[1792,128], index: 3, kind: output, shape index: {}]
  %s4 = sld [smem:[#allocation0]]
  $region45: #{forward.9} parent=0
    _
  %s6 = ssub.s32 1, %s4
  %s7 = scalar_select 0, %s6, %s4
  loop: start=0, step=1, limit=9
  $region2: #{forward.9} parent=0 // loop_pre_header
    _
  $region3: #{forward.9} parent=0 // loop_header
    %s9 = sphi 0, %s13
    %p10 = scmp.ge.s32.totalorder %s9, 9
    %s19 = sphi 0, %s21
    %s22 = sphi 0, %s19
    %s23 = sphi 0, %s22
    %s39 = sphi 0, %s23
    %s43 = sphi 0, %s43
    %s45 = sphi 0, %s43
    %s46 = sphi 0, %s45
    %s60 = sphi 0, %s46
    %s64 = sphi 0, %s64
    %s66 = sphi 0, %s64
    %s67 = sphi 0, %s66
    %s81 = sphi 0, %s67
    %s87 = sphi 0, %s89
    %s90 = sphi 0, %s87
    %s91 = sphi 0, %s90
    %s107 = sphi 0, %s91
  $region4: #{forward.9} parent=0 // loop_header_branch
    %12 = sbr.rel (%p10) target = $region8
  $region5: #{forward.9} parent=0 // loop_body
    %s14 = ssub.s32 %s9, 1
    %s15 = ssub.s32 %s9, 2
    %s16 = sadd.s32 %s9, 1
    %s17 = ssub.s32 %s9, %s16
    %p18 = scmp.eq.s32.totalorder %s17, 0
    %s20 = sadd.s32 %s19, 1
    %s21 = scalar_select %p18, %s19, %s20
    %p24 = pneg %p18
    %p25 = scmp.eq.s32.totalorder %s9, 6
    %p26 = por %p24, %p25
    %p27 = scmp.ne.s32.totalorder %s19, %s22
    %p28 = scmp.eq.s32.totalorder %s9, 0
    %p29 = por %p27, %p28
    %p30 = scmp.ne.s32.totalorder %s19, %s22
    %p31 = scmp.eq.s32.totalorder %s14, 6
    %p32 = por %p30, %p31
    %p33 = scmp.ne.s32.totalorder %s22, %s23
    %p34 = scmp.eq.s32.totalorder %s14, 0
    %p35 = por %p33, %p34
    %p36 = scmp.ne.s32.totalorder %s22, %s23
    %p37 = scmp.eq.s32.totalorder %s15, 6
    %p38 = por %p36, %p37
    %p40 = scmp.ne.s32.totalorder %s23, %s39
    %p41 = scmp.eq.s32.totalorder %s15, 0
    %p42 = por %p40, %p41
    %s44 = sadd.s32 %s43, 1
    %p47 = scmp.eq.s32.totalorder %s9, 6
    %p48 = scmp.ne.s32.totalorder %s43, %s45
    %p49 = scmp.eq.s32.totalorder %s9, 0
    %p50 = por %p48, %p49
    %p51 = scmp.ne.s32.totalorder %s43, %s45
    %p52 = scmp.eq.s32.totalorder %s14, 6
    %p53 = por %p51, %p52
    %p54 = scmp.ne.s32.totalorder %s45, %s46
    %p55 = scmp.eq.s32.totalorder %s14, 0
    %p56 = por %p54, %p55
    %p57 = scmp.ne.s32.totalorder %s45, %s46
    %p58 = scmp.eq.s32.totalorder %s15, 6
    %p59 = por %p57, %p58
    %p61 = scmp.ne.s32.totalorder %s46, %s60
    %p62 = scmp.eq.s32.totalorder %s15, 0
    %p63 = por %p61, %p62
    %s65 = sadd.s32 %s64, 1
    %p68 = scmp.eq.s32.totalorder %s9, 6
    %p69 = scmp.ne.s32.totalorder %s64, %s66
    %p70 = scmp.eq.s32.totalorder %s9, 0
    %p71 = por %p69, %p70
    %p72 = scmp.ne.s32.totalorder %s64, %s66
    %p73 = scmp.eq.s32.totalorder %s14, 6
    %p74 = por %p72, %p73
    %p75 = scmp.ne.s32.totalorder %s66, %s67
    %p76 = scmp.eq.s32.totalorder %s14, 0
    %p77 = por %p75, %p76
    %p78 = scmp.ne.s32.totalorder %s66, %s67
    %p79 = scmp.eq.s32.totalorder %s15, 6
    %p80 = por %p78, %p79
    %p82 = scmp.ne.s32.totalorder %s67, %s81
    %p83 = scmp.eq.s32.totalorder %s15, 0
    %p84 = por %p82, %p83
    %s85 = ssub.s32 %s9, %s16
    %p86 = scmp.eq.s32.totalorder %s85, 0
    %s88 = sadd.s32 %s87, 1
    %s89 = scalar_select %p86, %s87, %s88
    %p92 = pneg %p86
    %p93 = scmp.eq.s32.totalorder %s9, 6
    %p94 = por %p92, %p93
    %p95 = scmp.ne.s32.totalorder %s87, %s90
    %p96 = scmp.eq.s32.totalorder %s9, 0
    %p97 = por %p95, %p96
    %p98 = scmp.ne.s32.totalorder %s87, %s90
    %p99 = scmp.eq.s32.totalorder %s14, 6
    %p100 = por %p98, %p99
    %p101 = scmp.ne.s32.totalorder %s90, %s91
    %p102 = scmp.eq.s32.totalorder %s14, 0
    %p103 = por %p101, %p102
    %p104 = scmp.ne.s32.totalorder %s90, %s91
    %p105 = scmp.eq.s32.totalorder %s15, 6
    %p106 = por %p104, %p105
    %p108 = scmp.ne.s32.totalorder %s91, %s107
    %p109 = scmp.eq.s32.totalorder %s15, 0
    %p110 = por %p108, %p109
    %p111 = scmp.le.s32.totalorder 1, %s9
    %p112 = scmp.lt.s32.totalorder %s9, 8
    %p113 = pnand %p111, %p112
    %p114 = pneg %p113
    // Predicated region
    $region9: #{forward.9} parent=5 // pred_check
      _
    $region10: #{forward.9} parent=5 // pred_check_branch
      %116 = sbr.rel (%p113) target = $region12
    $region11: #{forward.9} parent=5 // pred_region
      %s117 = ssub.s32 %s9, 1
      // Predicated region
      $region13: #{forward.9} parent=11 // pred_check
        %p118 = pneg %p56
      $region14: #{forward.9} parent=11 // pred_check_branch
        %120 = sbr.rel (%p118) target = $region16
      $region15: #{forward.9} parent=11 // pred_region
        _
      $region16: #{forward.9} parent=11 // pred_fallthru
        _
      // Predicated region
      $region17: #{forward.9} parent=11 // pred_check
        %p121 = pneg %p77
      $region18: #{forward.9} parent=11 // pred_check_branch
        %123 = sbr.rel (%p121) target = $region20
      $region19: #{forward.9} parent=11 // pred_region
        _
      $region20: #{forward.9} parent=11 // pred_fallthru
        _
    $region12: #{forward.9} parent=5 // pred_fallthru
      _
    %p124 = scmp.lt.s32.totalorder %s9, 7
    // Predicated region
    $region21: #{forward.9} parent=5 // pred_check
      %p125 = pneg %p124
    $region22: #{forward.9} parent=5 // pred_check_branch
      %127 = sbr.rel (%p125) target = $region24
    $region23: #{forward.9} parent=5 // pred_region
      // Predicated region
      $region25: #{forward.9} parent=23 // pred_check
        %p128 = pneg %p29
      $region26: #{forward.9} parent=23 // pred_check_branch
        %130 = sbr.rel (%p128) target = $region28
      $region27: #{forward.9} parent=23 // pred_region
        %s131 = smul.u32 32, %s9
        %p132 = scmp.lt.s32.totalorder %s131, 223
        %s133 = scalar_select %p132, %s131, 223
        %s134 = smul.addr %s133, 8
        %s135 = scalar_lea.vmem %s0, %s134
        %s136 = smul.u32 32, %s9
      $region28: #{forward.9} parent=23 // pred_fallthru
        _
    $region24: #{forward.9} parent=5 // pred_fallthru
      _
    %p137 = scmp.le.s32.totalorder 1, %s9
    %p138 = scmp.lt.s32.totalorder %s9, 8
    %p139 = pnand %p137, %p138
    %p140 = pneg %p139
    // Predicated region
    $region29: #{forward.9} parent=5 // pred_check
      _
    $region30: #{forward.9} parent=5 // pred_check_branch
      %142 = sbr.rel (%p139) target = $region32
    $region31: #{forward.9} parent=5 // pred_region
      %s143 = ssub.s32 %s9, 1
      %s144 = smul.u32 32, %s14
      %p145 = scmp.lt.s32.totalorder %s144, 223
      %s146 = scalar_select %p145, %s144, 223
      %s147 = smul.addr %s146, 8
      %s148 = scalar_lea.vmem %s0, %s147
      %p149 = pneg %p35
      %p150 = pneg %p32
      %p151 = pneg %p56
      %p152 = pneg %p53
      %p153 = pneg %p77
      %p154 = pneg %p74
      %p155 = pneg %p103
      %p156 = pneg %p100
      %s157 = smul.u32 32, %s14
      %p158 = scmp.lt.s32.totalorder %s157, 223
      %s159 = scalar_select %p158, %s157, 223
      %s160 = smul.addr %s159, 8
      %s161 = scalar_lea.vmem %s3, %s160
      %s162 = smul.u32 32, %s14
      %p163 = scmp.lt.s32.totalorder %s162, 223
      %s164 = scalar_select %p163, %s162, 223
      %s165 = smul.addr %s164, 8
      %s166 = scalar_lea.vmem %s0, %s165
      %s167 = smul.u32 32, %s14
      %s168 = smul.u32 32, %s14
      %p169 = scmp.lt.s32.totalorder %s168, 223
      %s170 = scalar_select %p169, %s168, 223
      %s171 = smul.addr %s170, 8
      %s172 = scalar_lea.vmem %s3, %s171
      %s173 = smul.u32 32, %s14
      %v174 = vld [vmem:[%s166] sm:$0xff]
      %v175 = vld [vmem:[%s166 + $0x8] sm:$0xff]
      %v176 = vld [vmem:[%s166 + $0x10] sm:$0xff]
      %v177 = vld [vmem:[%s166 + $0x18] sm:$0xff]
      %v178 = vld [vmem:[%s166 + $0x20] sm:$0xff]
      %v179 = vld [vmem:[%s166 + $0x28] sm:$0xff]
      %v180 = vld [vmem:[%s166 + $0x30] sm:$0xff]
      %v181 = vld [vmem:[%s166 + $0x38] sm:$0xff]
      %v182 = vld [vmem:[%s166 + $0x40] sm:$0xff]
      %v183 = vld [vmem:[%s166 + $0x48] sm:$0xff]
      %v184 = vld [vmem:[%s166 + $0x50] sm:$0xff]
      %v185 = vld [vmem:[%s166 + $0x58] sm:$0xff]
      %v186 = vld [vmem:[%s166 + $0x60] sm:$0xff]
      %v187 = vld [vmem:[%s166 + $0x68] sm:$0xff]
      %v188 = vld [vmem:[%s166 + $0x70] sm:$0xff]
      %v189 = vld [vmem:[%s166 + $0x78] sm:$0xff]
      %v190 = vld [vmem:[%s166 + $0x80] sm:$0xff]
      %v191 = vld [vmem:[%s166 + $0x88] sm:$0xff]
      %v192 = vld [vmem:[%s166 + $0x90] sm:$0xff]
      %v193 = vld [vmem:[%s166 + $0x98] sm:$0xff]
      %v194 = vld [vmem:[%s166 + $0xa0] sm:$0xff]
      %v195 = vld [vmem:[%s166 + $0xa8] sm:$0xff]
      %v196 = vld [vmem:[%s166 + $0xb0] sm:$0xff]
      %v197 = vld [vmem:[%s166 + $0xb8] sm:$0xff]
      %v198 = vld [vmem:[%s166 + $0xc0] sm:$0xff]
      %v199 = vld [vmem:[%s166 + $0xc8] sm:$0xff]
      %v200 = vld [vmem:[%s166 + $0xd0] sm:$0xff]
      %v201 = vld [vmem:[%s166 + $0xd8] sm:$0xff]
      %v202 = vld [vmem:[%s166 + $0xe0] sm:$0xff]
      %v203 = vld [vmem:[%s166 + $0xe8] sm:$0xff]
      %v204 = vld [vmem:[%s166 + $0xf0] sm:$0xff]
      %v205 = vld [vmem:[%s166 + $0xf8] sm:$0xff]
      %v206 = vld [vmem:[%s1] sm:$0xff]
      %v207 = vld [vmem:[%s2] sm:$0x1]
      %v209 = vlaneseq
      %v210 = vshrl.u32 %v209, 7
      %v211 = vsub.s32 0, %v210
      %v212 = vrot.slane %v207, %v211
      %vm214 = vcmask 64512
      %v216 = vsel %vm214, %v174, 0
      %v219 = vsel %vm214, %v175, 0
      %v222 = vsel %vm214, %v176, 0
      %v225 = vsel %vm214, %v177, 0
      %v228 = vsel %vm214, %v178, 0
      %v231 = vsel %vm214, %v179, 0
      %v234 = vsel %vm214, %v180, 0
      %v237 = vsel %vm214, %v181, 0
      %v240 = vsel %vm214, %v182, 0
      %v243 = vsel %vm214, %v183, 0
      %v246 = vsel %vm214, %v184, 0
      %v249 = vsel %vm214, %v185, 0
      %v252 = vsel %vm214, %v186, 0
      %v255 = vsel %vm214, %v187, 0
      %v258 = vsel %vm214, %v188, 0
      %v261 = vsel %vm214, %v189, 0
      %v264 = vsel %vm214, %v190, 0
      %v267 = vsel %vm214, %v191, 0
      %v270 = vsel %vm214, %v192, 0
      %v273 = vsel %vm214, %v193, 0
      %v276 = vsel %vm214, %v194, 0
      %v279 = vsel %vm214, %v195, 0
      %v282 = vsel %vm214, %v196, 0
      %v285 = vsel %vm214, %v197, 0
      %v288 = vsel %vm214, %v198, 0
      %v291 = vsel %vm214, %v199, 0
      %v294 = vsel %vm214, %v200, 0
      %v297 = vsel %vm214, %v201, 0
      %v300 = vsel %vm214, %v202, 0
      %v303 = vsel %vm214, %v203, 0
      %v306 = vsel %vm214, %v204, 0
      %v309 = vsel %vm214, %v205, 0
      %311 = vmatprep.subr.mxu0 0.0
      %312 = vmatpush1.msra.mxu0 %v206
      %313 = vmatprep.subr.mxu0 0.0
      %314 = vmatpush1.msra.mxu0 0.0
      %315 = vmatprep.subr.mxu0 0.0
      %316 = vmatpush1.msra.mxu0 0.0
      %317 = vmatprep.subr.mxu0 0.0
      %318 = vmatpush1.msra.mxu0 0.0
      %319 = vmatprep.subr.mxu0 0.0
      %320 = vmatpush1.msra.mxu0 0.0
      %321 = vmatprep.subr.mxu0 0.0
      %322 = vmatpush1.msra.mxu0 0.0
      %323 = vmatprep.subr.mxu0 0.0
      %324 = vmatpush1.msra.mxu0 0.0
      %325 = vmatprep.subr.mxu0 0.0
      %326 = vmatpush1.msra.mxu0 0.0
      %327 = vmatprep.subr.mxu0 0.0
      %328 = vmatpush1.msra.mxu0 0.0
      %329 = vmatprep.subr.mxu0 0.0
      %330 = vmatpush1.msra.mxu0 0.0
      %331 = vmatprep.subr.mxu0 0.0
      %332 = vmatpush1.msra.mxu0 0.0
      %333 = vmatprep.subr.mxu0 0.0
      %334 = vmatpush1.msra.mxu0 0.0
      %335 = vmatprep.subr.mxu0 0.0
      %336 = vmatpush1.msra.mxu0 0.0
      %337 = vmatprep.subr.mxu0 0.0
      %338 = vmatpush1.msra.mxu0 0.0
      %339 = vmatprep.subr.mxu0 0.0
      %340 = vmatpush1.msra.mxu0 0.0
      %341 = vmatprep.subr.mxu0 0.0
      %342 = vmatpush1.msra.mxu0 0.0
      %343 = vmatprep.subr.mxu0 0.0
      %344 = vmatpush1.msra.mxu0 0.0
      %345 = vmatprep.subr.mxu0 0.0
      %346 = vmatpush1.msra.mxu0 0.0
      %347 = vmatprep.subr.mxu0 0.0
      %348 = vmatpush1.msra.mxu0 0.0
      %349 = vmatprep.subr.mxu0 0.0
      %350 = vmatpush1.msra.mxu0 0.0
      %351 = vmatprep.subr.mxu0 0.0
      %352 = vmatpush1.msra.mxu0 0.0
      %353 = vmatprep.subr.mxu0 0.0
      %354 = vmatpush1.msra.mxu0 0.0
      %355 = vmatprep.subr.mxu0 0.0
      %356 = vmatpush1.msra.mxu0 0.0
      %357 = vmatprep.subr.mxu0 0.0
      %358 = vmatpush1.msra.mxu0 0.0
      %359 = vmatprep.subr.mxu0 0.0
      %360 = vmatpush1.msra.mxu0 0.0
      %361 = vmatprep.subr.mxu0 0.0
      %362 = vmatpush1.msra.mxu0 0.0
      %363 = vmatprep.subr.mxu0 0.0
      %364 = vmatpush1.msra.mxu0 0.0
      %365 = vmatprep.subr.mxu0 0.0
      %366 = vmatpush1.msra.mxu0 0.0
      %367 = vmatprep.subr.mxu0 0.0
      %368 = vmatpush1.msra.mxu0 0.0
      %369 = vmatprep.subr.mxu0 0.0
      %370 = vmatpush1.msra.mxu0 0.0
      %371 = vmatprep.subr.mxu0 0.0
      %372 = vmatpush1.msra.mxu0 0.0
      %373 = vmatprep.subr.mxu0 0.0
      %374 = vmatpush1.msra.mxu0 0.0
      %375 = vmatprep.mubr.f32.mxu0 0.0
      %376 = vmatmul.mubr.f32.gmra.mrb[0].mxu0 %v216
      %v377 = vpop.f32.mrb[0].mxu0
      %v378 = vadd.f32 %v212, %v377
      %v379 = vpop.f32.mrb[0].mxu0
      %380 = vmatprep.mubr.f32.mxu0 0.0
      %381 = vmatmul.mubr.f32.gmra.mrb[0].mxu0 %v219
      %v382 = vpop.f32.mrb[0].mxu0
      %v383 = vadd.f32 %v212, %v382
      %v384 = vpop.f32.mrb[0].mxu0
      %385 = vmatprep.mubr.f32.mxu0 0.0
      %386 = vmatmul.mubr.f32.gmra.mrb[0].mxu0 %v222
      %v387 = vpop.f32.mrb[0].mxu0
      %v388 = vadd.f32 %v212, %v387
      %v389 = vpop.f32.mrb[0].mxu0
      %390 = vmatprep.mubr.f32.mxu0 0.0
      %391 = vmatmul.mubr.f32.gmra.mrb[0].mxu0 %v225
      %v392 = vpop.f32.mrb[0].mxu0
      %v393 = vadd.f32 %v212, %v392
      %v394 = vpop.f32.mrb[0].mxu0
      %395 = vmatprep.mubr.f32.mxu0 0.0
      %396 = vmatmul.mubr.f32.gmra.mrb[0].mxu0 %v228
      %v397 = vpop.f32.mrb[0].mxu0
      %v398 = vadd.f32 %v212, %v397
      %v399 = vpop.f32.mrb[0].mxu0
      %400 = vmatprep.mubr.f32.mxu0 0.0
      %401 = vmatmul.mubr.f32.gmra.mrb[0].mxu0 %v231
      %v402 = vpop.f32.mrb[0].mxu0
      %v403 = vadd.f32 %v212, %v402
      %v404 = vpop.f32.mrb[0].mxu0
      %405 = vmatprep.mubr.f32.mxu0 0.0
      %406 = vmatmul.mubr.f32.gmra.mrb[0].mxu0 %v234
      %v407 = vpop.f32.mrb[0].mxu0
      %v408 = vadd.f32 %v212, %v407
      %v409 = vpop.f32.mrb[0].mxu0
      %410 = vmatprep.mubr.f32.mxu0 0.0
      %411 = vmatmul.mubr.f32.gmra.mrb[0].mxu0 %v237
      %v412 = vpop.f32.mrb[0].mxu0
      %v413 = vadd.f32 %v212, %v412
      %v414 = vpop.f32.mrb[0].mxu0
      %415 = vmatprep.mubr.f32.mxu0 0.0
      %416 = vmatmul.mubr.f32.gmra.mrb[0].mxu0 %v240
      %v417 = vpop.f32.mrb[0].mxu0
      %v418 = vadd.f32 %v212, %v417
      %v419 = vpop.f32.mrb[0].mxu0
      %420 = vmatprep.mubr.f32.mxu0 0.0
      %421 = vmatmul.mubr.f32.gmra.mrb[0].mxu0 %v243
      %v422 = vpop.f32.mrb[0].mxu0
      %v423 = vadd.f32 %v212, %v422
      %v424 = vpop.f32.mrb[0].mxu0
      %425 = vmatprep.mubr.f32.mxu0 0.0
      %426 = vmatmul.mubr.f32.gmra.mrb[0].mxu0 %v246
      %v427 = vpop.f32.mrb[0].mxu0
      %v428 = vadd.f32 %v212, %v427
      %v429 = vpop.f32.mrb[0].mxu0
      %430 = vmatprep.mubr.f32.mxu0 0.0
      %431 = vmatmul.mubr.f32.gmra.mrb[0].mxu0 %v249
      %v432 = vpop.f32.mrb[0].mxu0
      %v433 = vadd.f32 %v212, %v432
      %v434 = vpop.f32.mrb[0].mxu0
      %435 = vmatprep.mubr.f32.mxu0 0.0
      %436 = vmatmul.mubr.f32.gmra.mrb[0].mxu0 %v252
      %v437 = vpop.f32.mrb[0].mxu0
      %v438 = vadd.f32 %v212, %v437
      %v439 = vpop.f32.mrb[0].mxu0
      %440 = vmatprep.mubr.f32.mxu0 0.0
      %441 = vmatmul.mubr.f32.gmra.mrb[0].mxu0 %v255
      %v442 = vpop.f32.mrb[0].mxu0
      %v443 = vadd.f32 %v212, %v442
      %v444 = vpop.f32.mrb[0].mxu0
      %445 = vmatprep.mubr.f32.mxu0 0.0
      %446 = vmatmul.mubr.f32.gmra.mrb[0].mxu0 %v258
      %v447 = vpop.f32.mrb[0].mxu0
      %v448 = vadd.f32 %v212, %v447
      %v449 = vpop.f32.mrb[0].mxu0
      %450 = vmatprep.mubr.f32.mxu0 0.0
      %451 = vmatmul.mubr.f32.gmra.mrb[0].mxu0 %v261
      %v452 = vpop.f32.mrb[0].mxu0
      %v453 = vadd.f32 %v212, %v452
      %v454 = vpop.f32.mrb[0].mxu0
      %455 = vmatprep.mubr.f32.mxu0 0.0
      %456 = vmatmul.mubr.f32.gmra.mrb[0].mxu0 %v264
      %v457 = vpop.f32.mrb[0].mxu0
      %v458 = vadd.f32 %v212, %v457
      %v459 = vpop.f32.mrb[0].mxu0
      %460 = vmatprep.mubr.f32.mxu0 0.0
      %461 = vmatmul.mubr.f32.gmra.mrb[0].mxu0 %v267
      %v462 = vpop.f32.mrb[0].mxu0
      %v463 = vadd.f32 %v212, %v462
      %v464 = vpop.f32.mrb[0].mxu0
      %465 = vmatprep.mubr.f32.mxu0 0.0
      %466 = vmatmul.mubr.f32.gmra.mrb[0].mxu0 %v270
      %v467 = vpop.f32.mrb[0].mxu0
      %v468 = vadd.f32 %v212, %v467
      %v469 = vpop.f32.mrb[0].mxu0
      %470 = vmatprep.mubr.f32.mxu0 0.0
      %471 = vmatmul.mubr.f32.gmra.mrb[0].mxu0 %v273
      %v472 = vpop.f32.mrb[0].mxu0
      %v473 = vadd.f32 %v212, %v472
      %v474 = vpop.f32.mrb[0].mxu0
      %475 = vmatprep.mubr.f32.mxu0 0.0
      %476 = vmatmul.mubr.f32.gmra.mrb[0].mxu0 %v276
      %v477 = vpop.f32.mrb[0].mxu0
      %v478 = vadd.f32 %v212, %v477
      %v479 = vpop.f32.mrb[0].mxu0
      %480 = vmatprep.mubr.f32.mxu0 0.0
      %481 = vmatmul.mubr.f32.gmra.mrb[0].mxu0 %v279
      %v482 = vpop.f32.mrb[0].mxu0
      %v483 = vadd.f32 %v212, %v482
      %v484 = vpop.f32.mrb[0].mxu0
      %485 = vmatprep.mubr.f32.mxu0 0.0
      %486 = vmatmul.mubr.f32.gmra.mrb[0].mxu0 %v282
      %v487 = vpop.f32.mrb[0].mxu0
      %v488 = vadd.f32 %v212, %v487
      %v489 = vpop.f32.mrb[0].mxu0
      %490 = vmatprep.mubr.f32.mxu0 0.0
      %491 = vmatmul.mubr.f32.gmra.mrb[0].mxu0 %v285
      %v492 = vpop.f32.mrb[0].mxu0
      %v493 = vadd.f32 %v212, %v492
      %v494 = vpop.f32.mrb[0].mxu0
      %495 = vmatprep.mubr.f32.mxu0 0.0
      %496 = vmatmul.mubr.f32.gmra.mrb[0].mxu0 %v288
      %v497 = vpop.f32.mrb[0].mxu0
      %v498 = vadd.f32 %v212, %v497
      %v499 = vpop.f32.mrb[0].mxu0
      %500 = vmatprep.mubr.f32.mxu0 0.0
      %501 = vmatmul.mubr.f32.gmra.mrb[0].mxu0 %v291
      %v502 = vpop.f32.mrb[0].mxu0
      %v503 = vadd.f32 %v212, %v502
      %v504 = vpop.f32.mrb[0].mxu0
      %505 = vmatprep.mubr.f32.mxu0 0.0
      %506 = vmatmul.mubr.f32.gmra.mrb[0].mxu0 %v294
      %v507 = vpop.f32.mrb[0].mxu0
      %v508 = vadd.f32 %v212, %v507
      %v509 = vpop.f32.mrb[0].mxu0
      %510 = vmatprep.mubr.f32.mxu0 0.0
      %511 = vmatmul.mubr.f32.gmra.mrb[0].mxu0 %v297
      %v512 = vpop.f32.mrb[0].mxu0
      %v513 = vadd.f32 %v212, %v512
      %v514 = vpop.f32.mrb[0].mxu0
      %515 = vmatprep.mubr.f32.mxu0 0.0
      %516 = vmatmul.mubr.f32.gmra.mrb[0].mxu0 %v300
      %v517 = vpop.f32.mrb[0].mxu0
      %v518 = vadd.f32 %v212, %v517
      %v519 = vpop.f32.mrb[0].mxu0
      %520 = vmatprep.mubr.f32.mxu0 0.0
      %521 = vmatmul.mubr.f32.gmra.mrb[0].mxu0 %v303
      %v522 = vpop.f32.mrb[0].mxu0
      %v523 = vadd.f32 %v212, %v522
      %v524 = vpop.f32.mrb[0].mxu0
      %525 = vmatprep.mubr.f32.mxu0 0.0
      %526 = vmatmul.mubr.f32.gmra.mrb[0].mxu0 %v306
      %v527 = vpop.f32.mrb[0].mxu0
      %v528 = vadd.f32 %v212, %v527
      %v529 = vpop.f32.mrb[0].mxu0
      %530 = vmatprep.mubr.f32.mxu0 0.0
      %531 = vmatmul.mubr.f32.gmra.mrb[0].mxu0 %v309
      %v532 = vpop.f32.mrb[0].mxu0
      %v533 = vadd.f32 %v212, %v532
      %v534 = vpop.f32.mrb[0].mxu0
      %535 = vdwg.mxu0
      %536 = vst [vmem:[%s172] sm:$0xff] %v378
      %537 = vst [vmem:[%s172 + $0x8] sm:$0xff] %v383
      %538 = vst [vmem:[%s172 + $0x10] sm:$0xff] %v388
      %539 = vst [vmem:[%s172 + $0x18] sm:$0xff] %v393
      %540 = vst [vmem:[%s172 + $0x20] sm:$0xff] %v398
      %541 = vst [vmem:[%s172 + $0x28] sm:$0xff] %v403
      %542 = vst [vmem:[%s172 + $0x30] sm:$0xff] %v408
      %543 = vst [vmem:[%s172 + $0x38] sm:$0xff] %v413
      %544 = vst [vmem:[%s172 + $0x40] sm:$0xff] %v418
      %545 = vst [vmem:[%s172 + $0x48] sm:$0xff] %v423
      %546 = vst [vmem:[%s172 + $0x50] sm:$0xff] %v428
      %547 = vst [vmem:[%s172 + $0x58] sm:$0xff] %v433
      %548 = vst [vmem:[%s172 + $0x60] sm:$0xff] %v438
      %549 = vst [vmem:[%s172 + $0x68] sm:$0xff] %v443
      %550 = vst [vmem:[%s172 + $0x70] sm:$0xff] %v448
      %551 = vst [vmem:[%s172 + $0x78] sm:$0xff] %v453
      %552 = vst [vmem:[%s172 + $0x80] sm:$0xff] %v458
      %553 = vst [vmem:[%s172 + $0x88] sm:$0xff] %v463
      %554 = vst [vmem:[%s172 + $0x90] sm:$0xff] %v468
      %555 = vst [vmem:[%s172 + $0x98] sm:$0xff] %v473
      %556 = vst [vmem:[%s172 + $0xa0] sm:$0xff] %v478
      %557 = vst [vmem:[%s172 + $0xa8] sm:$0xff] %v483
      %558 = vst [vmem:[%s172 + $0xb0] sm:$0xff] %v488
      %559 = vst [vmem:[%s172 + $0xb8] sm:$0xff] %v493
      %560 = vst [vmem:[%s172 + $0xc0] sm:$0xff] %v498
      %561 = vst [vmem:[%s172 + $0xc8] sm:$0xff] %v503
      %562 = vst [vmem:[%s172 + $0xd0] sm:$0xff] %v508
      %563 = vst [vmem:[%s172 + $0xd8] sm:$0xff] %v513
      %564 = vst [vmem:[%s172 + $0xe0] sm:$0xff] %v518
      %565 = vst [vmem:[%s172 + $0xe8] sm:$0xff] %v523
      %566 = vst [vmem:[%s172 + $0xf0] sm:$0xff] %v528
      %567 = vst [vmem:[%s172 + $0xf8] sm:$0xff] %v533
      %s568 = smul.u32 32, %s14
      %p569 = scmp.lt.s32.totalorder %s568, 223
      %s570 = scalar_select %p569, %s568, 223
      %s571 = smul.addr %s570, 8
      %s572 = scalar_lea.vmem %s3, %s571
      // Predicated region
      $region33: #{forward.9} parent=31 // pred_check
        %p573 = pneg %p100
      $region34: #{forward.9} parent=31 // pred_check_branch
        %575 = sbr.rel (%p573) target = $region36
      $region35: #{forward.9} parent=31 // pred_region
        %s576 = smul.u32 32, %s14
      $region36: #{forward.9} parent=31 // pred_fallthru
        _
    $region32: #{forward.9} parent=5 // pred_fallthru
      _
    %p577 = scmp.le.s32.totalorder 2, %s9
    // Predicated region
    $region37: #{forward.9} parent=5 // pred_check
      %p578 = pneg %p577
    $region38: #{forward.9} parent=5 // pred_check_branch
      %580 = sbr.rel (%p578) target = $region40
    $region39: #{forward.9} parent=5 // pred_region
      %s581 = ssub.s32 %s9, 2
      // Predicated region
      $region41: #{forward.9} parent=39 // pred_check
        %p582 = pneg %p106
      $region42: #{forward.9} parent=39 // pred_check_branch
        %584 = sbr.rel (%p582) target = $region44
      $region43: #{forward.9} parent=39 // pred_region
        %s585 = smul.u32 32, %s15
        %p586 = scmp.lt.s32.totalorder %s585, 223
        %s587 = scalar_select %p586, %s585, 223
        %s588 = smul.addr %s587, 8
        %s589 = scalar_lea.vmem %s3, %s588
      $region44: #{forward.9} parent=39 // pred_fallthru
        _
    $region40: #{forward.9} parent=5 // pred_fallthru
      _
  $region6: #{forward.9} parent=0 // loop_footer
    %s13 = sadd.s32 1, %s9
  $region7: #{forward.9} parent=0 // loop_footer_branch
    %8 = sbr.rel target = $region3
  $region8: #{forward.9} parent=0 // loop_exit
    _

</llo_original>
